<compile_context>
chip_gen: v5e
topology: v5e:2x2
jax: 0.10.0
libtpu: 0.0.40
codegen_flags: <defaults>
</compile_context>

<pallas_src>
import functools

import jax
import jax.numpy as jnp
from jax.experimental import pallas as pl
from jax.experimental.pallas import tpu as pltpu


def _round_up(x, m):
    return (x + m - 1) // m * m


def niqa_head_kernel(
    fea_ref,          # (G, Lq_pad, Cf)   bf16  channel-last encoder-feature tokens
    vit_ref,          # (G, Lkv_pad, 4D)  bf16  concatenated (frozen-ViT) hook features
    wp_ref, bp_ref,   # fea_proj 1x1 conv:      (Cf, D) bf16, (1, D) f32
    wfp_ref,          # feature_proj (no bias): (4D, D) bf16
    wq_ref, wk_ref, wv_ref,        # (D, D) bf16 each, no bias
    wff1_ref, wff2_ref,            # ffn: (D, 4D), (4D, D) bf16, no bias
    wfc1_ref, bfc1_ref,            # fc[0]: (D, D) bf16, (1, D) f32
    wfc2_ref, bfc2_ref,            # fc[2]: (D, 1) bf16, (1, 1) f32
    out_ref,                       # (G, 1, 128) f32: score broadcast across lanes
    *, group, lq, lq_pad, lkv, lkv_pad,
):
    f32 = jnp.float32
    bf16 = jnp.bfloat16
    d = wq_ref.shape[1]
    cf = fea_ref.shape[2]
    c4 = vit_ref.shape[2]

    # Token-padded dims are multiples of 8 -> these 3D<->2D reshapes are
    # sublane-aligned (no relayout copies through the XLU).
    fea = fea_ref[...].reshape(group * lq_pad, cf)       # (G*Lqp, Cf)  bf16
    vit = vit_ref[...].reshape(group * lkv_pad, c4)      # (G*Lkvp, 4D) bf16

    # fea_proj: 1x1 conv over NCHW == per-token linear (+ bias).
    fea_e = jnp.dot(fea, wp_ref[...], preferred_element_type=f32) + bp_ref[...]

    # feature_proj (bias=False); stands in for block(feature_proj(hook_feats)).
    kv_src = jnp.dot(vit, wfp_ref[...], preferred_element_type=f32)   # (G*Lkvp, D)
    kv_bf = kv_src.astype(bf16)

    q = jnp.dot(fea_e.astype(bf16), wq_ref[...], preferred_element_type=f32)
    k = jnp.dot(kv_bf, wk_ref[...], preferred_element_type=f32)
    v = jnp.dot(kv_bf, wv_ref[...], preferred_element_type=f32)

    scale = float(d) ** (-0.5)                            # enc_dim ** -0.5
    q3 = q.reshape(group, lq_pad, d).astype(bf16)
    k3 = k.reshape(group, lkv_pad, d).astype(bf16)
    v3 = v.reshape(group, lkv_pad, d).astype(bf16)

    # Per-image attention: batched contraction on the last dims (no explicit
    # K^T transpose materialised).
    logits = jnp.einsum('gqd,gkd->gqk', q3, k3,
                        preferred_element_type=f32) * scale           # (G, Lqp, Lkvp)
    if lkv_pad != lkv:                                    # mask padded KV columns
        kv_idx = jax.lax.broadcasted_iota(jnp.int32, (1, 1, lkv_pad), 2)
        logits = jnp.where(kv_idx < lkv, logits, -1e30)
    logits = logits - jnp.max(logits, axis=-1, keepdims=True)
    p = jnp.exp(logits)
    attn = p / jnp.sum(p, axis=-1, keepdims=True)         # exact softmax(dim=-1)
    # drop_attn(p=0.1) -> identity in eval mode.

    x_att = jnp.einsum('gqk,gkd->gqd', attn.astype(bf16), v3,
                       preferred_element_type=f32)                    # (G, Lqp, D)
    x2 = x_att.reshape(group * lq_pad, d)

    # ffn: Linear -> GELU -> Linear -> GELU (no biases), residual add.
    # TODO(synk): PyTorch nn.GELU() is exact-erf; tanh-approximate GELU is used
    #             here (Mosaic-safe transcendentals), max |delta| ~1e-3.
    h = jnp.dot(x2.astype(bf16), wff1_ref[...], preferred_element_type=f32)
    h = jax.nn.gelu(h, approximate=True)
    h = jnp.dot(h.astype(bf16), wff2_ref[...], preferred_element_type=f32)
    ffn = jax.nn.gelu(h, approximate=True)
    token = x2 + ffn                                                  # (G*Lqp, D)

    # rearrange 'b (h w) c -> b c h w' + AdaptiveAvgPool2d(1) == mean over L.
    tok3 = token.reshape(group, lq_pad, d)
    if lq_pad != lq:                                      # drop padded query rows
        q_idx = jax.lax.broadcasted_iota(jnp.int32, (1, lq_pad, 1), 1)
        tok3 = jnp.where(q_idx < lq, tok3, 0.0)
    pooled = jnp.sum(tok3, axis=1) * (1.0 / lq)           # (G, D), mean over real L

    # fc: Linear(D, D) -> ReLU -> Linear(D, 1)
    hidden = jnp.maximum(
        jnp.dot(pooled.astype(bf16), wfc1_ref[...], preferred_element_type=f32)
        + bfc1_ref[...],
        0.0,
    )
    score = (jnp.dot(hidden.astype(bf16), wfc2_ref[...], preferred_element_type=f32)
             + bfc2_ref[...])                             # (G, 1)

    out_ref[...] = jnp.broadcast_to(score.reshape(group, 1, 1), out_ref.shape)


def niqa_head(fea_nchw, vit_feats, params, *, group=None):
    """fea_nchw: (B, Cf, H, W) f32; vit_feats: (B, Lkv, 4*D) f32 -> (B, 1) score."""
    B, Cf, H, W = fea_nchw.shape
    Lq = H * W
    Lkv, C4 = int(vit_feats.shape[1]), int(vit_feats.shape[2])
    D = int(params["wq"].shape[0])

    lq_pad = _round_up(Lq, 8)
    lkv_pad = _round_up(Lkv, 8)
    if group is None:
        # Images per grid step: large enough to feed the MXU (M = group*lq_pad
        # token rows per matmul), small enough to bound per-step VMEM on v7x.
        group = next(g for g in (4, 2, 1) if B % g == 0)
    grid = (B // group,)

    bf16 = jnp.bfloat16

    # bf16-cast the two large activations in the wrapper (halves HBM traffic /
    # VMEM residency).  The NCHW -> token-major transpose is fused by XLA with
    # this mandatory cast, so it adds no extra HBM pass.  Token axes are padded
    # to multiples of 8; padded tokens are masked inside the kernel.
    fea_tok = jnp.transpose(fea_nchw.reshape(B, Cf, Lq), (0, 2, 1)).astype(bf16)
    if lq_pad != Lq:
        fea_tok = jnp.pad(fea_tok, ((0, 0), (0, lq_pad - Lq), (0, 0)))
    vit_tok = vit_feats.astype(bf16)
    if lkv_pad != Lkv:
        vit_tok = jnp.pad(vit_tok, ((0, 0), (0, lkv_pad - Lkv), (0, 0)))

    # Weight matrices in bf16 (halved HBM / VMEM); biases stay f32.
    weights = [
        params["wp"].astype(bf16),   params["bp"].astype(jnp.float32),
        params["wfp"].astype(bf16),
        params["wq"].astype(bf16),   params["wk"].astype(bf16),
        params["wv"].astype(bf16),
        params["wff1"].astype(bf16), params["wff2"].astype(bf16),
        params["wfc1"].astype(bf16), params["bfc1"].astype(jnp.float32),
        params["wfc2"].astype(bf16), params["bfc2"].astype(jnp.float32),
    ]

    # Inputs/outputs tiled on the batch axis; every weight gets a constant
    # index_map so it is DMA'd once and stays VMEM-resident across grid steps.
    in_specs = [
        pl.BlockSpec((group, lq_pad, Cf), lambda b: (b, 0, 0)),
        pl.BlockSpec((group, lkv_pad, C4), lambda b: (b, 0, 0)),
    ] + [pl.BlockSpec(tuple(w.shape), lambda b: (0, 0)) for w in weights]
    out_spec = pl.BlockSpec((group, 1, 128), lambda b: (b, 0, 0))

    kernel = functools.partial(niqa_head_kernel, group=group, lq=Lq,
                               lq_pad=lq_pad, lkv=Lkv, lkv_pad=lkv_pad)

    # Advisory cost hint so XLA schedules the wrapper casts / downstream
    # consumers around the custom call instead of treating it as free.
    flops = 2 * B * (
        Lq * Cf * D + Lkv * C4 * D + Lq * D * D + 2 * Lkv * D * D
        + 2 * Lq * Lkv * D + 2 * Lq * D * (4 * D) + D * D + D)
    transcendentals = B * (Lq * Lkv + Lq * 4 * D + Lq * D)
    bytes_accessed = int(fea_tok.size) * 2 + int(vit_tok.size) * 2 + B * 128 * 4 \
        + sum(int(w.size) * w.dtype.itemsize for w in weights)

    out = pl.pallas_call(
        kernel,
        out_shape=jax.ShapeDtypeStruct((B, 1, 128), jnp.float32),
        grid_spec=pltpu.PrefetchScalarGridSpec(
            num_scalar_prefetch=0,
            grid=grid,
            in_specs=in_specs,
            out_specs=out_spec,
        ),
        compiler_params=pltpu.CompilerParams(
            # Batch steps are independent -> shard across both TensorCores on
            # v7x; harmless on v5e/v6e (single TC).
            dimension_semantics=("parallel",),
            # Sized as production bf16 weights (~21 MiB) + 2x per-tile
            # activation working set at group<=4; within v7x's 64 MiB/TC and
            # comfortable on v5e/v6e's 128 MiB.
            vmem_limit_bytes=44 * 1024 * 1024,
        ),
        cost_estimate=pl.CostEstimate(
            flops=int(flops),
            transcendentals=int(transcendentals),
            bytes_accessed=int(bytes_accessed)),
    )(fea_tok, vit_tok, *weights)

    # score is broadcast across one lane row; keep one copy -> (B, 1)
    return out[:, 0, :1]


if __name__ == "__main__":
    # Small stand-ins for the real sizes (dim=enc_dim=768, Cf=1792, Lq=Lkv=49):
    B = 8
    Cf, Hf, Wf = 256, 7, 7       # fea: (B, Cf, 7, 7) -> Lq = 49 (padded to 56)
    D = 128                      # dim == enc_dim
    n_layers = 4                 # len(self.layers)
    Lkv = 49                     # K/V token count (padded to 56)

    key = jax.random.PRNGKey(0)
    keys = jax.random.split(key, 14)

    fea = jax.random.normal(keys[0], (B, Cf, Hf, Wf), jnp.float32)
    vit_feats = jax.random.normal(keys[1], (B, Lkv, n_layers * D), jnp.float32)

    def init(k, shape, s=0.02):
        return jax.random.normal(k, shape, jnp.float32) * s

    params = dict(
        wp=init(keys[2], (Cf, D)),            bp=init(keys[3], (1, D), 0.01),
        wfp=init(keys[4], (n_layers * D, D)),
        wq=init(keys[5], (D, D)),             wk=init(keys[6], (D, D)),
        wv=init(keys[7], (D, D)),
        wff1=init(keys[8], (D, 4 * D)),       wff2=init(keys[9], (4 * D, D)),
        wfc1=init(keys[10], (D, D)),          bfc1=init(keys[11], (1, D), 0.01),
        wfc2=init(keys[12], (D, 1)),          bfc2=init(keys[13], (1, 1), 0.01),
    )

    out = niqa_head(fea, vit_feats, params)
    jax.block_until_ready(out)
    assert out.shape == (B, 1), out.shape
    assert bool(jnp.all(jnp.isfinite(out)))
    print("KERNEL_OK")
</pallas_src>

<mosaic_0001>
module attributes {stable_mosaic.version = 11 : i64} {
  func.func @niqa_head_kernel(%arg0: i32, %arg1: memref<4x56x256xbf16, #tpu.memory_space<vmem>>, %arg2: memref<4x56x512xbf16, #tpu.memory_space<vmem>>, %arg3: memref<256x128xbf16, #tpu.memory_space<vmem>>, %arg4: memref<1x128xf32, #tpu.memory_space<vmem>>, %arg5: memref<512x128xbf16, #tpu.memory_space<vmem>>, %arg6: memref<128x128xbf16, #tpu.memory_space<vmem>>, %arg7: memref<128x128xbf16, #tpu.memory_space<vmem>>, %arg8: memref<128x128xbf16, #tpu.memory_space<vmem>>, %arg9: memref<128x512xbf16, #tpu.memory_space<vmem>>, %arg10: memref<512x128xbf16, #tpu.memory_space<vmem>>, %arg11: memref<128x128xbf16, #tpu.memory_space<vmem>>, %arg12: memref<1x128xf32, #tpu.memory_space<vmem>>, %arg13: memref<128x1xbf16, #tpu.memory_space<vmem>>, %arg14: memref<1x1xf32, #tpu.memory_space<vmem>>, %arg15: memref<4x1x128xf32, #tpu.memory_space<vmem>>) attributes {dimension_semantics = [#tpu.dimension_semantics<parallel>], iteration_bounds = array<i64: 2>, scalar_prefetch = 0 : i64, scratch_operands = 0 : i64, tpu.core_type = #tpu.core_type<tc>, window_params = [{transform_indices = @transform_0, window_bounds = array<i64: 4, 56, 256>}, {transform_indices = @transform_1, window_bounds = array<i64: 4, 56, 512>}, {pipeline_mode = #tpu.pipeline_mode<synchronous>, transform_indices = @transform_2, window_bounds = array<i64: 256, 128>}, {pipeline_mode = #tpu.pipeline_mode<synchronous>, transform_indices = @transform_3, window_bounds = array<i64: 1, 128>}, {pipeline_mode = #tpu.pipeline_mode<synchronous>, transform_indices = @transform_4, window_bounds = array<i64: 512, 128>}, {pipeline_mode = #tpu.pipeline_mode<synchronous>, transform_indices = @transform_5, window_bounds = array<i64: 128, 128>}, {pipeline_mode = #tpu.pipeline_mode<synchronous>, transform_indices = @transform_6, window_bounds = array<i64: 128, 128>}, {pipeline_mode = #tpu.pipeline_mode<synchronous>, transform_indices = @transform_7, window_bounds = array<i64: 128, 128>}, {pipeline_mode = #tpu.pipeline_mode<synchronous>, transform_indices = @transform_8, window_bounds = array<i64: 128, 512>}, {pipeline_mode = #tpu.pipeline_mode<synchronous>, transform_indices = @transform_9, window_bounds = array<i64: 512, 128>}, {pipeline_mode = #tpu.pipeline_mode<synchronous>, transform_indices = @transform_10, window_bounds = array<i64: 128, 128>}, {pipeline_mode = #tpu.pipeline_mode<synchronous>, transform_indices = @transform_11, window_bounds = array<i64: 1, 128>}, {pipeline_mode = #tpu.pipeline_mode<synchronous>, transform_indices = @transform_12, window_bounds = array<i64: 128, 1>}, {pipeline_mode = #tpu.pipeline_mode<synchronous>, transform_indices = @transform_13, window_bounds = array<i64: 1, 1>}, {transform_indices = @transform_14, window_bounds = array<i64: 4, 1, 128>}]} {
    %c0 = arith.constant 0 : index
    %c0_0 = arith.constant 0 : index
    %c0_1 = arith.constant 0 : index
    %0 = vector.load %arg1[%c0, %c0_0, %c0_1] : memref<4x56x256xbf16, #tpu.memory_space<vmem>>, vector<4x56x256xbf16>
    %1 = vector.shape_cast %0 : vector<4x56x256xbf16> to vector<224x256xbf16>
    %c0_2 = arith.constant 0 : index
    %c0_3 = arith.constant 0 : index
    %c0_4 = arith.constant 0 : index
    %2 = vector.load %arg2[%c0_2, %c0_3, %c0_4] : memref<4x56x512xbf16, #tpu.memory_space<vmem>>, vector<4x56x512xbf16>
    %3 = vector.shape_cast %2 : vector<4x56x512xbf16> to vector<224x512xbf16>
    %c0_5 = arith.constant 0 : index
    %c0_6 = arith.constant 0 : index
    %4 = vector.load %arg3[%c0_5, %c0_6] : memref<256x128xbf16, #tpu.memory_space<vmem>>, vector<256x128xbf16>
    %cst = arith.constant dense<0.000000e+00> : vector<224x128xf32>
    %5 = tpu.matmul %1, %4, %cst {dimension_numbers = #tpu.dot_dimension_numbers<[1], [0], [0], [1], [0, 0, 1, 1], [], []>} : vector<224x256xbf16>, vector<256x128xbf16>, vector<224x128xf32> -> vector<224x128xf32>
    %c0_7 = arith.constant 0 : index
    %c0_8 = arith.constant 0 : index
    %6 = vector.load %arg4[%c0_7, %c0_8] : memref<1x128xf32, #tpu.memory_space<vmem>>, vector<1x128xf32>
    %7 = vector.broadcast %6 : vector<1x128xf32> to vector<224x128xf32>
    %8 = arith.addf %5, %7 : vector<224x128xf32>
    %c0_9 = arith.constant 0 : index
    %c0_10 = arith.constant 0 : index
    %9 = vector.load %arg5[%c0_9, %c0_10] : memref<512x128xbf16, #tpu.memory_space<vmem>>, vector<512x128xbf16>
    %cst_11 = arith.constant dense<0.000000e+00> : vector<224x128xf32>
    %10 = tpu.matmul %3, %9, %cst_11 {dimension_numbers = #tpu.dot_dimension_numbers<[1], [0], [0], [1], [0, 0, 1, 1], [], []>} : vector<224x512xbf16>, vector<512x128xbf16>, vector<224x128xf32> -> vector<224x128xf32>
    %11 = arith.truncf %10 : vector<224x128xf32> to vector<224x128xbf16>
    %12 = arith.truncf %8 : vector<224x128xf32> to vector<224x128xbf16>
    %c0_12 = arith.constant 0 : index
    %c0_13 = arith.constant 0 : index
    %13 = vector.load %arg6[%c0_12, %c0_13] : memref<128x128xbf16, #tpu.memory_space<vmem>>, vector<128x128xbf16>
    %cst_14 = arith.constant dense<0.000000e+00> : vector<224x128xf32>
    %14 = tpu.matmul %12, %13, %cst_14 {dimension_numbers = #tpu.dot_dimension_numbers<[1], [0], [0], [1], [0, 0, 1, 1], [], []>} : vector<224x128xbf16>, vector<128x128xbf16>, vector<224x128xf32> -> vector<224x128xf32>
    %c0_15 = arith.constant 0 : index
    %c0_16 = arith.constant 0 : index
    %15 = vector.load %arg7[%c0_15, %c0_16] : memref<128x128xbf16, #tpu.memory_space<vmem>>, vector<128x128xbf16>
    %cst_17 = arith.constant dense<0.000000e+00> : vector<224x128xf32>
    %16 = tpu.matmul %11, %15, %cst_17 {dimension_numbers = #tpu.dot_dimension_numbers<[1], [0], [0], [1], [0, 0, 1, 1], [], []>} : vector<224x128xbf16>, vector<128x128xbf16>, vector<224x128xf32> -> vector<224x128xf32>
    %c0_18 = arith.constant 0 : index
    %c0_19 = arith.constant 0 : index
    %17 = vector.load %arg8[%c0_18, %c0_19] : memref<128x128xbf16, #tpu.memory_space<vmem>>, vector<128x128xbf16>
    %cst_20 = arith.constant dense<0.000000e+00> : vector<224x128xf32>
    %18 = tpu.matmul %11, %17, %cst_20 {dimension_numbers = #tpu.dot_dimension_numbers<[1], [0], [0], [1], [0, 0, 1, 1], [], []>} : vector<224x128xbf16>, vector<128x128xbf16>, vector<224x128xf32> -> vector<224x128xf32>
    %19 = vector.shape_cast %14 : vector<224x128xf32> to vector<4x56x128xf32>
    %20 = arith.truncf %19 : vector<4x56x128xf32> to vector<4x56x128xbf16>
    %21 = vector.shape_cast %16 : vector<224x128xf32> to vector<4x56x128xf32>
    %22 = arith.truncf %21 : vector<4x56x128xf32> to vector<4x56x128xbf16>
    %23 = vector.shape_cast %18 : vector<224x128xf32> to vector<4x56x128xf32>
    %24 = arith.truncf %23 : vector<4x56x128xf32> to vector<4x56x128xbf16>
    "tpu.trace_start"() <{level = 10 : i32, message = "gqd,gkd->gqk"}> : () -> ()
    %cst_21 = arith.constant dense<0.000000e+00> : vector<4x56x56xf32>
    %25 = tpu.matmul %20, %22, %cst_21 {dimension_numbers = #tpu.dot_dimension_numbers<[2], [2], [1], [1], [0, 0, 0, 1, 1, 1], [0], [0]>} : vector<4x56x128xbf16>, vector<4x56x128xbf16>, vector<4x56x56xf32> -> vector<4x56x56xf32>
    "tpu.trace_stop"() : () -> ()
    %cst_22 = arith.constant 0.0883883461 : f32
    %26 = vector.broadcast %cst_22 : f32 to vector<4x56x56xf32>
    %27 = arith.mulf %25, %26 : vector<4x56x56xf32>
    %28 = tpu.iota {dimensions = array<i32: 2>} : vector<1x1x56xi32>
    %c49_i32 = arith.constant 49 : i32
    %29 = vector.broadcast %c49_i32 : i32 to vector<1x1x56xi32>
    %30 = arith.cmpi slt, %28, %29 : vector<1x1x56xi32>
    %cst_23 = arith.constant -1.000000e+30 : f32
    %31 = vector.shape_cast %30 : vector<1x1x56xi1> to vector<1x1x56xi1>
    %32 = vector.broadcast %31 : vector<1x1x56xi1> to vector<4x56x56xi1>
    %33 = vector.broadcast %cst_23 : f32 to vector<4x56x56xf32>
    %34 = arith.select %32, %27, %33 : vector<4x56x56xi1>, vector<4x56x56xf32>
    %cst_24 = arith.constant dense<0xFF800000> : vector<4x56xf32>
    %35 = vector.multi_reduction <maximumf>, %34, %cst_24 [2] : vector<4x56x56xf32> to vector<4x56xf32>
    %36 = vector.shape_cast %35 : vector<4x56xf32> to vector<4x56x1xf32>
    %37 = vector.broadcast %36 : vector<4x56x1xf32> to vector<4x56x56xf32>
    %38 = arith.subf %34, %37 : vector<4x56x56xf32>
    %39 = math.exp %38 : vector<4x56x56xf32>
    %cst_25 = arith.constant dense<0.000000e+00> : vector<4x56xf32>
    %40 = vector.multi_reduction <add>, %39, %cst_25 [2] : vector<4x56x56xf32> to vector<4x56xf32>
    %41 = vector.shape_cast %40 : vector<4x56xf32> to vector<4x56x1xf32>
    %42 = vector.broadcast %41 : vector<4x56x1xf32> to vector<4x56x56xf32>
    %43 = arith.divf %39, %42 : vector<4x56x56xf32>
    %44 = arith.truncf %43 : vector<4x56x56xf32> to vector<4x56x56xbf16>
    "tpu.trace_start"() <{level = 10 : i32, message = "gqk,gkd->gqd"}> : () -> ()
    %cst_26 = arith.constant dense<0.000000e+00> : vector<4x56x128xf32>
    %45 = tpu.matmul %44, %24, %cst_26 {dimension_numbers = #tpu.dot_dimension_numbers<[2], [1], [1], [2], [0, 0, 0, 1, 1, 2], [0], [0]>} : vector<4x56x56xbf16>, vector<4x56x128xbf16>, vector<4x56x128xf32> -> vector<4x56x128xf32>
    "tpu.trace_stop"() : () -> ()
    %46 = vector.shape_cast %45 : vector<4x56x128xf32> to vector<224x128xf32>
    %47 = arith.truncf %46 : vector<224x128xf32> to vector<224x128xbf16>
    %c0_27 = arith.constant 0 : index
    %c0_28 = arith.constant 0 : index
    %48 = vector.load %arg9[%c0_27, %c0_28] : memref<128x512xbf16, #tpu.memory_space<vmem>>, vector<128x512xbf16>
    %cst_29 = arith.constant dense<0.000000e+00> : vector<224x512xf32>
    %49 = tpu.matmul %47, %48, %cst_29 {dimension_numbers = #tpu.dot_dimension_numbers<[1], [0], [0], [1], [0, 0, 1, 1], [], []>} : vector<224x128xbf16>, vector<128x512xbf16>, vector<224x512xf32> -> vector<224x512xf32>
    %50 = arith.mulf %49, %49 : vector<224x512xf32>
    %51 = arith.mulf %49, %50 : vector<224x512xf32>
    %cst_30 = arith.constant 4.471500e-02 : f32
    %52 = vector.broadcast %cst_30 : f32 to vector<224x512xf32>
    %53 = arith.mulf %52, %51 : vector<224x512xf32>
    %54 = arith.addf %49, %53 : vector<224x512xf32>
    %cst_31 = arith.constant 0.797884583 : f32
    %55 = vector.broadcast %cst_31 : f32 to vector<224x512xf32>
    %56 = arith.mulf %55, %54 : vector<224x512xf32>
    %57 = math.tanh %56 : vector<224x512xf32>
    %cst_32 = arith.constant 1.000000e+00 : f32
    %58 = vector.broadcast %cst_32 : f32 to vector<224x512xf32>
    %59 = arith.addf %58, %57 : vector<224x512xf32>
    %cst_33 = arith.constant 5.000000e-01 : f32
    %60 = vector.broadcast %cst_33 : f32 to vector<224x512xf32>
    %61 = arith.mulf %60, %59 : vector<224x512xf32>
    %62 = arith.mulf %49, %61 : vector<224x512xf32>
    %63 = arith.truncf %62 : vector<224x512xf32> to vector<224x512xbf16>
    %c0_34 = arith.constant 0 : index
    %c0_35 = arith.constant 0 : index
    %64 = vector.load %arg10[%c0_34, %c0_35] : memref<512x128xbf16, #tpu.memory_space<vmem>>, vector<512x128xbf16>
    %cst_36 = arith.constant dense<0.000000e+00> : vector<224x128xf32>
    %65 = tpu.matmul %63, %64, %cst_36 {dimension_numbers = #tpu.dot_dimension_numbers<[1], [0], [0], [1], [0, 0, 1, 1], [], []>} : vector<224x512xbf16>, vector<512x128xbf16>, vector<224x128xf32> -> vector<224x128xf32>
    %66 = arith.mulf %65, %65 : vector<224x128xf32>
    %67 = arith.mulf %65, %66 : vector<224x128xf32>
    %cst_37 = arith.constant 4.471500e-02 : f32
    %68 = vector.broadcast %cst_37 : f32 to vector<224x128xf32>
    %69 = arith.mulf %68, %67 : vector<224x128xf32>
    %70 = arith.addf %65, %69 : vector<224x128xf32>
    %cst_38 = arith.constant 0.797884583 : f32
    %71 = vector.broadcast %cst_38 : f32 to vector<224x128xf32>
    %72 = arith.mulf %71, %70 : vector<224x128xf32>
    %73 = math.tanh %72 : vector<224x128xf32>
    %cst_39 = arith.constant 1.000000e+00 : f32
    %74 = vector.broadcast %cst_39 : f32 to vector<224x128xf32>
    %75 = arith.addf %74, %73 : vector<224x128xf32>
    %cst_40 = arith.constant 5.000000e-01 : f32
    %76 = vector.broadcast %cst_40 : f32 to vector<224x128xf32>
    %77 = arith.mulf %76, %75 : vector<224x128xf32>
    %78 = arith.mulf %65, %77 : vector<224x128xf32>
    %79 = arith.addf %46, %78 : vector<224x128xf32>
    %80 = vector.shape_cast %79 : vector<224x128xf32> to vector<4x56x128xf32>
    %81 = tpu.iota {dimensions = array<i32: 1>} : vector<1x56x1xi32>
    %c49_i32_41 = arith.constant 49 : i32
    %82 = vector.broadcast %c49_i32_41 : i32 to vector<1x56x1xi32>
    %83 = arith.cmpi slt, %81, %82 : vector<1x56x1xi32>
    %cst_42 = arith.constant 0.000000e+00 : f32
    %84 = vector.shape_cast %83 : vector<1x56x1xi1> to vector<1x56x1xi1>
    %85 = vector.broadcast %84 : vector<1x56x1xi1> to vector<4x56x128xi1>
    %86 = vector.broadcast %cst_42 : f32 to vector<4x56x128xf32>
    %87 = arith.select %85, %80, %86 : vector<4x56x128xi1>, vector<4x56x128xf32>
    %cst_43 = arith.constant dense<0.000000e+00> : vector<4x128xf32>
    %88 = vector.multi_reduction <add>, %87, %cst_43 [1] : vector<4x56x128xf32> to vector<4x128xf32>
    %cst_44 = arith.constant 0.0204081628 : f32
    %89 = vector.broadcast %cst_44 : f32 to vector<4x128xf32>
    %90 = arith.mulf %88, %89 : vector<4x128xf32>
    %91 = arith.truncf %90 : vector<4x128xf32> to vector<4x128xbf16>
    %c0_45 = arith.constant 0 : index
    %c0_46 = arith.constant 0 : index
    %92 = vector.load %arg11[%c0_45, %c0_46] : memref<128x128xbf16, #tpu.memory_space<vmem>>, vector<128x128xbf16>
    %cst_47 = arith.constant dense<0.000000e+00> : vector<4x128xf32>
    %93 = tpu.matmul %91, %92, %cst_47 {dimension_numbers = #tpu.dot_dimension_numbers<[1], [0], [0], [1], [0, 0, 1, 1], [], []>} : vector<4x128xbf16>, vector<128x128xbf16>, vector<4x128xf32> -> vector<4x128xf32>
    %c0_48 = arith.constant 0 : index
    %c0_49 = arith.constant 0 : index
    %94 = vector.load %arg12[%c0_48, %c0_49] : memref<1x128xf32, #tpu.memory_space<vmem>>, vector<1x128xf32>
    %95 = vector.broadcast %94 : vector<1x128xf32> to vector<4x128xf32>
    %96 = arith.addf %93, %95 : vector<4x128xf32>
    %cst_50 = arith.constant 0.000000e+00 : f32
    %97 = vector.broadcast %cst_50 : f32 to vector<4x128xf32>
    %98 = arith.maximumf %96, %97 : vector<4x128xf32>
    %99 = arith.truncf %98 : vector<4x128xf32> to vector<4x128xbf16>
    %c0_51 = arith.constant 0 : index
    %c0_52 = arith.constant 0 : index
    %100 = vector.load %arg13[%c0_51, %c0_52] : memref<128x1xbf16, #tpu.memory_space<vmem>>, vector<128x1xbf16>
    %cst_53 = arith.constant dense<0.000000e+00> : vector<4x1xf32>
    %101 = tpu.matmul %99, %100, %cst_53 {dimension_numbers = #tpu.dot_dimension_numbers<[1], [0], [0], [1], [0, 0, 1, 1], [], []>} : vector<4x128xbf16>, vector<128x1xbf16>, vector<4x1xf32> -> vector<4x1xf32>
    %c0_54 = arith.constant 0 : index
    %c0_55 = arith.constant 0 : index
    %102 = vector.load %arg14[%c0_54, %c0_55] : memref<1x1xf32, #tpu.memory_space<vmem>>, vector<1x1xf32>
    %103 = vector.broadcast %102 : vector<1x1xf32> to vector<4x1xf32>
    %104 = arith.addf %101, %103 : vector<4x1xf32>
    %105 = vector.shape_cast %104 : vector<4x1xf32> to vector<4x1x1xf32>
    %106 = vector.shape_cast %105 : vector<4x1x1xf32> to vector<4x1x1xf32>
    %107 = vector.broadcast %106 : vector<4x1x1xf32> to vector<4x1x128xf32>
    %c0_56 = arith.constant 0 : index
    %c0_57 = arith.constant 0 : index
    %c0_58 = arith.constant 0 : index
    %108 = vector.load %arg15[%c0_56, %c0_57, %c0_58] : memref<4x1x128xf32, #tpu.memory_space<vmem>>, vector<4x1x128xf32>
    tpu.vector_store %arg15[%c0_56, %c0_57, %c0_58], %107 {strides = array<i32>} : memref<4x1x128xf32, #tpu.memory_space<vmem>>, vector<4x1x128xf32>,
    return
  }
  func.func @transform_0(%arg0: i32) -> (i32, i32, i32) {
    %c0_i32 = arith.constant 0 : i32
    %c0_i32_0 = arith.constant 0 : i32
    %c0_i32_1 = arith.constant 0 : i32
    return %arg0, %c0_i32, %c0_i32_0 : i32, i32, i32
  }
  func.func @transform_1(%arg0: i32) -> (i32, i32, i32) {
    %c0_i32 = arith.constant 0 : i32
    %c0_i32_0 = arith.constant 0 : i32
    %c0_i32_1 = arith.constant 0 : i32
    return %arg0, %c0_i32, %c0_i32_0 : i32, i32, i32
  }
  func.func @transform_2(%arg0: i32) -> (i32, i32) {
    %c0_i32 = arith.constant 0 : i32
    %c0_i32_0 = arith.constant 0 : i32
    %c0_i32_1 = arith.constant 0 : i32
    return %c0_i32, %c0_i32_0 : i32, i32
  }
  func.func @transform_3(%arg0: i32) -> (i32, i32) {
    %c0_i32 = arith.constant 0 : i32
    %c0_i32_0 = arith.constant 0 : i32
    %c0_i32_1 = arith.constant 0 : i32
    return %c0_i32, %c0_i32_0 : i32, i32
  }
  func.func @transform_4(%arg0: i32) -> (i32, i32) {
    %c0_i32 = arith.constant 0 : i32
    %c0_i32_0 = arith.constant 0 : i32
    %c0_i32_1 = arith.constant 0 : i32
    return %c0_i32, %c0_i32_0 : i32, i32
  }
  func.func @transform_5(%arg0: i32) -> (i32, i32) {
    %c0_i32 = arith.constant 0 : i32
    %c0_i32_0 = arith.constant 0 : i32
    %c0_i32_1 = arith.constant 0 : i32
    return %c0_i32, %c0_i32_0 : i32, i32
  }
  func.func @transform_6(%arg0: i32) -> (i32, i32) {
    %c0_i32 = arith.constant 0 : i32
    %c0_i32_0 = arith.constant 0 : i32
    %c0_i32_1 = arith.constant 0 : i32
    return %c0_i32, %c0_i32_0 : i32, i32
  }
  func.func @transform_7(%arg0: i32) -> (i32, i32) {
    %c0_i32 = arith.constant 0 : i32
    %c0_i32_0 = arith.constant 0 : i32
    %c0_i32_1 = arith.constant 0 : i32
    return %c0_i32, %c0_i32_0 : i32, i32
  }
  func.func @transform_8(%arg0: i32) -> (i32, i32) {
    %c0_i32 = arith.constant 0 : i32
    %c0_i32_0 = arith.constant 0 : i32
    %c0_i32_1 = arith.constant 0 : i32
    return %c0_i32, %c0_i32_0 : i32, i32
  }
  func.func @transform_9(%arg0: i32) -> (i32, i32) {
    %c0_i32 = arith.constant 0 : i32
    %c0_i32_0 = arith.constant 0 : i32
    %c0_i32_1 = arith.constant 0 : i32
    return %c0_i32, %c0_i32_0 : i32, i32
  }
  func.func @transform_10(%arg0: i32) -> (i32, i32) {
    %c0_i32 = arith.constant 0 : i32
    %c0_i32_0 = arith.constant 0 : i32
    %c0_i32_1 = arith.constant 0 : i32
    return %c0_i32, %c0_i32_0 : i32, i32
  }
  func.func @transform_11(%arg0: i32) -> (i32, i32) {
    %c0_i32 = arith.constant 0 : i32
    %c0_i32_0 = arith.constant 0 : i32
    %c0_i32_1 = arith.constant 0 : i32
    return %c0_i32, %c0_i32_0 : i32, i32
  }
  func.func @transform_12(%arg0: i32) -> (i32, i32) {
    %c0_i32 = arith.constant 0 : i32
    %c0_i32_0 = arith.constant 0 : i32
    %c0_i32_1 = arith.constant 0 : i32
    return %c0_i32, %c0_i32_0 : i32, i32
  }
  func.func @transform_13(%arg0: i32) -> (i32, i32) {
    %c0_i32 = arith.constant 0 : i32
    %c0_i32_0 = arith.constant 0 : i32
    %c0_i32_1 = arith.constant 0 : i32
    return %c0_i32, %c0_i32_0 : i32, i32
  }
  func.func @transform_14(%arg0: i32) -> (i32, i32, i32) {
    %c0_i32 = arith.constant 0 : i32
    %c0_i32_0 = arith.constant 0 : i32
    %c0_i32_1 = arith.constant 0 : i32
    return %arg0, %c0_i32, %c0_i32_0 : i32, i32, i32
  }
}

</mosaic_0001>

<llo_original>
// kernel: tpu_custom_call.1
$region0: #{tpu_custom_call.1}
  #allocation0 [shape = 'u32[]', space=smem, size = 0x4, offset = 0x4, fixed_abs, tag = 'smem constant byte address 0x4 - core index']
  #allocation1 [shape = 'u32[72,128]{1,0:T(1,128)}', space=vmem, size = 0x9000, scoped, tag = 'internal scratch']
  #allocation2 [shape = 'f32[1,1]{1,0:T(1,128)S(1)}', space=vmem, size = 0x200, scoped, tag = 'scoped memory for tpu_custom_call.1']
  %s0 = inlined_call_operand.hbm [shape: bf16[8,56,256], index: 0, kind: input, shape index: {}]
  %s1 = inlined_call_operand.hbm [shape: bf16[8,56,512], index: 1, kind: input, shape index: {}]
  %s2 = inlined_call_operand.hbm [shape: bf16[256,128], index: 2, kind: input, shape index: {}]
  %s3 = inlined_call_operand.vmem [shape: f32[1,128], index: 3, kind: input, shape index: {}]
  %s4 = inlined_call_operand.hbm [shape: bf16[512,128], index: 4, kind: input, shape index: {}]
  %s5 = inlined_call_operand.vmem [shape: bf16[128,128], index: 5, kind: input, shape index: {}]
  %s6 = inlined_call_operand.hbm [shape: bf16[128,128], index: 6, kind: input, shape index: {}]
  %s7 = inlined_call_operand.hbm [shape: bf16[128,128], index: 7, kind: input, shape index: {}]
  %s8 = inlined_call_operand.hbm [shape: bf16[128,512], index: 8, kind: input, shape index: {}]
  %s9 = inlined_call_operand.hbm [shape: bf16[512,128], index: 9, kind: input, shape index: {}]
  %s10 = inlined_call_operand.hbm [shape: bf16[128,128], index: 10, kind: input, shape index: {}]
  %s11 = inlined_call_operand.vmem [shape: f32[1,128], index: 11, kind: input, shape index: {}]
  %s12 = inlined_call_operand.vmem [shape: bf16[128,1], index: 12, kind: input, shape index: {}]
  %s13 = inlined_call_operand.<no memory space> [shape: f32[1,1], index: 13, kind: input, shape index: {}]
  %s14 = inlined_call_operand.hbm [shape: f32[8,1,128], index: 14, kind: output, shape index: {}]
  %s15 = sld [smem:[#allocation0]]
  $region125: #{tpu_custom_call.1} parent=0
    _
  %s17 = ssub.s32 1, %s15
  %s18 = scalar_select 0, %s17, %s15
  %v19 = vstv %s13
  %20 = vst [vmem:[#allocation2] sm:$0x1] %v19
  $region1: #{tpu_custom_call.1} parent=0
    #allocation3 [shape = 'u8[229376]{0}', space=vmem, size = 0x38000, scoped, tag = 'input window, operand 0']
    #allocation4 [shape = 's32[2]{0}', space=sflag, size = 0x8, scoped, tag = 'scoped memory for tpu_custom_call.1']
    #allocation5 [shape = 's32[2]{0}', space=sflag, size = 0x8, scoped, tag = 'scoped memory for tpu_custom_call.1']
    #allocation6 [shape = 'u8[458752]{0}', space=vmem, size = 0x70000, scoped, tag = 'input window, operand 1']
    #allocation7 [shape = 's32[2]{0}', space=sflag, size = 0x8, scoped, tag = 'scoped memory for tpu_custom_call.1']
    #allocation8 [shape = 'u8[65536]{0}', space=vmem, size = 0x10000, scoped, tag = 'input window, operand 2, single buffered']
    #allocation9 [shape = 'u8[131072]{0}', space=vmem, size = 0x20000, scoped, tag = 'input window, operand 4, single buffered']
    #allocation10 [shape = 's32[1]{0}', space=sflag, size = 0x4, scoped, tag = 'scoped memory for tpu_custom_call.1']
    #allocation11 [shape = 'u8[32768]{0}', space=vmem, size = 0x8000, scoped, tag = 'input window, operand 6, single buffered']
    #allocation12 [shape = 'u8[32768]{0}', space=vmem, size = 0x8000, scoped, tag = 'input window, operand 7, single buffered']
    #allocation13 [shape = 's32[1]{0}', space=sflag, size = 0x4, scoped, tag = 'scoped memory for tpu_custom_call.1']
    #allocation14 [shape = 'u8[131072]{0}', space=vmem, size = 0x20000, scoped, tag = 'input window, operand 8, single buffered']
    #allocation15 [shape = 'u8[131072]{0}', space=vmem, size = 0x20000, scoped, tag = 'input window, operand 9, single buffered']
    #allocation16 [shape = 's32[1]{0}', space=sflag, size = 0x4, scoped, tag = 'scoped memory for tpu_custom_call.1']
    #allocation17 [shape = 'u8[32768]{0}', space=vmem, size = 0x8000, scoped, tag = 'input window, operand 10, single buffered']
    #allocation18 [shape = 'u8[4096]{0}', space=vmem, size = 0x1000, scoped, tag = 'output window, operand 0']
    %21 = vsyncpa [#allocation4], 0
    %s22 = scalar_lea.sflag [#allocation4], 1
    %23 = vsyncpa %s22, 0
    %24 = vsyncpa [#allocation7], 0
    %s25 = scalar_lea.sflag [#allocation7], 1
    %26 = vsyncpa %s25, 0
    %27 = vsyncpa [#allocation10], 0
    %28 = vsyncpa [#allocation13], 0
    %29 = vsyncpa [#allocation16], 0
    %30 = vsyncpa [#allocation5], 0
    %s31 = scalar_lea.sflag [#allocation5], 1
    %32 = vsyncpa %s31, 0
    loop: start=0, step=1, limit=4
    $region2: #{tpu_custom_call.1} parent=1 // loop_pre_header
      _
    $region3: #{tpu_custom_call.1} parent=1 // loop_header
      %s34 = sphi 0, %s38
      %p35 = scmp.ge.s32.totalorder %s34, 4
      %s44 = sphi 0, %s46
      %s47 = sphi 0, %s44
      %s48 = sphi 0, %s47
      %s64 = sphi 0, %s48
      %s70 = sphi 0, %s72
      %s73 = sphi 0, %s70
      %s74 = sphi 0, %s73
      %s90 = sphi 0, %s74
      %s94 = sphi 0, %s94
      %s96 = sphi 0, %s94
      %s97 = sphi 0, %s96
      %s111 = sphi 0, %s97
      %s115 = sphi 0, %s115
      %s117 = sphi 0, %s115
      %s118 = sphi 0, %s117
      %s132 = sphi 0, %s118
      %s136 = sphi 0, %s136
      %s138 = sphi 0, %s136
      %s139 = sphi 0, %s138
      %s153 = sphi 0, %s139
      %s157 = sphi 0, %s157
      %s159 = sphi 0, %s157
      %s160 = sphi 0, %s159
      %s174 = sphi 0, %s160
      %s178 = sphi 0, %s178
      %s180 = sphi 0, %s178
      %s181 = sphi 0, %s180
      %s195 = sphi 0, %s181
      %s199 = sphi 0, %s199
      %s201 = sphi 0, %s199
      %s202 = sphi 0, %s201
      %s216 = sphi 0, %s202
      %s220 = sphi 0, %s220
      %s222 = sphi 0, %s220
      %s223 = sphi 0, %s222
      %s237 = sphi 0, %s223
      %s241 = sphi 0, %s241
      %s243 = sphi 0, %s241
      %s244 = sphi 0, %s243
      %s258 = sphi 0, %s244
      %s262 = sphi 0, %s262
      %s264 = sphi 0, %s262
      %s265 = sphi 0, %s264
      %s279 = sphi 0, %s265
      %s283 = sphi 0, %s283
      %s285 = sphi 0, %s283
      %s286 = sphi 0, %s285
      %s300 = sphi 0, %s286
      %s304 = sphi 0, %s304
      %s306 = sphi 0, %s304
      %s307 = sphi 0, %s306
      %s321 = sphi 0, %s307
      %s325 = sphi 0, %s325
      %s327 = sphi 0, %s325
      %s328 = sphi 0, %s327
      %s342 = sphi 0, %s328
      %s348 = sphi 0, %s350
      %s351 = sphi 0, %s348
      %s352 = sphi 0, %s351
      %s368 = sphi 0, %s352
    $region4: #{tpu_custom_call.1} parent=1 // loop_header_branch
      %37 = sbr.rel (%p35) target = $region8
    $region5: #{tpu_custom_call.1} parent=1 // loop_body
      %s39 = ssub.s32 %s34, 1
      %s40 = ssub.s32 %s34, 2
      %s41 = sadd.s32 %s34, 1
      %s42 = ssub.s32 %s34, %s41
      %p43 = scmp.eq.s32.totalorder %s42, 0
      %s45 = sadd.s32 %s44, 1
      %s46 = scalar_select %p43, %s44, %s45
      %p49 = pneg %p43
      %p50 = scmp.eq.s32.totalorder %s34, 1
      %p51 = por %p49, %p50
      %p52 = scmp.ne.s32.totalorder %s44, %s47
      %p53 = scmp.eq.s32.totalorder %s34, 0
      %p54 = por %p52, %p53
      %p55 = scmp.ne.s32.totalorder %s44, %s47
      %p56 = scmp.eq.s32.totalorder %s39, 1
      %p57 = por %p55, %p56
      %p58 = scmp.ne.s32.totalorder %s47, %s48
      %p59 = scmp.eq.s32.totalorder %s39, 0
      %p60 = por %p58, %p59
      %p61 = scmp.ne.s32.totalorder %s47, %s48
      %p62 = scmp.eq.s32.totalorder %s40, 1
      %p63 = por %p61, %p62
      %p65 = scmp.ne.s32.totalorder %s48, %s64
      %p66 = scmp.eq.s32.totalorder %s40, 0
      %p67 = por %p65, %p66
      %s68 = ssub.s32 %s34, %s41
      %p69 = scmp.eq.s32.totalorder %s68, 0
      %s71 = sadd.s32 %s70, 1
      %s72 = scalar_select %p69, %s70, %s71
      %p75 = pneg %p69
      %p76 = scmp.eq.s32.totalorder %s34, 1
      %p77 = por %p75, %p76
      %p78 = scmp.ne.s32.totalorder %s70, %s73
      %p79 = scmp.eq.s32.totalorder %s34, 0
      %p80 = por %p78, %p79
      %p81 = scmp.ne.s32.totalorder %s70, %s73
      %p82 = scmp.eq.s32.totalorder %s39, 1
      %p83 = por %p81, %p82
      %p84 = scmp.ne.s32.totalorder %s73, %s74
      %p85 = scmp.eq.s32.totalorder %s39, 0
      %p86 = por %p84, %p85
      %p87 = scmp.ne.s32.totalorder %s73, %s74
      %p88 = scmp.eq.s32.totalorder %s40, 1
      %p89 = por %p87, %p88
      %p91 = scmp.ne.s32.totalorder %s74, %s90
      %p92 = scmp.eq.s32.totalorder %s40, 0
      %p93 = por %p91, %p92
      %s95 = sadd.s32 %s94, 1
      %p98 = scmp.eq.s32.totalorder %s34, 1
      %p99 = scmp.ne.s32.totalorder %s94, %s96
      %p100 = scmp.eq.s32.totalorder %s34, 0
      %p101 = por %p99, %p100
      %p102 = scmp.ne.s32.totalorder %s94, %s96
      %p103 = scmp.eq.s32.totalorder %s39, 1
      %p104 = por %p102, %p103
      %p105 = scmp.ne.s32.totalorder %s96, %s97
      %p106 = scmp.eq.s32.totalorder %s39, 0
      %p107 = por %p105, %p106
      %p108 = scmp.ne.s32.totalorder %s96, %s97
      %p109 = scmp.eq.s32.totalorder %s40, 1
      %p110 = por %p108, %p109
      %p112 = scmp.ne.s32.totalorder %s97, %s111
      %p113 = scmp.eq.s32.totalorder %s40, 0
      %p114 = por %p112, %p113
      %s116 = sadd.s32 %s115, 1
      %p119 = scmp.eq.s32.totalorder %s34, 1
      %p120 = scmp.ne.s32.totalorder %s115, %s117
      %p121 = scmp.eq.s32.totalorder %s34, 0
      %p122 = por %p120, %p121
      %p123 = scmp.ne.s32.totalorder %s115, %s117
      %p124 = scmp.eq.s32.totalorder %s39, 1
      %p125 = por %p123, %p124
      %p126 = scmp.ne.s32.totalorder %s117, %s118
      %p127 = scmp.eq.s32.totalorder %s39, 0
      %p128 = por %p126, %p127
      %p129 = scmp.ne.s32.totalorder %s117, %s118
      %p130 = scmp.eq.s32.totalorder %s40, 1
      %p131 = por %p129, %p130
      %p133 = scmp.ne.s32.totalorder %s118, %s132
      %p134 = scmp.eq.s32.totalorder %s40, 0
      %p135 = por %p133, %p134
      %s137 = sadd.s32 %s136, 1
      %p140 = scmp.eq.s32.totalorder %s34, 1
      %p141 = scmp.ne.s32.totalorder %s136, %s138
      %p142 = scmp.eq.s32.totalorder %s34, 0
      %p143 = por %p141, %p142
      %p144 = scmp.ne.s32.totalorder %s136, %s138
      %p145 = scmp.eq.s32.totalorder %s39, 1
      %p146 = por %p144, %p145
      %p147 = scmp.ne.s32.totalorder %s138, %s139
      %p148 = scmp.eq.s32.totalorder %s39, 0
      %p149 = por %p147, %p148
      %p150 = scmp.ne.s32.totalorder %s138, %s139
      %p151 = scmp.eq.s32.totalorder %s40, 1
      %p152 = por %p150, %p151
      %p154 = scmp.ne.s32.totalorder %s139, %s153
      %p155 = scmp.eq.s32.totalorder %s40, 0
      %p156 = por %p154, %p155
      %s158 = sadd.s32 %s157, 1
      %p161 = scmp.eq.s32.totalorder %s34, 1
      %p162 = scmp.ne.s32.totalorder %s157, %s159
      %p163 = scmp.eq.s32.totalorder %s34, 0
      %p164 = por %p162, %p163
      %p165 = scmp.ne.s32.totalorder %s157, %s159
      %p166 = scmp.eq.s32.totalorder %s39, 1
      %p167 = por %p165, %p166
      %p168 = scmp.ne.s32.totalorder %s159, %s160
      %p169 = scmp.eq.s32.totalorder %s39, 0
      %p170 = por %p168, %p169
      %p171 = scmp.ne.s32.totalorder %s159, %s160
      %p172 = scmp.eq.s32.totalorder %s40, 1
      %p173 = por %p171, %p172
      %p175 = scmp.ne.s32.totalorder %s160, %s174
      %p176 = scmp.eq.s32.totalorder %s40, 0
      %p177 = por %p175, %p176
      %s179 = sadd.s32 %s178, 1
      %p182 = scmp.eq.s32.totalorder %s34, 1
      %p183 = scmp.ne.s32.totalorder %s178, %s180
      %p184 = scmp.eq.s32.totalorder %s34, 0
      %p185 = por %p183, %p184
      %p186 = scmp.ne.s32.totalorder %s178, %s180
      %p187 = scmp.eq.s32.totalorder %s39, 1
      %p188 = por %p186, %p187
      %p189 = scmp.ne.s32.totalorder %s180, %s181
      %p190 = scmp.eq.s32.totalorder %s39, 0
      %p191 = por %p189, %p190
      %p192 = scmp.ne.s32.totalorder %s180, %s181
      %p193 = scmp.eq.s32.totalorder %s40, 1
      %p194 = por %p192, %p193
      %p196 = scmp.ne.s32.totalorder %s181, %s195
      %p197 = scmp.eq.s32.totalorder %s40, 0
      %p198 = por %p196, %p197
      %s200 = sadd.s32 %s199, 1
      %p203 = scmp.eq.s32.totalorder %s34, 1
      %p204 = scmp.ne.s32.totalorder %s199, %s201
      %p205 = scmp.eq.s32.totalorder %s34, 0
      %p206 = por %p204, %p205
      %p207 = scmp.ne.s32.totalorder %s199, %s201
      %p208 = scmp.eq.s32.totalorder %s39, 1
      %p209 = por %p207, %p208
      %p210 = scmp.ne.s32.totalorder %s201, %s202
      %p211 = scmp.eq.s32.totalorder %s39, 0
      %p212 = por %p210, %p211
      %p213 = scmp.ne.s32.totalorder %s201, %s202
      %p214 = scmp.eq.s32.totalorder %s40, 1
      %p215 = por %p213, %p214
      %p217 = scmp.ne.s32.totalorder %s202, %s216
      %p218 = scmp.eq.s32.totalorder %s40, 0
      %p219 = por %p217, %p218
      %s221 = sadd.s32 %s220, 1
      %p224 = scmp.eq.s32.totalorder %s34, 1
      %p225 = scmp.ne.s32.totalorder %s220, %s222
      %p226 = scmp.eq.s32.totalorder %s34, 0
      %p227 = por %p225, %p226
      %p228 = scmp.ne.s32.totalorder %s220, %s222
      %p229 = scmp.eq.s32.totalorder %s39, 1
      %p230 = por %p228, %p229
      %p231 = scmp.ne.s32.totalorder %s222, %s223
      %p232 = scmp.eq.s32.totalorder %s39, 0
      %p233 = por %p231, %p232
      %p234 = scmp.ne.s32.totalorder %s222, %s223
      %p235 = scmp.eq.s32.totalorder %s40, 1
      %p236 = por %p234, %p235
      %p238 = scmp.ne.s32.totalorder %s223, %s237
      %p239 = scmp.eq.s32.totalorder %s40, 0
      %p240 = por %p238, %p239
      %s242 = sadd.s32 %s241, 1
      %p245 = scmp.eq.s32.totalorder %s34, 1
      %p246 = scmp.ne.s32.totalorder %s241, %s243
      %p247 = scmp.eq.s32.totalorder %s34, 0
      %p248 = por %p246, %p247
      %p249 = scmp.ne.s32.totalorder %s241, %s243
      %p250 = scmp.eq.s32.totalorder %s39, 1
      %p251 = por %p249, %p250
      %p252 = scmp.ne.s32.totalorder %s243, %s244
      %p253 = scmp.eq.s32.totalorder %s39, 0
      %p254 = por %p252, %p253
      %p255 = scmp.ne.s32.totalorder %s243, %s244
      %p256 = scmp.eq.s32.totalorder %s40, 1
      %p257 = por %p255, %p256
      %p259 = scmp.ne.s32.totalorder %s244, %s258
      %p260 = scmp.eq.s32.totalorder %s40, 0
      %p261 = por %p259, %p260
      %s263 = sadd.s32 %s262, 1
      %p266 = scmp.eq.s32.totalorder %s34, 1
      %p267 = scmp.ne.s32.totalorder %s262, %s264
      %p268 = scmp.eq.s32.totalorder %s34, 0
      %p269 = por %p267, %p268
      %p270 = scmp.ne.s32.totalorder %s262, %s264
      %p271 = scmp.eq.s32.totalorder %s39, 1
      %p272 = por %p270, %p271
      %p273 = scmp.ne.s32.totalorder %s264, %s265
      %p274 = scmp.eq.s32.totalorder %s39, 0
      %p275 = por %p273, %p274
      %p276 = scmp.ne.s32.totalorder %s264, %s265
      %p277 = scmp.eq.s32.totalorder %s40, 1
      %p278 = por %p276, %p277
      %p280 = scmp.ne.s32.totalorder %s265, %s279
      %p281 = scmp.eq.s32.totalorder %s40, 0
      %p282 = por %p280, %p281
      %s284 = sadd.s32 %s283, 1
      %p287 = scmp.eq.s32.totalorder %s34, 1
      %p288 = scmp.ne.s32.totalorder %s283, %s285
      %p289 = scmp.eq.s32.totalorder %s34, 0
      %p290 = por %p288, %p289
      %p291 = scmp.ne.s32.totalorder %s283, %s285
      %p292 = scmp.eq.s32.totalorder %s39, 1
      %p293 = por %p291, %p292
      %p294 = scmp.ne.s32.totalorder %s285, %s286
      %p295 = scmp.eq.s32.totalorder %s39, 0
      %p296 = por %p294, %p295
      %p297 = scmp.ne.s32.totalorder %s285, %s286
      %p298 = scmp.eq.s32.totalorder %s40, 1
      %p299 = por %p297, %p298
      %p301 = scmp.ne.s32.totalorder %s286, %s300
      %p302 = scmp.eq.s32.totalorder %s40, 0
      %p303 = por %p301, %p302
      %s305 = sadd.s32 %s304, 1
      %p308 = scmp.eq.s32.totalorder %s34, 1
      %p309 = scmp.ne.s32.totalorder %s304, %s306
      %p310 = scmp.eq.s32.totalorder %s34, 0
      %p311 = por %p309, %p310
      %p312 = scmp.ne.s32.totalorder %s304, %s306
      %p313 = scmp.eq.s32.totalorder %s39, 1
      %p314 = por %p312, %p313
      %p315 = scmp.ne.s32.totalorder %s306, %s307
      %p316 = scmp.eq.s32.totalorder %s39, 0
      %p317 = por %p315, %p316
      %p318 = scmp.ne.s32.totalorder %s306, %s307
      %p319 = scmp.eq.s32.totalorder %s40, 1
      %p320 = por %p318, %p319
      %p322 = scmp.ne.s32.totalorder %s307, %s321
      %p323 = scmp.eq.s32.totalorder %s40, 0
      %p324 = por %p322, %p323
      %s326 = sadd.s32 %s325, 1
      %p329 = scmp.eq.s32.totalorder %s34, 1
      %p330 = scmp.ne.s32.totalorder %s325, %s327
      %p331 = scmp.eq.s32.totalorder %s34, 0
      %p332 = por %p330, %p331
      %p333 = scmp.ne.s32.totalorder %s325, %s327
      %p334 = scmp.eq.s32.totalorder %s39, 1
      %p335 = por %p333, %p334
      %p336 = scmp.ne.s32.totalorder %s327, %s328
      %p337 = scmp.eq.s32.totalorder %s39, 0
      %p338 = por %p336, %p337
      %p339 = scmp.ne.s32.totalorder %s327, %s328
      %p340 = scmp.eq.s32.totalorder %s40, 1
      %p341 = por %p339, %p340
      %p343 = scmp.ne.s32.totalorder %s328, %s342
      %p344 = scmp.eq.s32.totalorder %s40, 0
      %p345 = por %p343, %p344
      %s346 = ssub.s32 %s34, %s41
      %p347 = scmp.eq.s32.totalorder %s346, 0
      %s349 = sadd.s32 %s348, 1
      %s350 = scalar_select %p347, %s348, %s349
      %p353 = pneg %p347
      %p354 = scmp.eq.s32.totalorder %s34, 1
      %p355 = por %p353, %p354
      %p356 = scmp.ne.s32.totalorder %s348, %s351
      %p357 = scmp.eq.s32.totalorder %s34, 0
      %p358 = por %p356, %p357
      %p359 = scmp.ne.s32.totalorder %s348, %s351
      %p360 = scmp.eq.s32.totalorder %s39, 1
      %p361 = por %p359, %p360
      %p362 = scmp.ne.s32.totalorder %s351, %s352
      %p363 = scmp.eq.s32.totalorder %s39, 0
      %p364 = por %p362, %p363
      %p365 = scmp.ne.s32.totalorder %s351, %s352
      %p366 = scmp.eq.s32.totalorder %s40, 1
      %p367 = por %p365, %p366
      %p369 = scmp.ne.s32.totalorder %s352, %s368
      %p370 = scmp.eq.s32.totalorder %s40, 0
      %p371 = por %p369, %p370
      %p372 = scmp.le.s32.totalorder 1, %s34
      %p373 = scmp.lt.s32.totalorder %s34, 3
      %p374 = pnand %p372, %p373
      %p375 = pneg %p374
      // Predicated region
      $region9: #{tpu_custom_call.1} parent=5 // pred_check
        _
      $region10: #{tpu_custom_call.1} parent=5 // pred_check_branch
        %377 = sbr.rel (%p374) target = $region12
      $region11: #{tpu_custom_call.1} parent=5 // pred_region
        %s378 = ssub.s32 %s34, 1
        // Predicated region
        $region13: #{tpu_custom_call.1} parent=11 // pred_check
          %p379 = pneg %p107
        $region14: #{tpu_custom_call.1} parent=11 // pred_check_branch
          %381 = sbr.rel (%p379) target = $region16
        $region15: #{tpu_custom_call.1} parent=11 // pred_region
          %383 = vsyncadd [#allocation7], 0
          %s384 = sshll.u32 %s2, 4
          %s385 = int_to_ptr.hbm [resolvable:$true] %s384
          %s386 = sshll.u32 [#allocation8], 4
          %s387 = int_to_ptr.vmem [resolvable:$true] %s386
          %392 = dma.hbm_to_vmem [thread:$0]  %s385, 2048, %s387, [#allocation7], 64, 64, 4
        $region16: #{tpu_custom_call.1} parent=11 // pred_fallthru
          _
        // Predicated region
        $region17: #{tpu_custom_call.1} parent=11 // pred_check
          %p393 = pneg %p128
        $region18: #{tpu_custom_call.1} parent=11 // pred_check_branch
          %395 = sbr.rel (%p393) target = $region20
        $region19: #{tpu_custom_call.1} parent=11 // pred_region
          _
        $region20: #{tpu_custom_call.1} parent=11 // pred_fallthru
          _
        // Predicated region
        $region21: #{tpu_custom_call.1} parent=11 // pred_check
          %p396 = pneg %p149
        $region22: #{tpu_custom_call.1} parent=11 // pred_check_branch
          %398 = sbr.rel (%p396) target = $region24
        $region23: #{tpu_custom_call.1} parent=11 // pred_region
          %400 = vsyncadd [#allocation10], 0
          %s401 = sshll.u32 %s4, 4
          %s402 = int_to_ptr.hbm [resolvable:$true] %s401
          %s403 = sshll.u32 [#allocation9], 4
          %s404 = int_to_ptr.vmem [resolvable:$true] %s403
          %409 = dma.hbm_to_vmem [thread:$0]  %s402, 4096, %s404, [#allocation10], 64, 64, 4
        $region24: #{tpu_custom_call.1} parent=11 // pred_fallthru
          _
        // Predicated region
        $region25: #{tpu_custom_call.1} parent=11 // pred_check
          %p410 = pneg %p170
        $region26: #{tpu_custom_call.1} parent=11 // pred_check_branch
          %412 = sbr.rel (%p410) target = $region28
        $region27: #{tpu_custom_call.1} parent=11 // pred_region
          _
        $region28: #{tpu_custom_call.1} parent=11 // pred_fallthru
          _
        // Predicated region
        $region29: #{tpu_custom_call.1} parent=11 // pred_check
          %p413 = pneg %p191
        $region30: #{tpu_custom_call.1} parent=11 // pred_check_branch
          %415 = sbr.rel (%p413) target = $region32
        $region31: #{tpu_custom_call.1} parent=11 // pred_region
          %417 = vsyncadd [#allocation10], 0
          %s418 = sshll.u32 %s6, 4
          %s419 = int_to_ptr.hbm [resolvable:$true] %s418
          %s420 = sshll.u32 [#allocation11], 4
          %s421 = int_to_ptr.vmem [resolvable:$true] %s420
          %426 = dma.hbm_to_vmem [thread:$0]  %s419, 1024, %s421, [#allocation10], 64, 64, 4
        $region32: #{tpu_custom_call.1} parent=11 // pred_fallthru
          _
        // Predicated region
        $region33: #{tpu_custom_call.1} parent=11 // pred_check
          %p427 = pneg %p212
        $region34: #{tpu_custom_call.1} parent=11 // pred_check_branch
          %429 = sbr.rel (%p427) target = $region36
        $region35: #{tpu_custom_call.1} parent=11 // pred_region
          %431 = vsyncadd [#allocation13], 0
          %s432 = sshll.u32 %s7, 4
          %s433 = int_to_ptr.hbm [resolvable:$true] %s432
          %s434 = sshll.u32 [#allocation12], 4
          %s435 = int_to_ptr.vmem [resolvable:$true] %s434
          %440 = dma.hbm_to_vmem [thread:$0]  %s433, 1024, %s435, [#allocation13], 64, 64, 4
        $region36: #{tpu_custom_call.1} parent=11 // pred_fallthru
          _
        // Predicated region
        $region37: #{tpu_custom_call.1} parent=11 // pred_check
          %p441 = pneg %p233
        $region38: #{tpu_custom_call.1} parent=11 // pred_check_branch
          %443 = sbr.rel (%p441) target = $region40
        $region39: #{tpu_custom_call.1} parent=11 // pred_region
          %445 = vsyncadd [#allocation13], 0
          %s446 = sshll.u32 %s8, 4
          %s447 = int_to_ptr.hbm [resolvable:$true] %s446
          %s448 = sshll.u32 [#allocation14], 4
          %s449 = int_to_ptr.vmem [resolvable:$true] %s448
          %454 = dma.hbm_to_vmem [thread:$0]  %s447, 4096, %s449, [#allocation13], 256, 256, 16
        $region40: #{tpu_custom_call.1} parent=11 // pred_fallthru
          _
        // Predicated region
        $region41: #{tpu_custom_call.1} parent=11 // pred_check
          %p455 = pneg %p254
        $region42: #{tpu_custom_call.1} parent=11 // pred_check_branch
          %457 = sbr.rel (%p455) target = $region44
        $region43: #{tpu_custom_call.1} parent=11 // pred_region
          %459 = vsyncadd [#allocation16], 0
          %s460 = sshll.u32 %s9, 4
          %s461 = int_to_ptr.hbm [resolvable:$true] %s460
          %s462 = sshll.u32 [#allocation15], 4
          %s463 = int_to_ptr.vmem [resolvable:$true] %s462
          %468 = dma.hbm_to_vmem [thread:$0]  %s461, 4096, %s463, [#allocation16], 64, 64, 4
        $region44: #{tpu_custom_call.1} parent=11 // pred_fallthru
          _
        // Predicated region
        $region45: #{tpu_custom_call.1} parent=11 // pred_check
          %p469 = pneg %p275
        $region46: #{tpu_custom_call.1} parent=11 // pred_check_branch
          %471 = sbr.rel (%p469) target = $region48
        $region47: #{tpu_custom_call.1} parent=11 // pred_region
          %473 = vsyncadd [#allocation16], 0
          %s474 = sshll.u32 %s10, 4
          %s475 = int_to_ptr.hbm [resolvable:$true] %s474
          %s476 = sshll.u32 [#allocation17], 4
          %s477 = int_to_ptr.vmem [resolvable:$true] %s476
          %482 = dma.hbm_to_vmem [thread:$0]  %s475, 1024, %s477, [#allocation16], 64, 64, 4
        $region48: #{tpu_custom_call.1} parent=11 // pred_fallthru
          _
        // Predicated region
        $region49: #{tpu_custom_call.1} parent=11 // pred_check
          %p483 = pneg %p296
        $region50: #{tpu_custom_call.1} parent=11 // pred_check_branch
          %485 = sbr.rel (%p483) target = $region52
        $region51: #{tpu_custom_call.1} parent=11 // pred_region
          _
        $region52: #{tpu_custom_call.1} parent=11 // pred_fallthru
          _
        // Predicated region
        $region53: #{tpu_custom_call.1} parent=11 // pred_check
          %p486 = pneg %p317
        $region54: #{tpu_custom_call.1} parent=11 // pred_check_branch
          %488 = sbr.rel (%p486) target = $region56
        $region55: #{tpu_custom_call.1} parent=11 // pred_region
          _
        $region56: #{tpu_custom_call.1} parent=11 // pred_fallthru
          _
        // Predicated region
        $region57: #{tpu_custom_call.1} parent=11 // pred_check
          %p489 = pneg %p338
        $region58: #{tpu_custom_call.1} parent=11 // pred_check_branch
          %491 = sbr.rel (%p489) target = $region60
        $region59: #{tpu_custom_call.1} parent=11 // pred_region
          _
        $region60: #{tpu_custom_call.1} parent=11 // pred_fallthru
          _
      $region12: #{tpu_custom_call.1} parent=5 // pred_fallthru
        _
      %p492 = scmp.lt.s32.totalorder %s34, 2
      // Predicated region
      $region61: #{tpu_custom_call.1} parent=5 // pred_check
        %p493 = pneg %p492
      $region62: #{tpu_custom_call.1} parent=5 // pred_check_branch
        %495 = sbr.rel (%p493) target = $region64
      $region63: #{tpu_custom_call.1} parent=5 // pred_region
        // Predicated region
        $region65: #{tpu_custom_call.1} parent=63 // pred_check
          %p496 = pneg %p54
        $region66: #{tpu_custom_call.1} parent=63 // pred_check_branch
          %498 = sbr.rel (%p496) target = $region68
        $region67: #{tpu_custom_call.1} parent=63 // pred_region
          %s499 = sand.u32 %s44, 1
          %s500 = scalar_lea.sflag [#allocation4], %s499
          %s501 = sand.u32 %s44, 1
          %s502 = smul.addr %s501, 224
          %s503 = scalar_lea.vmem [#allocation3], %s502
          %s504 = smul.u32 4, %s34
          %506 = vsyncadd %s500, 0
          %s507 = smul.addr %s504, 14
          %s508 = smul.addr %s507, 4
          %s509 = scalar_lea.hbm %s0, %s508
          %s510 = sshll.u32 %s509, 4
          %s511 = int_to_ptr.hbm [resolvable:$true] %s510
          %s512 = sshll.u32 %s503, 4
          %s513 = int_to_ptr.vmem [resolvable:$true] %s512
          %518 = dma.hbm_to_vmem [thread:$0]  %s511, 3584, %s513, %s500, 128, 128, 8
        $region68: #{tpu_custom_call.1} parent=63 // pred_fallthru
          _
        // Predicated region
        $region69: #{tpu_custom_call.1} parent=63 // pred_check
          %p519 = pneg %p80
        $region70: #{tpu_custom_call.1} parent=63 // pred_check_branch
          %521 = sbr.rel (%p519) target = $region72
        $region71: #{tpu_custom_call.1} parent=63 // pred_region
          %s522 = sand.u32 %s34, 1
          %s523 = scalar_lea.sflag [#allocation7], %s522
          %s524 = sand.u32 %s70, 1
          %s525 = smul.addr %s524, 448
          %s526 = scalar_lea.vmem [#allocation6], %s525
          %s527 = smul.u32 4, %s34
          %529 = vsyncadd %s523, 0
          %s530 = smul.addr %s527, 28
          %s531 = smul.addr %s530, 4
          %s532 = scalar_lea.hbm %s1, %s531
          %s533 = sshll.u32 %s532, 4
          %s534 = int_to_ptr.hbm [resolvable:$true] %s533
          %s535 = sshll.u32 %s526, 4
          %s536 = int_to_ptr.vmem [resolvable:$true] %s535
          %541 = dma.hbm_to_vmem [thread:$0]  %s534, 7168, %s536, %s523, 256, 256, 16
        $region72: #{tpu_custom_call.1} parent=63 // pred_fallthru
          _
      $region64: #{tpu_custom_call.1} parent=5 // pred_fallthru
        _
      %p542 = scmp.le.s32.totalorder 1, %s34
      %p543 = scmp.lt.s32.totalorder %s34, 3
      %p544 = pnand %p542, %p543
      %p545 = pneg %p544
      // Predicated region
      $region73: #{tpu_custom_call.1} parent=5 // pred_check
        _
      $region74: #{tpu_custom_call.1} parent=5 // pred_check_branch
        %547 = sbr.rel (%p544) target = $region76
      $region75: #{tpu_custom_call.1} parent=5 // pred_region
        %s548 = ssub.s32 %s34, 1
        %s549 = sand.u32 %s47, 1
        %s550 = scalar_lea.sflag [#allocation4], %s549
        %s551 = sand.u32 %s47, 1
        %s552 = smul.addr %s551, 224
        %s553 = scalar_lea.vmem [#allocation3], %s552
        // Predicated region
        $region77: #{tpu_custom_call.1} parent=75 // pred_check
          %p554 = pneg %p60
        $region78: #{tpu_custom_call.1} parent=75 // pred_check_branch
          %556 = sbr.rel (%p554) target = $region80
        $region79: #{tpu_custom_call.1} parent=75 // pred_region
          %558 = dma.done %s550, 3584
        $region80: #{tpu_custom_call.1} parent=75 // pred_fallthru
          _
        %s559 = sand.u32 %s39, 1
        %s560 = scalar_lea.sflag [#allocation7], %s559
        %s561 = sand.u32 %s73, 1
        %s562 = smul.addr %s561, 448
        %s563 = scalar_lea.vmem [#allocation6], %s562
        // Predicated region
        $region81: #{tpu_custom_call.1} parent=75 // pred_check
          %p564 = pneg %p86
        $region82: #{tpu_custom_call.1} parent=75 // pred_check_branch
          %566 = sbr.rel (%p564) target = $region84
        $region83: #{tpu_custom_call.1} parent=75 // pred_region
          %568 = dma.done %s560, 7168
        $region84: #{tpu_custom_call.1} parent=75 // pred_fallthru
          _
        // Predicated region
        $region85: #{tpu_custom_call.1} parent=75 // pred_check
          %p569 = pneg %p107
        $region86: #{tpu_custom_call.1} parent=75 // pred_check_branch
          %571 = sbr.rel (%p569) target = $region88
        $region87: #{tpu_custom_call.1} parent=75 // pred_region
          %573 = dma.done [#allocation7], 2048
        $region88: #{tpu_custom_call.1} parent=75 // pred_fallthru
          _
        // Predicated region
        $region89: #{tpu_custom_call.1} parent=75 // pred_check
          %p574 = pneg %p149
        $region90: #{tpu_custom_call.1} parent=75 // pred_check_branch
          %576 = sbr.rel (%p574) target = $region92
        $region91: #{tpu_custom_call.1} parent=75 // pred_region
          %578 = dma.done [#allocation10], 4096
        $region92: #{tpu_custom_call.1} parent=75 // pred_fallthru
          _
        // Predicated region
        $region93: #{tpu_custom_call.1} parent=75 // pred_check
          %p579 = pneg %p191
        $region94: #{tpu_custom_call.1} parent=75 // pred_check_branch
          %581 = sbr.rel (%p579) target = $region96
        $region95: #{tpu_custom_call.1} parent=75 // pred_region
          %583 = dma.done [#allocation10], 1024
        $region96: #{tpu_custom_call.1} parent=75 // pred_fallthru
          _
        // Predicated region
        $region97: #{tpu_custom_call.1} parent=75 // pred_check
          %p584 = pneg %p212
        $region98: #{tpu_custom_call.1} parent=75 // pred_check_branch
          %586 = sbr.rel (%p584) target = $region100
        $region99: #{tpu_custom_call.1} parent=75 // pred_region
          %588 = dma.done [#allocation13], 1024
        $region100: #{tpu_custom_call.1} parent=75 // pred_fallthru
          _
        // Predicated region
        $region101: #{tpu_custom_call.1} parent=75 // pred_check
          %p589 = pneg %p233
        $region102: #{tpu_custom_call.1} parent=75 // pred_check_branch
          %591 = sbr.rel (%p589) target = $region104
        $region103: #{tpu_custom_call.1} parent=75 // pred_region
          %593 = dma.done [#allocation13], 4096
        $region104: #{tpu_custom_call.1} parent=75 // pred_fallthru
          _
        // Predicated region
        $region105: #{tpu_custom_call.1} parent=75 // pred_check
          %p594 = pneg %p254
        $region106: #{tpu_custom_call.1} parent=75 // pred_check_branch
          %596 = sbr.rel (%p594) target = $region108
        $region107: #{tpu_custom_call.1} parent=75 // pred_region
          %598 = dma.done [#allocation16], 4096
        $region108: #{tpu_custom_call.1} parent=75 // pred_fallthru
          _
        // Predicated region
        $region109: #{tpu_custom_call.1} parent=75 // pred_check
          %p599 = pneg %p275
        $region110: #{tpu_custom_call.1} parent=75 // pred_check_branch
          %601 = sbr.rel (%p599) target = $region112
        $region111: #{tpu_custom_call.1} parent=75 // pred_region
          %603 = dma.done [#allocation16], 1024
        $region112: #{tpu_custom_call.1} parent=75 // pred_fallthru
          _
        %s604 = sand.u32 %s47, 1
        %s605 = scalar_lea.sflag [#allocation4], %s604
        %s606 = sand.u32 %s47, 1
        %s607 = smul.addr %s606, 224
        %s608 = scalar_lea.vmem [#allocation3], %s607
        %p609 = pneg %p60
        %p610 = pneg %p57
        %s611 = sand.u32 %s39, 1
        %s612 = scalar_lea.sflag [#allocation7], %s611
        %s613 = sand.u32 %s73, 1
        %s614 = smul.addr %s613, 448
        %s615 = scalar_lea.vmem [#allocation6], %s614
        %p616 = pneg %p86
        %p617 = pneg %p83
        %p618 = pneg %p107
        %p619 = pneg %p104
        %p620 = pneg %p128
        %p621 = pneg %p125
        %p622 = pneg %p149
        %p623 = pneg %p146
        %p624 = pneg %p170
        %p625 = pneg %p167
        %p626 = pneg %p191
        %p627 = pneg %p188
        %p628 = pneg %p212
        %p629 = pneg %p209
        %p630 = pneg %p233
        %p631 = pneg %p230
        %p632 = pneg %p254
        %p633 = pneg %p251
        %p634 = pneg %p275
        %p635 = pneg %p272
        %p636 = pneg %p296
        %p637 = pneg %p293
        %p638 = pneg %p317
        %p639 = pneg %p314
        %p640 = pneg %p338
        %p641 = pneg %p335
        %p642 = pneg %p364
        %p643 = pneg %p361
        %s644 = sand.u32 %s351, 1
        %s645 = scalar_lea.sflag [#allocation5], %s644
        %s646 = sand.u32 %s351, 1
        %s647 = smul.addr %s646, 4
        %s648 = scalar_lea.vmem [#allocation18], %s647
        %s649 = smul.u32 4, %s39
        %s650 = smul.u32 4, %s39
        %s651 = smul.u32 4, %s39
        %v653 = vld [vmem:[%s553] sm:$0xff]
        %v654 = vld [vmem:[%s553 + $0x8] sm:$0xff]
        %v655 = vld [vmem:[%s553 + $0x10] sm:$0xff]
        %v656 = vld [vmem:[%s553 + $0x18] sm:$0xff]
        %v657 = vld [vmem:[%s553 + $0x20] sm:$0xff]
        %v658 = vld [vmem:[%s553 + $0x28] sm:$0xff]
        %v659 = vld [vmem:[%s553 + $0x30] sm:$0xff]
        %v660 = vld [vmem:[%s553 + $0x38] sm:$0xff]
        %v661 = vld [vmem:[%s553 + $0x40] sm:$0xff]
        %v662 = vld [vmem:[%s553 + $0x48] sm:$0xff]
        %v663 = vld [vmem:[%s553 + $0x50] sm:$0xff]
        %v664 = vld [vmem:[%s553 + $0x58] sm:$0xff]
        %v665 = vld [vmem:[%s553 + $0x60] sm:$0xff]
        %v666 = vld [vmem:[%s553 + $0x68] sm:$0xff]
        %v667 = vld [vmem:[%s553 + $0x70] sm:$0xff]
        %v668 = vld [vmem:[%s553 + $0x78] sm:$0xff]
        %v669 = vld [vmem:[%s553 + $0x80] sm:$0xff]
        %v670 = vld [vmem:[%s553 + $0x88] sm:$0xff]
        %v671 = vld [vmem:[%s553 + $0x90] sm:$0xff]
        %v672 = vld [vmem:[%s553 + $0x98] sm:$0xff]
        %v673 = vld [vmem:[%s553 + $0xa0] sm:$0xff]
        %v674 = vld [vmem:[%s553 + $0xa8] sm:$0xff]
        %v675 = vld [vmem:[%s553 + $0xb0] sm:$0xff]
        %v676 = vld [vmem:[%s553 + $0xb8] sm:$0xff]
        %v677 = vld [vmem:[%s553 + $0xc0] sm:$0xff]
        %v678 = vld [vmem:[%s553 + $0xc8] sm:$0xff]
        %v679 = vld [vmem:[%s553 + $0xd0] sm:$0xff]
        %v680 = vld [vmem:[%s553 + $0xd8] sm:$0xff]
        %v681 = vld [vmem:[%s563] sm:$0xff]
        %v682 = vld [vmem:[%s563 + $0x8] sm:$0xff]
        %v683 = vld [vmem:[%s563 + $0x10] sm:$0xff]
        %v684 = vld [vmem:[%s563 + $0x18] sm:$0xff]
        %v685 = vld [vmem:[%s563 + $0x20] sm:$0xff]
        %v686 = vld [vmem:[%s563 + $0x28] sm:$0xff]
        %v687 = vld [vmem:[%s563 + $0x30] sm:$0xff]
        %v688 = vld [vmem:[%s563 + $0x38] sm:$0xff]
        %v689 = vld [vmem:[%s563 + $0x40] sm:$0xff]
        %v690 = vld [vmem:[%s563 + $0x48] sm:$0xff]
        %v691 = vld [vmem:[%s563 + $0x50] sm:$0xff]
        %v692 = vld [vmem:[%s563 + $0x58] sm:$0xff]
        %v693 = vld [vmem:[%s563 + $0x60] sm:$0xff]
        %v694 = vld [vmem:[%s563 + $0x68] sm:$0xff]
        %v695 = vld [vmem:[%s563 + $0x70] sm:$0xff]
        %v696 = vld [vmem:[%s563 + $0x78] sm:$0xff]
        %v697 = vld [vmem:[%s563 + $0x80] sm:$0xff]
        %v698 = vld [vmem:[%s563 + $0x88] sm:$0xff]
        %v699 = vld [vmem:[%s563 + $0x90] sm:$0xff]
        %v700 = vld [vmem:[%s563 + $0x98] sm:$0xff]
        %v701 = vld [vmem:[%s563 + $0xa0] sm:$0xff]
        %v702 = vld [vmem:[%s563 + $0xa8] sm:$0xff]
        %v703 = vld [vmem:[%s563 + $0xb0] sm:$0xff]
        %v704 = vld [vmem:[%s563 + $0xb8] sm:$0xff]
        %v705 = vld [vmem:[%s563 + $0xc0] sm:$0xff]
        %v706 = vld [vmem:[%s563 + $0xc8] sm:$0xff]
        %v707 = vld [vmem:[%s563 + $0xd0] sm:$0xff]
        %v708 = vld [vmem:[%s563 + $0xd8] sm:$0xff]
        %v709 = vld [vmem:[%s563 + $0xe0] sm:$0xff]
        %v710 = vld [vmem:[%s563 + $0xe8] sm:$0xff]
        %v711 = vld [vmem:[%s563 + $0xf0] sm:$0xff]
        %v712 = vld [vmem:[%s563 + $0xf8] sm:$0xff]
        %v713 = vld [vmem:[%s563 + $0x100] sm:$0xff]
        %v714 = vld [vmem:[%s563 + $0x108] sm:$0xff]
        %v715 = vld [vmem:[%s563 + $0x110] sm:$0xff]
        %v716 = vld [vmem:[%s563 + $0x118] sm:$0xff]
        %v717 = vld [vmem:[%s563 + $0x120] sm:$0xff]
        %v718 = vld [vmem:[%s563 + $0x128] sm:$0xff]
        %v719 = vld [vmem:[%s563 + $0x130] sm:$0xff]
        %v720 = vld [vmem:[%s563 + $0x138] sm:$0xff]
        %v721 = vld [vmem:[%s563 + $0x140] sm:$0xff]
        %v722 = vld [vmem:[%s563 + $0x148] sm:$0xff]
        %v723 = vld [vmem:[%s563 + $0x150] sm:$0xff]
        %v724 = vld [vmem:[%s563 + $0x158] sm:$0xff]
        %v725 = vld [vmem:[%s563 + $0x160] sm:$0xff]
        %v726 = vld [vmem:[%s563 + $0x168] sm:$0xff]
        %v727 = vld [vmem:[%s563 + $0x170] sm:$0xff]
        %v728 = vld [vmem:[%s563 + $0x178] sm:$0xff]
        %v729 = vld [vmem:[%s563 + $0x180] sm:$0xff]
        %v730 = vld [vmem:[%s563 + $0x188] sm:$0xff]
        %v731 = vld [vmem:[%s563 + $0x190] sm:$0xff]
        %v732 = vld [vmem:[%s563 + $0x198] sm:$0xff]
        %v733 = vld [vmem:[%s563 + $0x1a0] sm:$0xff]
        %v734 = vld [vmem:[%s563 + $0x1a8] sm:$0xff]
        %v735 = vld [vmem:[%s563 + $0x1b0] sm:$0xff]
        %v736 = vld [vmem:[%s563 + $0x1b8] sm:$0xff]
        %v737 = vld [vmem:[#allocation8] sm:$0xf]
        %v738 = vld [vmem:[#allocation8 + $0x4] sm:$0xf]
        %v739 = vld [vmem:[#allocation8 + $0x8] sm:$0xf]
        %v740 = vld [vmem:[#allocation8 + $0xc] sm:$0xf]
        %v741 = vld [vmem:[#allocation8 + $0x10] sm:$0xf]
        %v742 = vld [vmem:[#allocation8 + $0x14] sm:$0xf]
        %v743 = vld [vmem:[#allocation8 + $0x18] sm:$0xf]
        %v744 = vld [vmem:[#allocation8 + $0x1c] sm:$0xf]
        %v745 = vld [vmem:[#allocation8 + $0x20] sm:$0xf]
        %v746 = vld [vmem:[#allocation8 + $0x24] sm:$0xf]
        %v747 = vld [vmem:[#allocation8 + $0x28] sm:$0xf]
        %v748 = vld [vmem:[#allocation8 + $0x2c] sm:$0xf]
        %v749 = vld [vmem:[#allocation8 + $0x30] sm:$0xf]
        %v750 = vld [vmem:[#allocation8 + $0x34] sm:$0xf]
        %v751 = vld [vmem:[#allocation8 + $0x38] sm:$0xf]
        %v752 = vld [vmem:[#allocation8 + $0x3c] sm:$0xf]
        %v753 = vld [vmem:[#allocation8 + $0x40] sm:$0xf]
        %v754 = vld [vmem:[#allocation8 + $0x44] sm:$0xf]
        %v755 = vld [vmem:[#allocation8 + $0x48] sm:$0xf]
        %v756 = vld [vmem:[#allocation8 + $0x4c] sm:$0xf]
        %v757 = vld [vmem:[#allocation8 + $0x50] sm:$0xf]
        %v758 = vld [vmem:[#allocation8 + $0x54] sm:$0xf]
        %v759 = vld [vmem:[#allocation8 + $0x58] sm:$0xf]
        %v760 = vld [vmem:[#allocation8 + $0x5c] sm:$0xf]
        %v761 = vld [vmem:[#allocation8 + $0x60] sm:$0xf]
        %v762 = vld [vmem:[#allocation8 + $0x64] sm:$0xf]
        %v763 = vld [vmem:[#allocation8 + $0x68] sm:$0xf]
        %v764 = vld [vmem:[#allocation8 + $0x6c] sm:$0xf]
        %v765 = vld [vmem:[#allocation8 + $0x70] sm:$0xf]
        %v766 = vld [vmem:[#allocation8 + $0x74] sm:$0xf]
        %v767 = vld [vmem:[#allocation8 + $0x78] sm:$0xf]
        %v768 = vld [vmem:[#allocation8 + $0x7c] sm:$0xf]
        %v769 = vld [vmem:[%s3] sm:$0x1]
        %v771 = vperm.slane %v769, 0
        %v801 = vunpack.c.l.b16 %v653
        %v802 = vunpack.c.h.b16 %v653
        %v803 = vunpack.c.l.b16 %v654
        %v804 = vunpack.c.h.b16 %v654
        %v805 = vunpack.c.l.b16 %v655
        %v806 = vunpack.c.h.b16 %v655
        %v807 = vunpack.c.l.b16 %v656
        %v808 = vunpack.c.h.b16 %v656
        %v809 = vunpack.c.l.b16 %v657
        %v810 = vunpack.c.h.b16 %v657
        %v811 = vunpack.c.l.b16 %v658
        %v812 = vunpack.c.h.b16 %v658
        %v813 = vunpack.c.l.b16 %v659
        %v814 = vunpack.c.h.b16 %v659
        %v815 = vunpack.c.l.b16 %v660
        %v816 = vunpack.c.h.b16 %v660
        %v817 = vunpack.c.l.b16 %v661
        %v818 = vunpack.c.h.b16 %v661
        %v819 = vunpack.c.l.b16 %v662
        %v820 = vunpack.c.h.b16 %v662
        %v821 = vunpack.c.l.b16 %v663
        %v822 = vunpack.c.h.b16 %v663
        %v823 = vunpack.c.l.b16 %v664
        %v824 = vunpack.c.h.b16 %v664
        %v825 = vunpack.c.l.b16 %v665
        %v826 = vunpack.c.h.b16 %v665
        %v827 = vunpack.c.l.b16 %v666
        %v828 = vunpack.c.h.b16 %v666
        %v829 = vunpack.c.l.b16 %v667
        %v830 = vunpack.c.h.b16 %v667
        %v831 = vunpack.c.l.b16 %v668
        %v832 = vunpack.c.h.b16 %v668
        %v833 = vunpack.c.l.b16 %v669
        %v834 = vunpack.c.h.b16 %v669
        %v835 = vunpack.c.l.b16 %v670
        %v836 = vunpack.c.h.b16 %v670
        %v837 = vunpack.c.l.b16 %v671
        %v838 = vunpack.c.h.b16 %v671
        %v839 = vunpack.c.l.b16 %v672
        %v840 = vunpack.c.h.b16 %v672
        %v841 = vunpack.c.l.b16 %v673
        %v842 = vunpack.c.h.b16 %v673
        %v843 = vunpack.c.l.b16 %v674
        %v844 = vunpack.c.h.b16 %v674
        %v845 = vunpack.c.l.b16 %v675
        %v846 = vunpack.c.h.b16 %v675
        %v847 = vunpack.c.l.b16 %v676
        %v848 = vunpack.c.h.b16 %v676
        %v849 = vunpack.c.l.b16 %v677
        %v850 = vunpack.c.h.b16 %v677
        %v851 = vunpack.c.l.b16 %v678
        %v852 = vunpack.c.h.b16 %v678
        %v853 = vunpack.c.l.b16 %v679
        %v854 = vunpack.c.h.b16 %v679
        %v855 = vunpack.c.l.b16 %v680
        %v856 = vunpack.c.h.b16 %v680
        %v857 = vpack.c.b16 %v803, %v801
        %v858 = vpack.c.b16 %v804, %v802
        %v859 = vpack.c.b16 %v807, %v805
        %v860 = vpack.c.b16 %v808, %v806
        %v861 = vpack.c.b16 %v811, %v809
        %v862 = vpack.c.b16 %v812, %v810
        %v863 = vpack.c.b16 %v815, %v813
        %v864 = vpack.c.b16 %v816, %v814
        %v865 = vpack.c.b16 %v819, %v817
        %v866 = vpack.c.b16 %v820, %v818
        %v867 = vpack.c.b16 %v823, %v821
        %v868 = vpack.c.b16 %v824, %v822
        %v869 = vpack.c.b16 %v827, %v825
        %v870 = vpack.c.b16 %v828, %v826
        %v871 = vpack.c.b16 %v831, %v829
        %v872 = vpack.c.b16 %v832, %v830
        %v873 = vpack.c.b16 %v835, %v833
        %v874 = vpack.c.b16 %v836, %v834
        %v875 = vpack.c.b16 %v839, %v837
        %v876 = vpack.c.b16 %v840, %v838
        %v877 = vpack.c.b16 %v843, %v841
        %v878 = vpack.c.b16 %v844, %v842
        %v879 = vpack.c.b16 %v847, %v845
        %v880 = vpack.c.b16 %v848, %v846
        %v881 = vpack.c.b16 %v851, %v849
        %v882 = vpack.c.b16 %v852, %v850
        %v883 = vpack.c.b16 %v855, %v853
        %v884 = vpack.c.b16 %v856, %v854
        %v945 = vunpack.c.l.b16 %v737
        %v946 = vunpack.c.l.b16 %v738
        %v947 = vunpack.c.l.b16 %v739
        %v948 = vunpack.c.l.b16 %v740
        %v949 = vunpack.c.l.b16 %v741
        %v950 = vunpack.c.l.b16 %v742
        %v951 = vunpack.c.l.b16 %v743
        %v952 = vunpack.c.l.b16 %v744
        %v953 = vunpack.c.l.b16 %v745
        %v954 = vunpack.c.l.b16 %v746
        %v955 = vunpack.c.l.b16 %v747
        %v956 = vunpack.c.l.b16 %v748
        %v957 = vunpack.c.l.b16 %v749
        %v958 = vunpack.c.l.b16 %v750
        %v959 = vunpack.c.l.b16 %v751
        %v960 = vunpack.c.l.b16 %v752
        %v961 = vunpack.c.l.b16 %v753
        %v962 = vunpack.c.l.b16 %v754
        %v963 = vunpack.c.l.b16 %v755
        %v964 = vunpack.c.l.b16 %v756
        %v965 = vunpack.c.l.b16 %v757
        %v966 = vunpack.c.l.b16 %v758
        %v967 = vunpack.c.l.b16 %v759
        %v968 = vunpack.c.l.b16 %v760
        %v969 = vunpack.c.l.b16 %v761
        %v970 = vunpack.c.l.b16 %v762
        %v971 = vunpack.c.l.b16 %v763
        %v972 = vunpack.c.l.b16 %v764
        %v973 = vunpack.c.l.b16 %v765
        %v974 = vunpack.c.l.b16 %v766
        %v975 = vunpack.c.l.b16 %v767
        %v976 = vunpack.c.l.b16 %v768
        %v977 = vpack.c.b16 %v946, %v945
        %v978 = vpack.c.b16 %v948, %v947
        %v979 = vpack.c.b16 %v950, %v949
        %v980 = vpack.c.b16 %v952, %v951
        %v981 = vpack.c.b16 %v954, %v953
        %v982 = vpack.c.b16 %v956, %v955
        %v983 = vpack.c.b16 %v958, %v957
        %v984 = vpack.c.b16 %v960, %v959
        %v985 = vpack.c.b16 %v962, %v961
        %v986 = vpack.c.b16 %v964, %v963
        %v987 = vpack.c.b16 %v966, %v965
        %v988 = vpack.c.b16 %v968, %v967
        %v989 = vpack.c.b16 %v970, %v969
        %v990 = vpack.c.b16 %v972, %v971
        %v991 = vpack.c.b16 %v974, %v973
        %v992 = vpack.c.b16 %v976, %v975
        %1009 = vmatpush.bf16.msra.mxu0 %v984
        %1010 = vmatpush.bf16.msra.mxu0 %v983
        %1011 = vmatpush.bf16.msra.mxu0 %v982
        %1012 = vmatpush.bf16.msra.mxu0 %v981
        %1013 = vmatpush.bf16.msra.mxu0 %v980
        %1014 = vmatpush.bf16.msra.mxu0 %v979
        %1015 = vmatpush.bf16.msra.mxu0 %v978
        %1016 = vmatpush.bf16.msra.mxu0 %v977
        %1017 = vmatmul.bf16.gmra.mxu0 %v857
        %v1018 = vpop.f32.mrf.mxu0
        %v1019 = vadd.f32 %v771, %v1018
        %v1020 = vpop.f32.mrf.mxu0
        %v1021 = vadd.f32 %v771, %v1020
        %1022 = vmatmul.bf16.gmra.mxu0 %v859
        %v1023 = vpop.f32.mrf.mxu0
        %v1024 = vadd.f32 %v771, %v1023
        %v1025 = vpop.f32.mrf.mxu0
        %v1026 = vadd.f32 %v771, %v1025
        %1027 = vmatmul.bf16.gmra.mxu0 %v861
        %v1028 = vpop.f32.mrf.mxu0
        %v1029 = vadd.f32 %v771, %v1028
        %v1030 = vpop.f32.mrf.mxu0
        %v1031 = vadd.f32 %v771, %v1030
        %1032 = vmatmul.bf16.gmra.mxu0 %v863
        %v1033 = vpop.f32.mrf.mxu0
        %v1034 = vadd.f32 %v771, %v1033
        %v1035 = vpop.f32.mrf.mxu0
        %v1036 = vadd.f32 %v771, %v1035
        %1037 = vmatmul.bf16.gmra.mxu0 %v865
        %v1038 = vpop.f32.mrf.mxu0
        %v1039 = vadd.f32 %v771, %v1038
        %v1040 = vpop.f32.mrf.mxu0
        %v1041 = vadd.f32 %v771, %v1040
        %1042 = vmatmul.bf16.gmra.mxu0 %v867
        %v1043 = vpop.f32.mrf.mxu0
        %v1044 = vadd.f32 %v771, %v1043
        %v1045 = vpop.f32.mrf.mxu0
        %v1046 = vadd.f32 %v771, %v1045
        %1047 = vmatmul.bf16.gmra.mxu0 %v869
        %v1048 = vpop.f32.mrf.mxu0
        %v1049 = vadd.f32 %v771, %v1048
        %v1050 = vpop.f32.mrf.mxu0
        %v1051 = vadd.f32 %v771, %v1050
        %1052 = vmatmul.bf16.gmra.mxu0 %v871
        %v1053 = vpop.f32.mrf.mxu0
        %v1054 = vadd.f32 %v771, %v1053
        %v1055 = vpop.f32.mrf.mxu0
        %v1056 = vadd.f32 %v771, %v1055
        %1057 = vmatmul.bf16.gmra.mxu0 %v873
        %v1058 = vpop.f32.mrf.mxu0
        %v1059 = vadd.f32 %v771, %v1058
        %v1060 = vpop.f32.mrf.mxu0
        %v1061 = vadd.f32 %v771, %v1060
        %1062 = vmatmul.bf16.gmra.mxu0 %v875
        %v1063 = vpop.f32.mrf.mxu0
        %v1064 = vadd.f32 %v771, %v1063
        %v1065 = vpop.f32.mrf.mxu0
        %v1066 = vadd.f32 %v771, %v1065
        %1067 = vmatmul.bf16.gmra.mxu0 %v877
        %v1068 = vpop.f32.mrf.mxu0
        %v1069 = vadd.f32 %v771, %v1068
        %v1070 = vpop.f32.mrf.mxu0
        %v1071 = vadd.f32 %v771, %v1070
        %1072 = vmatmul.bf16.gmra.mxu0 %v879
        %v1073 = vpop.f32.mrf.mxu0
        %v1074 = vadd.f32 %v771, %v1073
        %v1075 = vpop.f32.mrf.mxu0
        %v1076 = vadd.f32 %v771, %v1075
        %1077 = vmatmul.bf16.gmra.mxu0 %v881
        %v1078 = vpop.f32.mrf.mxu0
        %v1079 = vadd.f32 %v771, %v1078
        %v1080 = vpop.f32.mrf.mxu0
        %v1081 = vadd.f32 %v771, %v1080
        %1082 = vmatmul.bf16.gmra.mxu0 %v883
        %v1083 = vpop.f32.mrf.mxu0
        %v1084 = vadd.f32 %v771, %v1083
        %v1085 = vpop.f32.mrf.mxu0
        %v1086 = vadd.f32 %v771, %v1085
        %1087 = vdwg.mxu0
        %1088 = vmatpush.bf16.msra.mxu0 %v992
        %1089 = vmatpush.bf16.msra.mxu0 %v991
        %1090 = vmatpush.bf16.msra.mxu0 %v990
        %1091 = vmatpush.bf16.msra.mxu0 %v989
        %1092 = vmatpush.bf16.msra.mxu0 %v988
        %1093 = vmatpush.bf16.msra.mxu0 %v987
        %1094 = vmatpush.bf16.msra.mxu0 %v986
        %1095 = vmatpush.bf16.msra.mxu0 %v985
        %1096 = vmatmul.bf16.gmra.mxu0 %v858
        %v1097 = vpop.f32.mrf.mxu0
        %v1098 = vadd.f32 %v1019, %v1097
        %v1099 = vpop.f32.mrf.mxu0
        %v1100 = vadd.f32 %v1021, %v1099
        %1101 = vmatmul.bf16.gmra.mxu0 %v860
        %v1102 = vpop.f32.mrf.mxu0
        %v1103 = vadd.f32 %v1024, %v1102
        %v1104 = vpop.f32.mrf.mxu0
        %v1105 = vadd.f32 %v1026, %v1104
        %1106 = vmatmul.bf16.gmra.mxu0 %v862
        %v1107 = vpop.f32.mrf.mxu0
        %v1108 = vadd.f32 %v1029, %v1107
        %v1109 = vpop.f32.mrf.mxu0
        %v1110 = vadd.f32 %v1031, %v1109
        %1111 = vmatmul.bf16.gmra.mxu0 %v864
        %v1112 = vpop.f32.mrf.mxu0
        %v1113 = vadd.f32 %v1034, %v1112
        %v1114 = vpop.f32.mrf.mxu0
        %v1115 = vadd.f32 %v1036, %v1114
        %1116 = vmatmul.bf16.gmra.mxu0 %v866
        %v1117 = vpop.f32.mrf.mxu0
        %v1118 = vadd.f32 %v1039, %v1117
        %v1119 = vpop.f32.mrf.mxu0
        %v1120 = vadd.f32 %v1041, %v1119
        %1121 = vmatmul.bf16.gmra.mxu0 %v868
        %v1122 = vpop.f32.mrf.mxu0
        %v1123 = vadd.f32 %v1044, %v1122
        %v1124 = vpop.f32.mrf.mxu0
        %v1125 = vadd.f32 %v1046, %v1124
        %1126 = vmatmul.bf16.gmra.mxu0 %v870
        %v1127 = vpop.f32.mrf.mxu0
        %v1128 = vadd.f32 %v1049, %v1127
        %v1129 = vpop.f32.mrf.mxu0
        %v1130 = vadd.f32 %v1051, %v1129
        %1131 = vmatmul.bf16.gmra.mxu0 %v872
        %v1132 = vpop.f32.mrf.mxu0
        %v1133 = vadd.f32 %v1054, %v1132
        %v1134 = vpop.f32.mrf.mxu0
        %v1135 = vadd.f32 %v1056, %v1134
        %1136 = vmatmul.bf16.gmra.mxu0 %v874
        %v1137 = vpop.f32.mrf.mxu0
        %v1138 = vadd.f32 %v1059, %v1137
        %v1139 = vpop.f32.mrf.mxu0
        %v1140 = vadd.f32 %v1061, %v1139
        %1141 = vmatmul.bf16.gmra.mxu0 %v876
        %v1142 = vpop.f32.mrf.mxu0
        %v1143 = vadd.f32 %v1064, %v1142
        %v1144 = vpop.f32.mrf.mxu0
        %v1145 = vadd.f32 %v1066, %v1144
        %1146 = vmatmul.bf16.gmra.mxu0 %v878
        %v1147 = vpop.f32.mrf.mxu0
        %v1148 = vadd.f32 %v1069, %v1147
        %v1149 = vpop.f32.mrf.mxu0
        %v1150 = vadd.f32 %v1071, %v1149
        %1151 = vmatmul.bf16.gmra.mxu0 %v880
        %v1152 = vpop.f32.mrf.mxu0
        %v1153 = vadd.f32 %v1074, %v1152
        %v1154 = vpop.f32.mrf.mxu0
        %v1155 = vadd.f32 %v1076, %v1154
        %1156 = vmatmul.bf16.gmra.mxu0 %v882
        %v1157 = vpop.f32.mrf.mxu0
        %v1158 = vadd.f32 %v1079, %v1157
        %v1159 = vpop.f32.mrf.mxu0
        %v1160 = vadd.f32 %v1081, %v1159
        %1161 = vmatmul.bf16.gmra.mxu0 %v884
        %v1162 = vpop.f32.mrf.mxu0
        %v1163 = vadd.f32 %v1084, %v1162
        %v1164 = vpop.f32.mrf.mxu0
        %v1165 = vadd.f32 %v1086, %v1164
        %1166 = vdwg.mxu0
        %v1167 = vld [vmem:[#allocation9] sm:$0xf]
        %v1168 = vld [vmem:[#allocation9 + $0x4] sm:$0xf]
        %v1169 = vld [vmem:[#allocation9 + $0x8] sm:$0xf]
        %v1170 = vld [vmem:[#allocation9 + $0xc] sm:$0xf]
        %v1171 = vld [vmem:[#allocation9 + $0x10] sm:$0xf]
        %v1172 = vld [vmem:[#allocation9 + $0x14] sm:$0xf]
        %v1173 = vld [vmem:[#allocation9 + $0x18] sm:$0xf]
        %v1174 = vld [vmem:[#allocation9 + $0x1c] sm:$0xf]
        %v1175 = vld [vmem:[#allocation9 + $0x20] sm:$0xf]
        %v1176 = vld [vmem:[#allocation9 + $0x24] sm:$0xf]
        %v1177 = vld [vmem:[#allocation9 + $0x28] sm:$0xf]
        %v1178 = vld [vmem:[#allocation9 + $0x2c] sm:$0xf]
        %v1179 = vld [vmem:[#allocation9 + $0x30] sm:$0xf]
        %v1180 = vld [vmem:[#allocation9 + $0x34] sm:$0xf]
        %v1181 = vld [vmem:[#allocation9 + $0x38] sm:$0xf]
        %v1182 = vld [vmem:[#allocation9 + $0x3c] sm:$0xf]
        %v1183 = vld [vmem:[#allocation9 + $0x40] sm:$0xf]
        %v1184 = vld [vmem:[#allocation9 + $0x44] sm:$0xf]
        %v1185 = vld [vmem:[#allocation9 + $0x48] sm:$0xf]
        %v1186 = vld [vmem:[#allocation9 + $0x4c] sm:$0xf]
        %v1187 = vld [vmem:[#allocation9 + $0x50] sm:$0xf]
        %v1188 = vld [vmem:[#allocation9 + $0x54] sm:$0xf]
        %v1189 = vld [vmem:[#allocation9 + $0x58] sm:$0xf]
        %v1190 = vld [vmem:[#allocation9 + $0x5c] sm:$0xf]
        %v1191 = vld [vmem:[#allocation9 + $0x60] sm:$0xf]
        %v1192 = vld [vmem:[#allocation9 + $0x64] sm:$0xf]
        %v1193 = vld [vmem:[#allocation9 + $0x68] sm:$0xf]
        %v1194 = vld [vmem:[#allocation9 + $0x6c] sm:$0xf]
        %v1195 = vld [vmem:[#allocation9 + $0x70] sm:$0xf]
        %v1196 = vld [vmem:[#allocation9 + $0x74] sm:$0xf]
        %v1197 = vld [vmem:[#allocation9 + $0x78] sm:$0xf]
        %v1198 = vld [vmem:[#allocation9 + $0x7c] sm:$0xf]
        %v1199 = vld [vmem:[#allocation9 + $0x80] sm:$0xf]
        %v1200 = vld [vmem:[#allocation9 + $0x84] sm:$0xf]
        %v1201 = vld [vmem:[#allocation9 + $0x88] sm:$0xf]
        %v1202 = vld [vmem:[#allocation9 + $0x8c] sm:$0xf]
        %v1203 = vld [vmem:[#allocation9 + $0x90] sm:$0xf]
        %v1204 = vld [vmem:[#allocation9 + $0x94] sm:$0xf]
        %v1205 = vld [vmem:[#allocation9 + $0x98] sm:$0xf]
        %v1206 = vld [vmem:[#allocation9 + $0x9c] sm:$0xf]
        %v1207 = vld [vmem:[#allocation9 + $0xa0] sm:$0xf]
        %v1208 = vld [vmem:[#allocation9 + $0xa4] sm:$0xf]
        %v1209 = vld [vmem:[#allocation9 + $0xa8] sm:$0xf]
        %v1210 = vld [vmem:[#allocation9 + $0xac] sm:$0xf]
        %v1211 = vld [vmem:[#allocation9 + $0xb0] sm:$0xf]
        %v1212 = vld [vmem:[#allocation9 + $0xb4] sm:$0xf]
        %v1213 = vld [vmem:[#allocation9 + $0xb8] sm:$0xf]
        %v1214 = vld [vmem:[#allocation9 + $0xbc] sm:$0xf]
        %v1215 = vld [vmem:[#allocation9 + $0xc0] sm:$0xf]
        %v1216 = vld [vmem:[#allocation9 + $0xc4] sm:$0xf]
        %v1217 = vld [vmem:[#allocation9 + $0xc8] sm:$0xf]
        %v1218 = vld [vmem:[#allocation9 + $0xcc] sm:$0xf]
        %v1219 = vld [vmem:[#allocation9 + $0xd0] sm:$0xf]
        %v1220 = vld [vmem:[#allocation9 + $0xd4] sm:$0xf]
        %v1221 = vld [vmem:[#allocation9 + $0xd8] sm:$0xf]
        %v1222 = vld [vmem:[#allocation9 + $0xdc] sm:$0xf]
        %v1223 = vld [vmem:[#allocation9 + $0xe0] sm:$0xf]
        %v1224 = vld [vmem:[#allocation9 + $0xe4] sm:$0xf]
        %v1225 = vld [vmem:[#allocation9 + $0xe8] sm:$0xf]
        %v1226 = vld [vmem:[#allocation9 + $0xec] sm:$0xf]
        %v1227 = vld [vmem:[#allocation9 + $0xf0] sm:$0xf]
        %v1228 = vld [vmem:[#allocation9 + $0xf4] sm:$0xf]
        %v1229 = vld [vmem:[#allocation9 + $0xf8] sm:$0xf]
        %v1230 = vld [vmem:[#allocation9 + $0xfc] sm:$0xf]
        %v1287 = vunpack.c.l.b16 %v681
        %v1288 = vunpack.c.h.b16 %v681
        %v1289 = vunpack.c.l.b16 %v682
        %v1290 = vunpack.c.h.b16 %v682
        %v1291 = vunpack.c.l.b16 %v683
        %v1292 = vunpack.c.h.b16 %v683
        %v1293 = vunpack.c.l.b16 %v684
        %v1294 = vunpack.c.h.b16 %v684
        %v1295 = vunpack.c.l.b16 %v685
        %v1296 = vunpack.c.h.b16 %v685
        %v1297 = vunpack.c.l.b16 %v686
        %v1298 = vunpack.c.h.b16 %v686
        %v1299 = vunpack.c.l.b16 %v687
        %v1300 = vunpack.c.h.b16 %v687
        %v1301 = vunpack.c.l.b16 %v688
        %v1302 = vunpack.c.h.b16 %v688
        %v1303 = vunpack.c.l.b16 %v689
        %v1304 = vunpack.c.h.b16 %v689
        %v1305 = vunpack.c.l.b16 %v690
        %v1306 = vunpack.c.h.b16 %v690
        %v1307 = vunpack.c.l.b16 %v691
        %v1308 = vunpack.c.h.b16 %v691
        %v1309 = vunpack.c.l.b16 %v692
        %v1310 = vunpack.c.h.b16 %v692
        %v1311 = vunpack.c.l.b16 %v693
        %v1312 = vunpack.c.h.b16 %v693
        %v1313 = vunpack.c.l.b16 %v694
        %v1314 = vunpack.c.h.b16 %v694
        %v1315 = vunpack.c.l.b16 %v695
        %v1316 = vunpack.c.h.b16 %v695
        %v1317 = vunpack.c.l.b16 %v696
        %v1318 = vunpack.c.h.b16 %v696
        %v1319 = vunpack.c.l.b16 %v697
        %v1320 = vunpack.c.h.b16 %v697
        %v1321 = vunpack.c.l.b16 %v698
        %v1322 = vunpack.c.h.b16 %v698
        %v1323 = vunpack.c.l.b16 %v699
        %v1324 = vunpack.c.h.b16 %v699
        %v1325 = vunpack.c.l.b16 %v700
        %v1326 = vunpack.c.h.b16 %v700
        %v1327 = vunpack.c.l.b16 %v701
        %v1328 = vunpack.c.h.b16 %v701
        %v1329 = vunpack.c.l.b16 %v702
        %v1330 = vunpack.c.h.b16 %v702
        %v1331 = vunpack.c.l.b16 %v703
        %v1332 = vunpack.c.h.b16 %v703
        %v1333 = vunpack.c.l.b16 %v704
        %v1334 = vunpack.c.h.b16 %v704
        %v1335 = vunpack.c.l.b16 %v705
        %v1336 = vunpack.c.h.b16 %v705
        %v1337 = vunpack.c.l.b16 %v706
        %v1338 = vunpack.c.h.b16 %v706
        %v1339 = vunpack.c.l.b16 %v707
        %v1340 = vunpack.c.h.b16 %v707
        %v1341 = vunpack.c.l.b16 %v708
        %v1342 = vunpack.c.h.b16 %v708
        %v1343 = vunpack.c.l.b16 %v709
        %v1344 = vunpack.c.h.b16 %v709
        %v1345 = vunpack.c.l.b16 %v710
        %v1346 = vunpack.c.h.b16 %v710
        %v1347 = vunpack.c.l.b16 %v711
        %v1348 = vunpack.c.h.b16 %v711
        %v1349 = vunpack.c.l.b16 %v712
        %v1350 = vunpack.c.h.b16 %v712
        %v1351 = vunpack.c.l.b16 %v713
        %v1352 = vunpack.c.h.b16 %v713
        %v1353 = vunpack.c.l.b16 %v714
        %v1354 = vunpack.c.h.b16 %v714
        %v1355 = vunpack.c.l.b16 %v715
        %v1356 = vunpack.c.h.b16 %v715
        %v1357 = vunpack.c.l.b16 %v716
        %v1358 = vunpack.c.h.b16 %v716
        %v1359 = vunpack.c.l.b16 %v717
        %v1360 = vunpack.c.h.b16 %v717
        %v1361 = vunpack.c.l.b16 %v718
        %v1362 = vunpack.c.h.b16 %v718
        %v1363 = vunpack.c.l.b16 %v719
        %v1364 = vunpack.c.h.b16 %v719
        %v1365 = vunpack.c.l.b16 %v720
        %v1366 = vunpack.c.h.b16 %v720
        %v1367 = vunpack.c.l.b16 %v721
        %v1368 = vunpack.c.h.b16 %v721
        %v1369 = vunpack.c.l.b16 %v722
        %v1370 = vunpack.c.h.b16 %v722
        %v1371 = vunpack.c.l.b16 %v723
        %v1372 = vunpack.c.h.b16 %v723
        %v1373 = vunpack.c.l.b16 %v724
        %v1374 = vunpack.c.h.b16 %v724
        %v1375 = vunpack.c.l.b16 %v725
        %v1376 = vunpack.c.h.b16 %v725
        %v1377 = vunpack.c.l.b16 %v726
        %v1378 = vunpack.c.h.b16 %v726
        %v1379 = vunpack.c.l.b16 %v727
        %v1380 = vunpack.c.h.b16 %v727
        %v1381 = vunpack.c.l.b16 %v728
        %v1382 = vunpack.c.h.b16 %v728
        %v1383 = vunpack.c.l.b16 %v729
        %v1384 = vunpack.c.h.b16 %v729
        %v1385 = vunpack.c.l.b16 %v730
        %v1386 = vunpack.c.h.b16 %v730
        %v1387 = vunpack.c.l.b16 %v731
        %v1388 = vunpack.c.h.b16 %v731
        %v1389 = vunpack.c.l.b16 %v732
        %v1390 = vunpack.c.h.b16 %v732
        %v1391 = vunpack.c.l.b16 %v733
        %v1392 = vunpack.c.h.b16 %v733
        %v1393 = vunpack.c.l.b16 %v734
        %v1394 = vunpack.c.h.b16 %v734
        %v1395 = vunpack.c.l.b16 %v735
        %v1396 = vunpack.c.h.b16 %v735
        %v1397 = vunpack.c.l.b16 %v736
        %v1398 = vunpack.c.h.b16 %v736
        %v1399 = vpack.c.b16 %v1291, %v1287
        %v1400 = vpack.c.b16 %v1292, %v1288
        %v1401 = vpack.c.b16 %v1293, %v1289
        %v1402 = vpack.c.b16 %v1294, %v1290
        %v1403 = vpack.c.b16 %v1299, %v1295
        %v1404 = vpack.c.b16 %v1300, %v1296
        %v1405 = vpack.c.b16 %v1301, %v1297
        %v1406 = vpack.c.b16 %v1302, %v1298
        %v1407 = vpack.c.b16 %v1307, %v1303
        %v1408 = vpack.c.b16 %v1308, %v1304
        %v1409 = vpack.c.b16 %v1309, %v1305
        %v1410 = vpack.c.b16 %v1310, %v1306
        %v1411 = vpack.c.b16 %v1315, %v1311
        %v1412 = vpack.c.b16 %v1316, %v1312
        %v1413 = vpack.c.b16 %v1317, %v1313
        %v1414 = vpack.c.b16 %v1318, %v1314
        %v1415 = vpack.c.b16 %v1323, %v1319
        %v1416 = vpack.c.b16 %v1324, %v1320
        %v1417 = vpack.c.b16 %v1325, %v1321
        %v1418 = vpack.c.b16 %v1326, %v1322
        %v1419 = vpack.c.b16 %v1331, %v1327
        %v1420 = vpack.c.b16 %v1332, %v1328
        %v1421 = vpack.c.b16 %v1333, %v1329
        %v1422 = vpack.c.b16 %v1334, %v1330
        %v1423 = vpack.c.b16 %v1339, %v1335
        %v1424 = vpack.c.b16 %v1340, %v1336
        %v1425 = vpack.c.b16 %v1341, %v1337
        %v1426 = vpack.c.b16 %v1342, %v1338
        %v1427 = vpack.c.b16 %v1347, %v1343
        %v1428 = vpack.c.b16 %v1348, %v1344
        %v1429 = vpack.c.b16 %v1349, %v1345
        %v1430 = vpack.c.b16 %v1350, %v1346
        %v1431 = vpack.c.b16 %v1355, %v1351
        %v1432 = vpack.c.b16 %v1356, %v1352
        %v1433 = vpack.c.b16 %v1357, %v1353
        %v1434 = vpack.c.b16 %v1358, %v1354
        %v1435 = vpack.c.b16 %v1363, %v1359
        %v1436 = vpack.c.b16 %v1364, %v1360
        %v1437 = vpack.c.b16 %v1365, %v1361
        %v1438 = vpack.c.b16 %v1366, %v1362
        %v1439 = vpack.c.b16 %v1371, %v1367
        %v1440 = vpack.c.b16 %v1372, %v1368
        %v1441 = vpack.c.b16 %v1373, %v1369
        %v1442 = vpack.c.b16 %v1374, %v1370
        %v1443 = vpack.c.b16 %v1379, %v1375
        %v1444 = vpack.c.b16 %v1380, %v1376
        %v1445 = vpack.c.b16 %v1381, %v1377
        %v1446 = vpack.c.b16 %v1382, %v1378
        %v1447 = vpack.c.b16 %v1387, %v1383
        %v1448 = vpack.c.b16 %v1388, %v1384
        %v1449 = vpack.c.b16 %v1389, %v1385
        %v1450 = vpack.c.b16 %v1390, %v1386
        %v1451 = vpack.c.b16 %v1395, %v1391
        %v1452 = vpack.c.b16 %v1396, %v1392
        %v1453 = vpack.c.b16 %v1397, %v1393
        %v1454 = vpack.c.b16 %v1398, %v1394
        %v1575 = vunpack.c.l.b16 %v1167
        %v1576 = vunpack.c.l.b16 %v1168
        %v1577 = vunpack.c.l.b16 %v1169
        %v1578 = vunpack.c.l.b16 %v1170
        %v1579 = vunpack.c.l.b16 %v1171
        %v1580 = vunpack.c.l.b16 %v1172
        %v1581 = vunpack.c.l.b16 %v1173
        %v1582 = vunpack.c.l.b16 %v1174
        %v1583 = vunpack.c.l.b16 %v1175
        %v1584 = vunpack.c.l.b16 %v1176
        %v1585 = vunpack.c.l.b16 %v1177
        %v1586 = vunpack.c.l.b16 %v1178
        %v1587 = vunpack.c.l.b16 %v1179
        %v1588 = vunpack.c.l.b16 %v1180
        %v1589 = vunpack.c.l.b16 %v1181
        %v1590 = vunpack.c.l.b16 %v1182
        %v1591 = vunpack.c.l.b16 %v1183
        %v1592 = vunpack.c.l.b16 %v1184
        %v1593 = vunpack.c.l.b16 %v1185
        %v1594 = vunpack.c.l.b16 %v1186
        %v1595 = vunpack.c.l.b16 %v1187
        %v1596 = vunpack.c.l.b16 %v1188
        %v1597 = vunpack.c.l.b16 %v1189
        %v1598 = vunpack.c.l.b16 %v1190
        %v1599 = vunpack.c.l.b16 %v1191
        %v1600 = vunpack.c.l.b16 %v1192
        %v1601 = vunpack.c.l.b16 %v1193
        %v1602 = vunpack.c.l.b16 %v1194
        %v1603 = vunpack.c.l.b16 %v1195
        %v1604 = vunpack.c.l.b16 %v1196
        %v1605 = vunpack.c.l.b16 %v1197
        %v1606 = vunpack.c.l.b16 %v1198
        %v1607 = vunpack.c.l.b16 %v1199
        %v1608 = vunpack.c.l.b16 %v1200
        %v1609 = vunpack.c.l.b16 %v1201
        %v1610 = vunpack.c.l.b16 %v1202
        %v1611 = vunpack.c.l.b16 %v1203
        %v1612 = vunpack.c.l.b16 %v1204
        %v1613 = vunpack.c.l.b16 %v1205
        %v1614 = vunpack.c.l.b16 %v1206
        %v1615 = vunpack.c.l.b16 %v1207
        %v1616 = vunpack.c.l.b16 %v1208
        %v1617 = vunpack.c.l.b16 %v1209
        %v1618 = vunpack.c.l.b16 %v1210
        %v1619 = vunpack.c.l.b16 %v1211
        %v1620 = vunpack.c.l.b16 %v1212
        %v1621 = vunpack.c.l.b16 %v1213
        %v1622 = vunpack.c.l.b16 %v1214
        %v1623 = vunpack.c.l.b16 %v1215
        %v1624 = vunpack.c.l.b16 %v1216
        %v1625 = vunpack.c.l.b16 %v1217
        %v1626 = vunpack.c.l.b16 %v1218
        %v1627 = vunpack.c.l.b16 %v1219
        %v1628 = vunpack.c.l.b16 %v1220
        %v1629 = vunpack.c.l.b16 %v1221
        %v1630 = vunpack.c.l.b16 %v1222
        %v1631 = vunpack.c.l.b16 %v1223
        %v1632 = vunpack.c.l.b16 %v1224
        %v1633 = vunpack.c.l.b16 %v1225
        %v1634 = vunpack.c.l.b16 %v1226
        %v1635 = vunpack.c.l.b16 %v1227
        %v1636 = vunpack.c.l.b16 %v1228
        %v1637 = vunpack.c.l.b16 %v1229
        %v1638 = vunpack.c.l.b16 %v1230
        %v1639 = vpack.c.b16 %v1576, %v1575
        %v1640 = vpack.c.b16 %v1578, %v1577
        %v1641 = vpack.c.b16 %v1580, %v1579
        %v1642 = vpack.c.b16 %v1582, %v1581
        %v1643 = vpack.c.b16 %v1584, %v1583
        %v1644 = vpack.c.b16 %v1586, %v1585
        %v1645 = vpack.c.b16 %v1588, %v1587
        %v1646 = vpack.c.b16 %v1590, %v1589
        %v1647 = vpack.c.b16 %v1592, %v1591
        %v1648 = vpack.c.b16 %v1594, %v1593
        %v1649 = vpack.c.b16 %v1596, %v1595
        %v1650 = vpack.c.b16 %v1598, %v1597
        %v1651 = vpack.c.b16 %v1600, %v1599
        %v1652 = vpack.c.b16 %v1602, %v1601
        %v1653 = vpack.c.b16 %v1604, %v1603
        %v1654 = vpack.c.b16 %v1606, %v1605
        %v1655 = vpack.c.b16 %v1608, %v1607
        %v1656 = vpack.c.b16 %v1610, %v1609
        %v1657 = vpack.c.b16 %v1612, %v1611
        %v1658 = vpack.c.b16 %v1614, %v1613
        %v1659 = vpack.c.b16 %v1616, %v1615
        %v1660 = vpack.c.b16 %v1618, %v1617
        %v1661 = vpack.c.b16 %v1620, %v1619
        %v1662 = vpack.c.b16 %v1622, %v1621
        %v1663 = vpack.c.b16 %v1624, %v1623
        %v1664 = vpack.c.b16 %v1626, %v1625
        %v1665 = vpack.c.b16 %v1628, %v1627
        %v1666 = vpack.c.b16 %v1630, %v1629
        %v1667 = vpack.c.b16 %v1632, %v1631
        %v1668 = vpack.c.b16 %v1634, %v1633
        %v1669 = vpack.c.b16 %v1636, %v1635
        %v1670 = vpack.c.b16 %v1638, %v1637
        %1703 = vmatpush.bf16.msra.mxu0 %v1646
        %1704 = vmatpush.bf16.msra.mxu0 %v1645
        %1705 = vmatpush.bf16.msra.mxu0 %v1644
        %1706 = vmatpush.bf16.msra.mxu0 %v1643
        %1707 = vmatpush.bf16.msra.mxu0 %v1642
        %1708 = vmatpush.bf16.msra.mxu0 %v1641
        %1709 = vmatpush.bf16.msra.mxu0 %v1640
        %1710 = vmatpush.bf16.msra.mxu0 %v1639
        %1711 = vmatmul.bf16.gmra.mxu0 %v1399
        %v1712 = vpop.f32.mrf.mxu0
        %v1713 = vadd.f32 0.0, %v1712
        %v1714 = vpop.f32.mrf.mxu0
        %v1715 = vadd.f32 0.0, %v1714
        %1716 = vmatmul.bf16.gmra.mxu0 %v1403
        %v1717 = vpop.f32.mrf.mxu0
        %v1718 = vadd.f32 0.0, %v1717
        %v1719 = vpop.f32.mrf.mxu0
        %v1720 = vadd.f32 0.0, %v1719
        %1721 = vmatmul.bf16.gmra.mxu0 %v1407
        %v1722 = vpop.f32.mrf.mxu0
        %v1723 = vadd.f32 0.0, %v1722
        %v1724 = vpop.f32.mrf.mxu0
        %v1725 = vadd.f32 0.0, %v1724
        %1726 = vmatmul.bf16.gmra.mxu0 %v1411
        %v1727 = vpop.f32.mrf.mxu0
        %v1728 = vadd.f32 0.0, %v1727
        %v1729 = vpop.f32.mrf.mxu0
        %v1730 = vadd.f32 0.0, %v1729
        %1731 = vmatmul.bf16.gmra.mxu0 %v1415
        %v1732 = vpop.f32.mrf.mxu0
        %v1733 = vadd.f32 0.0, %v1732
        %v1734 = vpop.f32.mrf.mxu0
        %v1735 = vadd.f32 0.0, %v1734
        %1736 = vmatmul.bf16.gmra.mxu0 %v1419
        %v1737 = vpop.f32.mrf.mxu0
        %v1738 = vadd.f32 0.0, %v1737
        %v1739 = vpop.f32.mrf.mxu0
        %v1740 = vadd.f32 0.0, %v1739
        %1741 = vmatmul.bf16.gmra.mxu0 %v1423
        %v1742 = vpop.f32.mrf.mxu0
        %v1743 = vadd.f32 0.0, %v1742
        %v1744 = vpop.f32.mrf.mxu0
        %v1745 = vadd.f32 0.0, %v1744
        %1746 = vmatmul.bf16.gmra.mxu0 %v1427
        %v1747 = vpop.f32.mrf.mxu0
        %v1748 = vadd.f32 0.0, %v1747
        %v1749 = vpop.f32.mrf.mxu0
        %v1750 = vadd.f32 0.0, %v1749
        %1751 = vmatmul.bf16.gmra.mxu0 %v1431
        %v1752 = vpop.f32.mrf.mxu0
        %v1753 = vadd.f32 0.0, %v1752
        %v1754 = vpop.f32.mrf.mxu0
        %v1755 = vadd.f32 0.0, %v1754
        %1756 = vmatmul.bf16.gmra.mxu0 %v1435
        %v1757 = vpop.f32.mrf.mxu0
        %v1758 = vadd.f32 0.0, %v1757
        %v1759 = vpop.f32.mrf.mxu0
        %v1760 = vadd.f32 0.0, %v1759
        %1761 = vmatmul.bf16.gmra.mxu0 %v1439
        %v1762 = vpop.f32.mrf.mxu0
        %v1763 = vadd.f32 0.0, %v1762
        %v1764 = vpop.f32.mrf.mxu0
        %v1765 = vadd.f32 0.0, %v1764
        %1766 = vmatmul.bf16.gmra.mxu0 %v1443
        %v1767 = vpop.f32.mrf.mxu0
        %v1768 = vadd.f32 0.0, %v1767
        %v1769 = vpop.f32.mrf.mxu0
        %v1770 = vadd.f32 0.0, %v1769
        %1771 = vmatmul.bf16.gmra.mxu0 %v1447
        %v1772 = vpop.f32.mrf.mxu0
        %v1773 = vadd.f32 0.0, %v1772
        %v1774 = vpop.f32.mrf.mxu0
        %v1775 = vadd.f32 0.0, %v1774
        %1776 = vmatmul.bf16.gmra.mxu0 %v1451
        %v1777 = vpop.f32.mrf.mxu0
        %v1778 = vadd.f32 0.0, %v1777
        %v1779 = vpop.f32.mrf.mxu0
        %v1780 = vadd.f32 0.0, %v1779
        %1781 = vdwg.mxu0
        %1782 = vmatpush.bf16.msra.mxu0 %v1654
        %1783 = vmatpush.bf16.msra.mxu0 %v1653
        %1784 = vmatpush.bf16.msra.mxu0 %v1652
        %1785 = vmatpush.bf16.msra.mxu0 %v1651
        %1786 = vmatpush.bf16.msra.mxu0 %v1650
        %1787 = vmatpush.bf16.msra.mxu0 %v1649
        %1788 = vmatpush.bf16.msra.mxu0 %v1648
        %1789 = vmatpush.bf16.msra.mxu0 %v1647
        %1790 = vmatmul.bf16.gmra.mxu0 %v1400
        %v1791 = vpop.f32.mrf.mxu0
        %v1792 = vadd.f32 %v1713, %v1791
        %v1793 = vpop.f32.mrf.mxu0
        %v1794 = vadd.f32 %v1715, %v1793
        %1795 = vmatmul.bf16.gmra.mxu0 %v1404
        %v1796 = vpop.f32.mrf.mxu0
        %v1797 = vadd.f32 %v1718, %v1796
        %v1798 = vpop.f32.mrf.mxu0
        %v1799 = vadd.f32 %v1720, %v1798
        %1800 = vmatmul.bf16.gmra.mxu0 %v1408
        %v1801 = vpop.f32.mrf.mxu0
        %v1802 = vadd.f32 %v1723, %v1801
        %v1803 = vpop.f32.mrf.mxu0
        %v1804 = vadd.f32 %v1725, %v1803
        %1805 = vmatmul.bf16.gmra.mxu0 %v1412
        %v1806 = vpop.f32.mrf.mxu0
        %v1807 = vadd.f32 %v1728, %v1806
        %v1808 = vpop.f32.mrf.mxu0
        %v1809 = vadd.f32 %v1730, %v1808
        %1810 = vmatmul.bf16.gmra.mxu0 %v1416
        %v1811 = vpop.f32.mrf.mxu0
        %v1812 = vadd.f32 %v1733, %v1811
        %v1813 = vpop.f32.mrf.mxu0
        %v1814 = vadd.f32 %v1735, %v1813
        %1815 = vmatmul.bf16.gmra.mxu0 %v1420
        %v1816 = vpop.f32.mrf.mxu0
        %v1817 = vadd.f32 %v1738, %v1816
        %v1818 = vpop.f32.mrf.mxu0
        %v1819 = vadd.f32 %v1740, %v1818
        %1820 = vmatmul.bf16.gmra.mxu0 %v1424
        %v1821 = vpop.f32.mrf.mxu0
        %v1822 = vadd.f32 %v1743, %v1821
        %v1823 = vpop.f32.mrf.mxu0
        %v1824 = vadd.f32 %v1745, %v1823
        %1825 = vmatmul.bf16.gmra.mxu0 %v1428
        %v1826 = vpop.f32.mrf.mxu0
        %v1827 = vadd.f32 %v1748, %v1826
        %v1828 = vpop.f32.mrf.mxu0
        %v1829 = vadd.f32 %v1750, %v1828
        %1830 = vmatmul.bf16.gmra.mxu0 %v1432
        %v1831 = vpop.f32.mrf.mxu0
        %v1832 = vadd.f32 %v1753, %v1831
        %v1833 = vpop.f32.mrf.mxu0
        %v1834 = vadd.f32 %v1755, %v1833
        %1835 = vmatmul.bf16.gmra.mxu0 %v1436
        %v1836 = vpop.f32.mrf.mxu0
        %v1837 = vadd.f32 %v1758, %v1836
        %v1838 = vpop.f32.mrf.mxu0
        %v1839 = vadd.f32 %v1760, %v1838
        %1840 = vmatmul.bf16.gmra.mxu0 %v1440
        %v1841 = vpop.f32.mrf.mxu0
        %v1842 = vadd.f32 %v1763, %v1841
        %v1843 = vpop.f32.mrf.mxu0
        %v1844 = vadd.f32 %v1765, %v1843
        %1845 = vmatmul.bf16.gmra.mxu0 %v1444
        %v1846 = vpop.f32.mrf.mxu0
        %v1847 = vadd.f32 %v1768, %v1846
        %v1848 = vpop.f32.mrf.mxu0
        %v1849 = vadd.f32 %v1770, %v1848
        %1850 = vmatmul.bf16.gmra.mxu0 %v1448
        %v1851 = vpop.f32.mrf.mxu0
        %v1852 = vadd.f32 %v1773, %v1851
        %v1853 = vpop.f32.mrf.mxu0
        %v1854 = vadd.f32 %v1775, %v1853
        %1855 = vmatmul.bf16.gmra.mxu0 %v1452
        %v1856 = vpop.f32.mrf.mxu0
        %v1857 = vadd.f32 %v1778, %v1856
        %v1858 = vpop.f32.mrf.mxu0
        %v1859 = vadd.f32 %v1780, %v1858
        %1860 = vdwg.mxu0
        %1861 = vmatpush.bf16.msra.mxu0 %v1662
        %1862 = vmatpush.bf16.msra.mxu0 %v1661
        %1863 = vmatpush.bf16.msra.mxu0 %v1660
        %1864 = vmatpush.bf16.msra.mxu0 %v1659
        %1865 = vmatpush.bf16.msra.mxu0 %v1658
        %1866 = vmatpush.bf16.msra.mxu0 %v1657
        %1867 = vmatpush.bf16.msra.mxu0 %v1656
        %1868 = vmatpush.bf16.msra.mxu0 %v1655
        %1869 = vmatmul.bf16.gmra.mxu0 %v1401
        %v1870 = vpop.f32.mrf.mxu0
        %v1871 = vadd.f32 %v1792, %v1870
        %v1872 = vpop.f32.mrf.mxu0
        %v1873 = vadd.f32 %v1794, %v1872
        %1874 = vmatmul.bf16.gmra.mxu0 %v1405
        %v1875 = vpop.f32.mrf.mxu0
        %v1876 = vadd.f32 %v1797, %v1875
        %v1877 = vpop.f32.mrf.mxu0
        %v1878 = vadd.f32 %v1799, %v1877
        %1879 = vmatmul.bf16.gmra.mxu0 %v1409
        %v1880 = vpop.f32.mrf.mxu0
        %v1881 = vadd.f32 %v1802, %v1880
        %v1882 = vpop.f32.mrf.mxu0
        %v1883 = vadd.f32 %v1804, %v1882
        %1884 = vmatmul.bf16.gmra.mxu0 %v1413
        %v1885 = vpop.f32.mrf.mxu0
        %v1886 = vadd.f32 %v1807, %v1885
        %v1887 = vpop.f32.mrf.mxu0
        %v1888 = vadd.f32 %v1809, %v1887
        %1889 = vmatmul.bf16.gmra.mxu0 %v1417
        %v1890 = vpop.f32.mrf.mxu0
        %v1891 = vadd.f32 %v1812, %v1890
        %v1892 = vpop.f32.mrf.mxu0
        %v1893 = vadd.f32 %v1814, %v1892
        %1894 = vmatmul.bf16.gmra.mxu0 %v1421
        %v1895 = vpop.f32.mrf.mxu0
        %v1896 = vadd.f32 %v1817, %v1895
        %v1897 = vpop.f32.mrf.mxu0
        %v1898 = vadd.f32 %v1819, %v1897
        %1899 = vmatmul.bf16.gmra.mxu0 %v1425
        %v1900 = vpop.f32.mrf.mxu0
        %v1901 = vadd.f32 %v1822, %v1900
        %v1902 = vpop.f32.mrf.mxu0
        %v1903 = vadd.f32 %v1824, %v1902
        %1904 = vmatmul.bf16.gmra.mxu0 %v1429
        %v1905 = vpop.f32.mrf.mxu0
        %v1906 = vadd.f32 %v1827, %v1905
        %v1907 = vpop.f32.mrf.mxu0
        %v1908 = vadd.f32 %v1829, %v1907
        %1909 = vmatmul.bf16.gmra.mxu0 %v1433
        %v1910 = vpop.f32.mrf.mxu0
        %v1911 = vadd.f32 %v1832, %v1910
        %v1912 = vpop.f32.mrf.mxu0
        %v1913 = vadd.f32 %v1834, %v1912
        %1914 = vmatmul.bf16.gmra.mxu0 %v1437
        %v1915 = vpop.f32.mrf.mxu0
        %v1916 = vadd.f32 %v1837, %v1915
        %v1917 = vpop.f32.mrf.mxu0
        %v1918 = vadd.f32 %v1839, %v1917
        %1919 = vmatmul.bf16.gmra.mxu0 %v1441
        %v1920 = vpop.f32.mrf.mxu0
        %v1921 = vadd.f32 %v1842, %v1920
        %v1922 = vpop.f32.mrf.mxu0
        %v1923 = vadd.f32 %v1844, %v1922
        %1924 = vmatmul.bf16.gmra.mxu0 %v1445
        %v1925 = vpop.f32.mrf.mxu0
        %v1926 = vadd.f32 %v1847, %v1925
        %v1927 = vpop.f32.mrf.mxu0
        %v1928 = vadd.f32 %v1849, %v1927
        %1929 = vmatmul.bf16.gmra.mxu0 %v1449
        %v1930 = vpop.f32.mrf.mxu0
        %v1931 = vadd.f32 %v1852, %v1930
        %v1932 = vpop.f32.mrf.mxu0
        %v1933 = vadd.f32 %v1854, %v1932
        %1934 = vmatmul.bf16.gmra.mxu0 %v1453
        %v1935 = vpop.f32.mrf.mxu0
        %v1936 = vadd.f32 %v1857, %v1935
        %v1937 = vpop.f32.mrf.mxu0
        %v1938 = vadd.f32 %v1859, %v1937
        %1939 = vdwg.mxu0
        %1940 = vmatpush.bf16.msra.mxu0 %v1670
        %1941 = vmatpush.bf16.msra.mxu0 %v1669
        %1942 = vmatpush.bf16.msra.mxu0 %v1668
        %1943 = vmatpush.bf16.msra.mxu0 %v1667
        %1944 = vmatpush.bf16.msra.mxu0 %v1666
        %1945 = vmatpush.bf16.msra.mxu0 %v1665
        %1946 = vmatpush.bf16.msra.mxu0 %v1664
        %1947 = vmatpush.bf16.msra.mxu0 %v1663
        %1948 = vmatmul.bf16.gmra.mxu0 %v1402
        %v1949 = vpop.f32.mrf.mxu0
        %v1950 = vadd.f32 %v1871, %v1949
        %v1951 = vpop.f32.mrf.mxu0
        %v1952 = vadd.f32 %v1873, %v1951
        %1953 = vmatmul.bf16.gmra.mxu0 %v1406
        %v1954 = vpop.f32.mrf.mxu0
        %v1955 = vadd.f32 %v1876, %v1954
        %v1956 = vpop.f32.mrf.mxu0
        %v1957 = vadd.f32 %v1878, %v1956
        %1958 = vmatmul.bf16.gmra.mxu0 %v1410
        %v1959 = vpop.f32.mrf.mxu0
        %v1960 = vadd.f32 %v1881, %v1959
        %v1961 = vpop.f32.mrf.mxu0
        %v1962 = vadd.f32 %v1883, %v1961
        %1963 = vmatmul.bf16.gmra.mxu0 %v1414
        %v1964 = vpop.f32.mrf.mxu0
        %v1965 = vadd.f32 %v1886, %v1964
        %v1966 = vpop.f32.mrf.mxu0
        %v1967 = vadd.f32 %v1888, %v1966
        %1968 = vmatmul.bf16.gmra.mxu0 %v1418
        %v1969 = vpop.f32.mrf.mxu0
        %v1970 = vadd.f32 %v1891, %v1969
        %v1971 = vpop.f32.mrf.mxu0
        %v1972 = vadd.f32 %v1893, %v1971
        %1973 = vmatmul.bf16.gmra.mxu0 %v1422
        %v1974 = vpop.f32.mrf.mxu0
        %v1975 = vadd.f32 %v1896, %v1974
        %v1976 = vpop.f32.mrf.mxu0
        %v1977 = vadd.f32 %v1898, %v1976
        %1978 = vmatmul.bf16.gmra.mxu0 %v1426
        %v1979 = vpop.f32.mrf.mxu0
        %v1980 = vadd.f32 %v1901, %v1979
        %v1981 = vpop.f32.mrf.mxu0
        %v1982 = vadd.f32 %v1903, %v1981
        %1983 = vmatmul.bf16.gmra.mxu0 %v1430
        %v1984 = vpop.f32.mrf.mxu0
        %v1985 = vadd.f32 %v1906, %v1984
        %v1986 = vpop.f32.mrf.mxu0
        %v1987 = vadd.f32 %v1908, %v1986
        %1988 = vmatmul.bf16.gmra.mxu0 %v1434
        %v1989 = vpop.f32.mrf.mxu0
        %v1990 = vadd.f32 %v1911, %v1989
        %v1991 = vpop.f32.mrf.mxu0
        %v1992 = vadd.f32 %v1913, %v1991
        %1993 = vmatmul.bf16.gmra.mxu0 %v1438
        %v1994 = vpop.f32.mrf.mxu0
        %v1995 = vadd.f32 %v1916, %v1994
        %v1996 = vpop.f32.mrf.mxu0
        %v1997 = vadd.f32 %v1918, %v1996
        %1998 = vmatmul.bf16.gmra.mxu0 %v1442
        %v1999 = vpop.f32.mrf.mxu0
        %v2000 = vadd.f32 %v1921, %v1999
        %v2001 = vpop.f32.mrf.mxu0
        %v2002 = vadd.f32 %v1923, %v2001
        %2003 = vmatmul.bf16.gmra.mxu0 %v1446
        %v2004 = vpop.f32.mrf.mxu0
        %v2005 = vadd.f32 %v1926, %v2004
        %v2006 = vpop.f32.mrf.mxu0
        %v2007 = vadd.f32 %v1928, %v2006
        %2008 = vmatmul.bf16.gmra.mxu0 %v1450
        %v2009 = vpop.f32.mrf.mxu0
        %v2010 = vadd.f32 %v1931, %v2009
        %v2011 = vpop.f32.mrf.mxu0
        %v2012 = vadd.f32 %v1933, %v2011
        %2013 = vmatmul.bf16.gmra.mxu0 %v1454
        %v2014 = vpop.f32.mrf.mxu0
        %v2015 = vadd.f32 %v1936, %v2014
        %v2016 = vpop.f32.mrf.mxu0
        %v2017 = vadd.f32 %v1938, %v2016
        %2018 = vdwg.mxu0
        %v2019 = vpack.c.bf16 %v1952, %v1950
        %v2020 = vpack.c.bf16 %v1957, %v1955
        %v2021 = vpack.c.bf16 %v1962, %v1960
        %v2022 = vpack.c.bf16 %v1967, %v1965
        %v2023 = vpack.c.bf16 %v1972, %v1970
        %v2024 = vpack.c.bf16 %v1977, %v1975
        %v2025 = vpack.c.bf16 %v1982, %v1980
        %v2026 = vpack.c.bf16 %v1987, %v1985
        %v2027 = vpack.c.bf16 %v1992, %v1990
        %v2028 = vpack.c.bf16 %v1997, %v1995
        %v2029 = vpack.c.bf16 %v2002, %v2000
        %v2030 = vpack.c.bf16 %v2007, %v2005
        %v2031 = vpack.c.bf16 %v2012, %v2010
        %v2032 = vpack.c.bf16 %v2017, %v2015
        %v2033 = vpack.c.bf16 %v1100, %v1098
        %v2034 = vpack.c.bf16 %v1105, %v1103
        %v2035 = vpack.c.bf16 %v1110, %v1108
        %v2036 = vpack.c.bf16 %v1115, %v1113
        %v2037 = vpack.c.bf16 %v1120, %v1118
        %v2038 = vpack.c.bf16 %v1125, %v1123
        %v2039 = vpack.c.bf16 %v1130, %v1128
        %v2040 = vpack.c.bf16 %v1135, %v1133
        %v2041 = vpack.c.bf16 %v1140, %v1138
        %v2042 = vpack.c.bf16 %v1145, %v1143
        %v2043 = vpack.c.bf16 %v1150, %v1148
        %v2044 = vpack.c.bf16 %v1155, %v1153
        %v2045 = vpack.c.bf16 %v1160, %v1158
        %v2046 = vpack.c.bf16 %v1165, %v1163
        %v2047 = vld [vmem:[%s5] sm:$0xf]
        %v2048 = vld [vmem:[%s5 + $0x4] sm:$0xf]
        %v2049 = vld [vmem:[%s5 + $0x8] sm:$0xf]
        %v2050 = vld [vmem:[%s5 + $0xc] sm:$0xf]
        %v2051 = vld [vmem:[%s5 + $0x10] sm:$0xf]
        %v2052 = vld [vmem:[%s5 + $0x14] sm:$0xf]
        %v2053 = vld [vmem:[%s5 + $0x18] sm:$0xf]
        %v2054 = vld [vmem:[%s5 + $0x1c] sm:$0xf]
        %v2055 = vld [vmem:[%s5 + $0x20] sm:$0xf]
        %v2056 = vld [vmem:[%s5 + $0x24] sm:$0xf]
        %v2057 = vld [vmem:[%s5 + $0x28] sm:$0xf]
        %v2058 = vld [vmem:[%s5 + $0x2c] sm:$0xf]
        %v2059 = vld [vmem:[%s5 + $0x30] sm:$0xf]
        %v2060 = vld [vmem:[%s5 + $0x34] sm:$0xf]
        %v2061 = vld [vmem:[%s5 + $0x38] sm:$0xf]
        %v2062 = vld [vmem:[%s5 + $0x3c] sm:$0xf]
        %v2079 = vunpack.c.l.b16 %v2047
        %v2080 = vunpack.c.l.b16 %v2048
        %v2081 = vunpack.c.l.b16 %v2049
        %v2082 = vunpack.c.l.b16 %v2050
        %v2083 = vunpack.c.l.b16 %v2051
        %v2084 = vunpack.c.l.b16 %v2052
        %v2085 = vunpack.c.l.b16 %v2053
        %v2086 = vunpack.c.l.b16 %v2054
        %v2087 = vunpack.c.l.b16 %v2055
        %v2088 = vunpack.c.l.b16 %v2056
        %v2089 = vunpack.c.l.b16 %v2057
        %v2090 = vunpack.c.l.b16 %v2058
        %v2091 = vunpack.c.l.b16 %v2059
        %v2092 = vunpack.c.l.b16 %v2060
        %v2093 = vunpack.c.l.b16 %v2061
        %v2094 = vunpack.c.l.b16 %v2062
        %v2095 = vpack.c.b16 %v2080, %v2079
        %v2096 = vpack.c.b16 %v2082, %v2081
        %v2097 = vpack.c.b16 %v2084, %v2083
        %v2098 = vpack.c.b16 %v2086, %v2085
        %v2099 = vpack.c.b16 %v2088, %v2087
        %v2100 = vpack.c.b16 %v2090, %v2089
        %v2101 = vpack.c.b16 %v2092, %v2091
        %v2102 = vpack.c.b16 %v2094, %v2093
        %2111 = vmatpush.bf16.msra.mxu0 %v2102
        %2112 = vmatpush.bf16.msra.mxu0 %v2101
        %2113 = vmatpush.bf16.msra.mxu0 %v2100
        %2114 = vmatpush.bf16.msra.mxu0 %v2099
        %2115 = vmatpush.bf16.msra.mxu0 %v2098
        %2116 = vmatpush.bf16.msra.mxu0 %v2097
        %2117 = vmatpush.bf16.msra.mxu0 %v2096
        %2118 = vmatpush.bf16.msra.mxu0 %v2095
        %2119 = vmatmul.bf16.gmra.mxu0 %v2033
        %v2120 = vpop.f32.mrf.mxu0
        %v2121 = vadd.f32 0.0, %v2120
        %v2122 = vpop.f32.mrf.mxu0
        %v2123 = vadd.f32 0.0, %v2122
        %2124 = vmatmul.bf16.gmra.mxu0 %v2034
        %v2125 = vpop.f32.mrf.mxu0
        %v2126 = vadd.f32 0.0, %v2125
        %v2127 = vpop.f32.mrf.mxu0
        %v2128 = vadd.f32 0.0, %v2127
        %2129 = vmatmul.bf16.gmra.mxu0 %v2035
        %v2130 = vpop.f32.mrf.mxu0
        %v2131 = vadd.f32 0.0, %v2130
        %v2132 = vpop.f32.mrf.mxu0
        %v2133 = vadd.f32 0.0, %v2132
        %2134 = vmatmul.bf16.gmra.mxu0 %v2036
        %v2135 = vpop.f32.mrf.mxu0
        %v2136 = vadd.f32 0.0, %v2135
        %v2137 = vpop.f32.mrf.mxu0
        %v2138 = vadd.f32 0.0, %v2137
        %2139 = vmatmul.bf16.gmra.mxu0 %v2037
        %v2140 = vpop.f32.mrf.mxu0
        %v2141 = vadd.f32 0.0, %v2140
        %v2142 = vpop.f32.mrf.mxu0
        %v2143 = vadd.f32 0.0, %v2142
        %2144 = vmatmul.bf16.gmra.mxu0 %v2038
        %v2145 = vpop.f32.mrf.mxu0
        %v2146 = vadd.f32 0.0, %v2145
        %v2147 = vpop.f32.mrf.mxu0
        %v2148 = vadd.f32 0.0, %v2147
        %2149 = vmatmul.bf16.gmra.mxu0 %v2039
        %v2150 = vpop.f32.mrf.mxu0
        %v2151 = vadd.f32 0.0, %v2150
        %v2152 = vpop.f32.mrf.mxu0
        %v2153 = vadd.f32 0.0, %v2152
        %2154 = vmatmul.bf16.gmra.mxu0 %v2040
        %v2155 = vpop.f32.mrf.mxu0
        %v2156 = vadd.f32 0.0, %v2155
        %v2157 = vpop.f32.mrf.mxu0
        %v2158 = vadd.f32 0.0, %v2157
        %2159 = vmatmul.bf16.gmra.mxu0 %v2041
        %v2160 = vpop.f32.mrf.mxu0
        %v2161 = vadd.f32 0.0, %v2160
        %v2162 = vpop.f32.mrf.mxu0
        %v2163 = vadd.f32 0.0, %v2162
        %2164 = vmatmul.bf16.gmra.mxu0 %v2042
        %v2165 = vpop.f32.mrf.mxu0
        %v2166 = vadd.f32 0.0, %v2165
        %v2167 = vpop.f32.mrf.mxu0
        %v2168 = vadd.f32 0.0, %v2167
        %2169 = vmatmul.bf16.gmra.mxu0 %v2043
        %v2170 = vpop.f32.mrf.mxu0
        %v2171 = vadd.f32 0.0, %v2170
        %v2172 = vpop.f32.mrf.mxu0
        %v2173 = vadd.f32 0.0, %v2172
        %2174 = vmatmul.bf16.gmra.mxu0 %v2044
        %v2175 = vpop.f32.mrf.mxu0
        %v2176 = vadd.f32 0.0, %v2175
        %v2177 = vpop.f32.mrf.mxu0
        %v2178 = vadd.f32 0.0, %v2177
        %2179 = vmatmul.bf16.gmra.mxu0 %v2045
        %v2180 = vpop.f32.mrf.mxu0
        %v2181 = vadd.f32 0.0, %v2180
        %v2182 = vpop.f32.mrf.mxu0
        %v2183 = vadd.f32 0.0, %v2182
        %2184 = vmatmul.bf16.gmra.mxu0 %v2046
        %v2185 = vpop.f32.mrf.mxu0
        %v2186 = vadd.f32 0.0, %v2185
        %v2187 = vpop.f32.mrf.mxu0
        %v2188 = vadd.f32 0.0, %v2187
        %2189 = vdwg.mxu0
        %v2190 = vld [vmem:[#allocation11] sm:$0xf]
        %v2191 = vld [vmem:[#allocation11 + $0x4] sm:$0xf]
        %v2192 = vld [vmem:[#allocation11 + $0x8] sm:$0xf]
        %v2193 = vld [vmem:[#allocation11 + $0xc] sm:$0xf]
        %v2194 = vld [vmem:[#allocation11 + $0x10] sm:$0xf]
        %v2195 = vld [vmem:[#allocation11 + $0x14] sm:$0xf]
        %v2196 = vld [vmem:[#allocation11 + $0x18] sm:$0xf]
        %v2197 = vld [vmem:[#allocation11 + $0x1c] sm:$0xf]
        %v2198 = vld [vmem:[#allocation11 + $0x20] sm:$0xf]
        %v2199 = vld [vmem:[#allocation11 + $0x24] sm:$0xf]
        %v2200 = vld [vmem:[#allocation11 + $0x28] sm:$0xf]
        %v2201 = vld [vmem:[#allocation11 + $0x2c] sm:$0xf]
        %v2202 = vld [vmem:[#allocation11 + $0x30] sm:$0xf]
        %v2203 = vld [vmem:[#allocation11 + $0x34] sm:$0xf]
        %v2204 = vld [vmem:[#allocation11 + $0x38] sm:$0xf]
        %v2205 = vld [vmem:[#allocation11 + $0x3c] sm:$0xf]
        %v2222 = vunpack.c.l.b16 %v2190
        %v2223 = vunpack.c.l.b16 %v2191
        %v2224 = vunpack.c.l.b16 %v2192
        %v2225 = vunpack.c.l.b16 %v2193
        %v2226 = vunpack.c.l.b16 %v2194
        %v2227 = vunpack.c.l.b16 %v2195
        %v2228 = vunpack.c.l.b16 %v2196
        %v2229 = vunpack.c.l.b16 %v2197
        %v2230 = vunpack.c.l.b16 %v2198
        %v2231 = vunpack.c.l.b16 %v2199
        %v2232 = vunpack.c.l.b16 %v2200
        %v2233 = vunpack.c.l.b16 %v2201
        %v2234 = vunpack.c.l.b16 %v2202
        %v2235 = vunpack.c.l.b16 %v2203
        %v2236 = vunpack.c.l.b16 %v2204
        %v2237 = vunpack.c.l.b16 %v2205
        %v2238 = vpack.c.b16 %v2223, %v2222
        %v2239 = vpack.c.b16 %v2225, %v2224
        %v2240 = vpack.c.b16 %v2227, %v2226
        %v2241 = vpack.c.b16 %v2229, %v2228
        %v2242 = vpack.c.b16 %v2231, %v2230
        %v2243 = vpack.c.b16 %v2233, %v2232
        %v2244 = vpack.c.b16 %v2235, %v2234
        %v2245 = vpack.c.b16 %v2237, %v2236
        %2254 = vmatpush.bf16.msra.mxu0 %v2245
        %2255 = vmatpush.bf16.msra.mxu0 %v2244
        %2256 = vmatpush.bf16.msra.mxu0 %v2243
        %2257 = vmatpush.bf16.msra.mxu0 %v2242
        %2258 = vmatpush.bf16.msra.mxu0 %v2241
        %2259 = vmatpush.bf16.msra.mxu0 %v2240
        %2260 = vmatpush.bf16.msra.mxu0 %v2239
        %2261 = vmatpush.bf16.msra.mxu0 %v2238
        %2262 = vmatmul.bf16.gmra.mxu0 %v2019
        %v2263 = vpop.f32.mrf.mxu0
        %v2264 = vadd.f32 0.0, %v2263
        %v2265 = vpop.f32.mrf.mxu0
        %v2266 = vadd.f32 0.0, %v2265
        %2267 = vmatmul.bf16.gmra.mxu0 %v2020
        %v2268 = vpop.f32.mrf.mxu0
        %v2269 = vadd.f32 0.0, %v2268
        %v2270 = vpop.f32.mrf.mxu0
        %v2271 = vadd.f32 0.0, %v2270
        %2272 = vmatmul.bf16.gmra.mxu0 %v2021
        %v2273 = vpop.f32.mrf.mxu0
        %v2274 = vadd.f32 0.0, %v2273
        %v2275 = vpop.f32.mrf.mxu0
        %v2276 = vadd.f32 0.0, %v2275
        %2277 = vmatmul.bf16.gmra.mxu0 %v2022
        %v2278 = vpop.f32.mrf.mxu0
        %v2279 = vadd.f32 0.0, %v2278
        %v2280 = vpop.f32.mrf.mxu0
        %v2281 = vadd.f32 0.0, %v2280
        %2282 = vmatmul.bf16.gmra.mxu0 %v2023
        %v2283 = vpop.f32.mrf.mxu0
        %v2284 = vadd.f32 0.0, %v2283
        %v2285 = vpop.f32.mrf.mxu0
        %v2286 = vadd.f32 0.0, %v2285
        %2287 = vmatmul.bf16.gmra.mxu0 %v2024
        %v2288 = vpop.f32.mrf.mxu0
        %v2289 = vadd.f32 0.0, %v2288
        %v2290 = vpop.f32.mrf.mxu0
        %v2291 = vadd.f32 0.0, %v2290
        %2292 = vmatmul.bf16.gmra.mxu0 %v2025
        %v2293 = vpop.f32.mrf.mxu0
        %v2294 = vadd.f32 0.0, %v2293
        %v2295 = vpop.f32.mrf.mxu0
        %v2296 = vadd.f32 0.0, %v2295
        %2297 = vmatmul.bf16.gmra.mxu0 %v2026
        %v2298 = vpop.f32.mrf.mxu0
        %v2299 = vadd.f32 0.0, %v2298
        %v2300 = vpop.f32.mrf.mxu0
        %v2301 = vadd.f32 0.0, %v2300
        %2302 = vmatmul.bf16.gmra.mxu0 %v2027
        %v2303 = vpop.f32.mrf.mxu0
        %v2304 = vadd.f32 0.0, %v2303
        %v2305 = vpop.f32.mrf.mxu0
        %v2306 = vadd.f32 0.0, %v2305
        %2307 = vmatmul.bf16.gmra.mxu0 %v2028
        %v2308 = vpop.f32.mrf.mxu0
        %v2309 = vadd.f32 0.0, %v2308
        %v2310 = vpop.f32.mrf.mxu0
        %v2311 = vadd.f32 0.0, %v2310
        %2312 = vmatmul.bf16.gmra.mxu0 %v2029
        %v2313 = vpop.f32.mrf.mxu0
        %v2314 = vadd.f32 0.0, %v2313
        %v2315 = vpop.f32.mrf.mxu0
        %v2316 = vadd.f32 0.0, %v2315
        %2317 = vmatmul.bf16.gmra.mxu0 %v2030
        %v2318 = vpop.f32.mrf.mxu0
        %v2319 = vadd.f32 0.0, %v2318
        %v2320 = vpop.f32.mrf.mxu0
        %v2321 = vadd.f32 0.0, %v2320
        %2322 = vmatmul.bf16.gmra.mxu0 %v2031
        %v2323 = vpop.f32.mrf.mxu0
        %v2324 = vadd.f32 0.0, %v2323
        %v2325 = vpop.f32.mrf.mxu0
        %v2326 = vadd.f32 0.0, %v2325
        %2327 = vmatmul.bf16.gmra.mxu0 %v2032
        %v2328 = vpop.f32.mrf.mxu0
        %v2329 = vadd.f32 0.0, %v2328
        %v2330 = vpop.f32.mrf.mxu0
        %v2331 = vadd.f32 0.0, %v2330
        %2332 = vdwg.mxu0
        %v2333 = vld [vmem:[#allocation12] sm:$0xf]
        %v2334 = vld [vmem:[#allocation12 + $0x4] sm:$0xf]
        %v2335 = vld [vmem:[#allocation12 + $0x8] sm:$0xf]
        %v2336 = vld [vmem:[#allocation12 + $0xc] sm:$0xf]
        %v2337 = vld [vmem:[#allocation12 + $0x10] sm:$0xf]
        %v2338 = vld [vmem:[#allocation12 + $0x14] sm:$0xf]
        %v2339 = vld [vmem:[#allocation12 + $0x18] sm:$0xf]
        %v2340 = vld [vmem:[#allocation12 + $0x1c] sm:$0xf]
        %v2341 = vld [vmem:[#allocation12 + $0x20] sm:$0xf]
        %v2342 = vld [vmem:[#allocation12 + $0x24] sm:$0xf]
        %v2343 = vld [vmem:[#allocation12 + $0x28] sm:$0xf]
        %v2344 = vld [vmem:[#allocation12 + $0x2c] sm:$0xf]
        %v2345 = vld [vmem:[#allocation12 + $0x30] sm:$0xf]
        %v2346 = vld [vmem:[#allocation12 + $0x34] sm:$0xf]
        %v2347 = vld [vmem:[#allocation12 + $0x38] sm:$0xf]
        %v2348 = vld [vmem:[#allocation12 + $0x3c] sm:$0xf]
        %v2365 = vunpack.c.l.b16 %v2333
        %v2366 = vunpack.c.l.b16 %v2334
        %v2367 = vunpack.c.l.b16 %v2335
        %v2368 = vunpack.c.l.b16 %v2336
        %v2369 = vunpack.c.l.b16 %v2337
        %v2370 = vunpack.c.l.b16 %v2338
        %v2371 = vunpack.c.l.b16 %v2339
        %v2372 = vunpack.c.l.b16 %v2340
        %v2373 = vunpack.c.l.b16 %v2341
        %v2374 = vunpack.c.l.b16 %v2342
        %v2375 = vunpack.c.l.b16 %v2343
        %v2376 = vunpack.c.l.b16 %v2344
        %v2377 = vunpack.c.l.b16 %v2345
        %v2378 = vunpack.c.l.b16 %v2346
        %v2379 = vunpack.c.l.b16 %v2347
        %v2380 = vunpack.c.l.b16 %v2348
        %v2381 = vpack.c.b16 %v2366, %v2365
        %v2382 = vpack.c.b16 %v2368, %v2367
        %v2383 = vpack.c.b16 %v2370, %v2369
        %v2384 = vpack.c.b16 %v2372, %v2371
        %v2385 = vpack.c.b16 %v2374, %v2373
        %v2386 = vpack.c.b16 %v2376, %v2375
        %v2387 = vpack.c.b16 %v2378, %v2377
        %v2388 = vpack.c.b16 %v2380, %v2379
        %2397 = vmatpush.bf16.msra.mxu0 %v2388
        %2398 = vmatpush.bf16.msra.mxu0 %v2387
        %2399 = vmatpush.bf16.msra.mxu0 %v2386
        %2400 = vmatpush.bf16.msra.mxu0 %v2385
        %2401 = vmatpush.bf16.msra.mxu0 %v2384
        %2402 = vmatpush.bf16.msra.mxu0 %v2383
        %2403 = vmatpush.bf16.msra.mxu0 %v2382
        %2404 = vmatpush.bf16.msra.mxu0 %v2381
        %2405 = vmatmul.bf16.gmra.mxu0 %v2019
        %v2406 = vpop.f32.mrf.mxu0
        %v2407 = vadd.f32 0.0, %v2406
        %v2408 = vpop.f32.mrf.mxu0
        %v2409 = vadd.f32 0.0, %v2408
        %2410 = vmatmul.bf16.gmra.mxu0 %v2020
        %v2411 = vpop.f32.mrf.mxu0
        %v2412 = vadd.f32 0.0, %v2411
        %v2413 = vpop.f32.mrf.mxu0
        %v2414 = vadd.f32 0.0, %v2413
        %2415 = vmatmul.bf16.gmra.mxu0 %v2021
        %v2416 = vpop.f32.mrf.mxu0
        %v2417 = vadd.f32 0.0, %v2416
        %v2418 = vpop.f32.mrf.mxu0
        %v2419 = vadd.f32 0.0, %v2418
        %2420 = vmatmul.bf16.gmra.mxu0 %v2022
        %v2421 = vpop.f32.mrf.mxu0
        %v2422 = vadd.f32 0.0, %v2421
        %v2423 = vpop.f32.mrf.mxu0
        %v2424 = vadd.f32 0.0, %v2423
        %2425 = vmatmul.bf16.gmra.mxu0 %v2023
        %v2426 = vpop.f32.mrf.mxu0
        %v2427 = vadd.f32 0.0, %v2426
        %v2428 = vpop.f32.mrf.mxu0
        %v2429 = vadd.f32 0.0, %v2428
        %2430 = vmatmul.bf16.gmra.mxu0 %v2024
        %v2431 = vpop.f32.mrf.mxu0
        %v2432 = vadd.f32 0.0, %v2431
        %v2433 = vpop.f32.mrf.mxu0
        %v2434 = vadd.f32 0.0, %v2433
        %2435 = vmatmul.bf16.gmra.mxu0 %v2025
        %v2436 = vpop.f32.mrf.mxu0
        %v2437 = vadd.f32 0.0, %v2436
        %v2438 = vpop.f32.mrf.mxu0
        %v2439 = vadd.f32 0.0, %v2438
        %2440 = vmatmul.bf16.gmra.mxu0 %v2026
        %v2441 = vpop.f32.mrf.mxu0
        %v2442 = vadd.f32 0.0, %v2441
        %v2443 = vpop.f32.mrf.mxu0
        %v2444 = vadd.f32 0.0, %v2443
        %2445 = vmatmul.bf16.gmra.mxu0 %v2027
        %v2446 = vpop.f32.mrf.mxu0
        %v2447 = vadd.f32 0.0, %v2446
        %v2448 = vpop.f32.mrf.mxu0
        %v2449 = vadd.f32 0.0, %v2448
        %2450 = vmatmul.bf16.gmra.mxu0 %v2028
        %v2451 = vpop.f32.mrf.mxu0
        %v2452 = vadd.f32 0.0, %v2451
        %v2453 = vpop.f32.mrf.mxu0
        %v2454 = vadd.f32 0.0, %v2453
        %2455 = vmatmul.bf16.gmra.mxu0 %v2029
        %v2456 = vpop.f32.mrf.mxu0
        %v2457 = vadd.f32 0.0, %v2456
        %v2458 = vpop.f32.mrf.mxu0
        %v2459 = vadd.f32 0.0, %v2458
        %2460 = vmatmul.bf16.gmra.mxu0 %v2030
        %v2461 = vpop.f32.mrf.mxu0
        %v2462 = vadd.f32 0.0, %v2461
        %v2463 = vpop.f32.mrf.mxu0
        %v2464 = vadd.f32 0.0, %v2463
        %2465 = vmatmul.bf16.gmra.mxu0 %v2031
        %v2466 = vpop.f32.mrf.mxu0
        %v2467 = vadd.f32 0.0, %v2466
        %v2468 = vpop.f32.mrf.mxu0
        %v2469 = vadd.f32 0.0, %v2468
        %2470 = vmatmul.bf16.gmra.mxu0 %v2032
        %v2471 = vpop.f32.mrf.mxu0
        %v2472 = vadd.f32 0.0, %v2471
        %v2473 = vpop.f32.mrf.mxu0
        %v2474 = vadd.f32 0.0, %v2473
        %2475 = vdwg.mxu0
        %v2476 = vpack.c.bf16 %v2121, %v2121
        %v2477 = vpack.c.bf16 %v2123, %v2123
        %v2478 = vpack.c.bf16 %v2126, %v2126
        %v2479 = vpack.c.bf16 %v2128, %v2128
        %v2480 = vpack.c.bf16 %v2131, %v2131
        %v2481 = vpack.c.bf16 %v2133, %v2133
        %v2482 = vpack.c.bf16 %v2136, %v2136
        %v2483 = vpack.c.bf16 %v2138, %v2138
        %v2484 = vpack.c.bf16 %v2141, %v2141
        %v2485 = vpack.c.bf16 %v2143, %v2143
        %v2486 = vpack.c.bf16 %v2146, %v2146
        %v2487 = vpack.c.bf16 %v2148, %v2148
        %v2488 = vpack.c.bf16 %v2151, %v2151
        %v2489 = vpack.c.bf16 %v2153, %v2153
        %v2490 = vpack.c.bf16 %v2156, %v2156
        %v2491 = vpack.c.bf16 %v2158, %v2158
        %v2492 = vpack.c.bf16 %v2161, %v2161
        %v2493 = vpack.c.bf16 %v2163, %v2163
        %v2494 = vpack.c.bf16 %v2166, %v2166
        %v2495 = vpack.c.bf16 %v2168, %v2168
        %v2496 = vpack.c.bf16 %v2171, %v2171
        %v2497 = vpack.c.bf16 %v2173, %v2173
        %v2498 = vpack.c.bf16 %v2176, %v2176
        %v2499 = vpack.c.bf16 %v2178, %v2178
        %v2500 = vpack.c.bf16 %v2181, %v2181
        %v2501 = vpack.c.bf16 %v2183, %v2183
        %v2502 = vpack.c.bf16 %v2186, %v2186
        %v2503 = vpack.c.bf16 %v2188, %v2188
        %v2504 = vpack.c.bf16 %v2264, %v2264
        %v2505 = vpack.c.bf16 %v2266, %v2266
        %v2506 = vpack.c.bf16 %v2269, %v2269
        %v2507 = vpack.c.bf16 %v2271, %v2271
        %v2508 = vpack.c.bf16 %v2274, %v2274
        %v2509 = vpack.c.bf16 %v2276, %v2276
        %v2510 = vpack.c.bf16 %v2279, %v2279
        %v2511 = vpack.c.bf16 %v2281, %v2281
        %v2512 = vpack.c.bf16 %v2284, %v2284
        %v2513 = vpack.c.bf16 %v2286, %v2286
        %v2514 = vpack.c.bf16 %v2289, %v2289
        %v2515 = vpack.c.bf16 %v2291, %v2291
        %v2516 = vpack.c.bf16 %v2294, %v2294
        %v2517 = vpack.c.bf16 %v2296, %v2296
        %v2518 = vpack.c.bf16 %v2299, %v2299
        %v2519 = vpack.c.bf16 %v2301, %v2301
        %v2520 = vpack.c.bf16 %v2304, %v2304
        %v2521 = vpack.c.bf16 %v2306, %v2306
        %v2522 = vpack.c.bf16 %v2309, %v2309
        %v2523 = vpack.c.bf16 %v2311, %v2311
        %v2524 = vpack.c.bf16 %v2314, %v2314
        %v2525 = vpack.c.bf16 %v2316, %v2316
        %v2526 = vpack.c.bf16 %v2319, %v2319
        %v2527 = vpack.c.bf16 %v2321, %v2321
        %v2528 = vpack.c.bf16 %v2324, %v2324
        %v2529 = vpack.c.bf16 %v2326, %v2326
        %v2530 = vpack.c.bf16 %v2329, %v2329
        %v2531 = vpack.c.bf16 %v2331, %v2331
        %v2532 = vpack.c.bf16 %v2407, %v2407
        %v2533 = vpack.c.bf16 %v2409, %v2409
        %v2534 = vpack.c.bf16 %v2412, %v2412
        %v2535 = vpack.c.bf16 %v2414, %v2414
        %v2536 = vpack.c.bf16 %v2417, %v2417
        %v2537 = vpack.c.bf16 %v2419, %v2419
        %v2538 = vpack.c.bf16 %v2422, %v2422
        %v2539 = vpack.c.bf16 %v2424, %v2424
        %v2540 = vpack.c.bf16 %v2427, %v2427
        %v2541 = vpack.c.bf16 %v2429, %v2429
        %v2542 = vpack.c.bf16 %v2432, %v2432
        %v2543 = vpack.c.bf16 %v2434, %v2434
        %v2544 = vpack.c.bf16 %v2437, %v2437
        %v2545 = vpack.c.bf16 %v2439, %v2439
        %v2546 = vpack.c.bf16 %v2442, %v2442
        %v2547 = vpack.c.bf16 %v2444, %v2444
        %v2548 = vpack.c.bf16 %v2447, %v2447
        %v2549 = vpack.c.bf16 %v2449, %v2449
        %v2550 = vpack.c.bf16 %v2452, %v2452
        %v2551 = vpack.c.bf16 %v2454, %v2454
        %v2552 = vpack.c.bf16 %v2457, %v2457
        %v2553 = vpack.c.bf16 %v2459, %v2459
        %v2554 = vpack.c.bf16 %v2462, %v2462
        %v2555 = vpack.c.bf16 %v2464, %v2464
        %v2556 = vpack.c.bf16 %v2467, %v2467
        %v2557 = vpack.c.bf16 %v2469, %v2469
        %v2558 = vpack.c.bf16 %v2472, %v2472
        %v2559 = vpack.c.bf16 %v2474, %v2474
        %v2567 = vunpack.c.l.b16 %v2476
        %v2568 = vunpack.c.l.b16 %v2477
        %v2569 = vunpack.c.l.b16 %v2478
        %v2570 = vunpack.c.l.b16 %v2479
        %v2571 = vunpack.c.l.b16 %v2480
        %v2572 = vunpack.c.l.b16 %v2481
        %v2573 = vunpack.c.l.b16 %v2482
        %v2574 = vpack.c.b16 %v2568, %v2567
        %v2575 = vpack.c.b16 %v2570, %v2569
        %v2576 = vpack.c.b16 %v2572, %v2571
        %v2577 = vpack.c.b16 %v2573, %v2573
        %v2589 = vunpack.c.l.b16 %v2504
        %v2590 = vunpack.c.l.b16 %v2505
        %v2591 = vunpack.c.l.b16 %v2506
        %v2592 = vunpack.c.l.b16 %v2507
        %v2593 = vunpack.c.l.b16 %v2508
        %v2594 = vunpack.c.l.b16 %v2509
        %v2595 = vunpack.c.l.b16 %v2510
        %v2596 = vpack.c.b16 %v2590, %v2589
        %v2597 = vpack.c.b16 %v2592, %v2591
        %v2598 = vpack.c.b16 %v2594, %v2593
        %v2599 = vpack.c.b16 %v2595, %v2595
        %2604 = vmatpush.bf16.xpose.msra.mxu0 0
        %2605 = vmatpush.bf16.xpose.msra.mxu0 0
        %2606 = vmatpush.bf16.xpose.msra.mxu0 0
        %2607 = vmatpush.bf16.xpose.msra.mxu0 0
        %2608 = vmatpush.bf16.xpose.msra.mxu0 %v2599
        %2609 = vmatpush.bf16.xpose.msra.mxu0 %v2598
        %2610 = vmatpush.bf16.xpose.msra.mxu0 %v2597
        %2611 = vmatpush.bf16.xpose.msra.mxu0 %v2596
        %2612 = vmatmul.bf16.gmra.mxu0 %v2574
        %v2613 = vpop.f32.mrf.mxu0
        %v2614 = vadd.f32 0.0, %v2613
        %v2615 = vpop.f32.mrf.mxu0
        %v2616 = vadd.f32 0.0, %v2615
        %2617 = vmatmul.bf16.gmra.mxu0 %v2575
        %v2618 = vpop.f32.mrf.mxu0
        %v2619 = vadd.f32 0.0, %v2618
        %v2620 = vpop.f32.mrf.mxu0
        %v2621 = vadd.f32 0.0, %v2620
        %2622 = vmatmul.bf16.gmra.mxu0 %v2576
        %v2623 = vpop.f32.mrf.mxu0
        %v2624 = vadd.f32 0.0, %v2623
        %v2625 = vpop.f32.mrf.mxu0
        %v2626 = vadd.f32 0.0, %v2625
        %2627 = vmatmul.bf16.gmra.mxu0 %v2577
        %v2628 = vpop.f32.mrf.mxu0
        %v2629 = vadd.f32 0.0, %v2628
        %v2630 = vpop.f32.mrf.mxu0
        %2631 = vdwg.mxu0
        %v2639 = vunpack.c.l.b16 %v2483
        %v2640 = vunpack.c.l.b16 %v2484
        %v2641 = vunpack.c.l.b16 %v2485
        %v2642 = vunpack.c.l.b16 %v2486
        %v2643 = vunpack.c.l.b16 %v2487
        %v2644 = vunpack.c.l.b16 %v2488
        %v2645 = vunpack.c.l.b16 %v2489
        %v2646 = vpack.c.b16 %v2640, %v2639
        %v2647 = vpack.c.b16 %v2642, %v2641
        %v2648 = vpack.c.b16 %v2644, %v2643
        %v2649 = vpack.c.b16 %v2645, %v2645
        %v2661 = vunpack.c.l.b16 %v2511
        %v2662 = vunpack.c.l.b16 %v2512
        %v2663 = vunpack.c.l.b16 %v2513
        %v2664 = vunpack.c.l.b16 %v2514
        %v2665 = vunpack.c.l.b16 %v2515
        %v2666 = vunpack.c.l.b16 %v2516
        %v2667 = vunpack.c.l.b16 %v2517
        %v2668 = vpack.c.b16 %v2662, %v2661
        %v2669 = vpack.c.b16 %v2664, %v2663
        %v2670 = vpack.c.b16 %v2666, %v2665
        %v2671 = vpack.c.b16 %v2667, %v2667
        %2676 = vmatpush.bf16.xpose.msra.mxu0 0
        %2677 = vmatpush.bf16.xpose.msra.mxu0 0
        %2678 = vmatpush.bf16.xpose.msra.mxu0 0
        %2679 = vmatpush.bf16.xpose.msra.mxu0 0
        %2680 = vmatpush.bf16.xpose.msra.mxu0 %v2671
        %2681 = vmatpush.bf16.xpose.msra.mxu0 %v2670
        %2682 = vmatpush.bf16.xpose.msra.mxu0 %v2669
        %2683 = vmatpush.bf16.xpose.msra.mxu0 %v2668
        %2684 = vmatmul.bf16.gmra.mxu0 %v2646
        %v2685 = vpop.f32.mrf.mxu0
        %v2686 = vadd.f32 0.0, %v2685
        %v2687 = vpop.f32.mrf.mxu0
        %v2688 = vadd.f32 0.0, %v2687
        %2689 = vmatmul.bf16.gmra.mxu0 %v2647
        %v2690 = vpop.f32.mrf.mxu0
        %v2691 = vadd.f32 0.0, %v2690
        %v2692 = vpop.f32.mrf.mxu0
        %v2693 = vadd.f32 0.0, %v2692
        %2694 = vmatmul.bf16.gmra.mxu0 %v2648
        %v2695 = vpop.f32.mrf.mxu0
        %v2696 = vadd.f32 0.0, %v2695
        %v2697 = vpop.f32.mrf.mxu0
        %v2698 = vadd.f32 0.0, %v2697
        %2699 = vmatmul.bf16.gmra.mxu0 %v2649
        %v2700 = vpop.f32.mrf.mxu0
        %v2701 = vadd.f32 0.0, %v2700
        %v2702 = vpop.f32.mrf.mxu0
        %2703 = vdwg.mxu0
        %v2711 = vunpack.c.l.b16 %v2490
        %v2712 = vunpack.c.l.b16 %v2491
        %v2713 = vunpack.c.l.b16 %v2492
        %v2714 = vunpack.c.l.b16 %v2493
        %v2715 = vunpack.c.l.b16 %v2494
        %v2716 = vunpack.c.l.b16 %v2495
        %v2717 = vunpack.c.l.b16 %v2496
        %v2718 = vpack.c.b16 %v2712, %v2711
        %v2719 = vpack.c.b16 %v2714, %v2713
        %v2720 = vpack.c.b16 %v2716, %v2715
        %v2721 = vpack.c.b16 %v2717, %v2717
        %v2733 = vunpack.c.l.b16 %v2518
        %v2734 = vunpack.c.l.b16 %v2519
        %v2735 = vunpack.c.l.b16 %v2520
        %v2736 = vunpack.c.l.b16 %v2521
        %v2737 = vunpack.c.l.b16 %v2522
        %v2738 = vunpack.c.l.b16 %v2523
        %v2739 = vunpack.c.l.b16 %v2524
        %v2740 = vpack.c.b16 %v2734, %v2733
        %v2741 = vpack.c.b16 %v2736, %v2735
        %v2742 = vpack.c.b16 %v2738, %v2737
        %v2743 = vpack.c.b16 %v2739, %v2739
        %2748 = vmatpush.bf16.xpose.msra.mxu0 0
        %2749 = vmatpush.bf16.xpose.msra.mxu0 0
        %2750 = vmatpush.bf16.xpose.msra.mxu0 0
        %2751 = vmatpush.bf16.xpose.msra.mxu0 0
        %2752 = vmatpush.bf16.xpose.msra.mxu0 %v2743
        %2753 = vmatpush.bf16.xpose.msra.mxu0 %v2742
        %2754 = vmatpush.bf16.xpose.msra.mxu0 %v2741
        %2755 = vmatpush.bf16.xpose.msra.mxu0 %v2740
        %2756 = vmatmul.bf16.gmra.mxu0 %v2718
        %v2757 = vpop.f32.mrf.mxu0
        %v2758 = vadd.f32 0.0, %v2757
        %v2759 = vpop.f32.mrf.mxu0
        %v2760 = vadd.f32 0.0, %v2759
        %2761 = vmatmul.bf16.gmra.mxu0 %v2719
        %v2762 = vpop.f32.mrf.mxu0
        %v2763 = vadd.f32 0.0, %v2762
        %v2764 = vpop.f32.mrf.mxu0
        %v2765 = vadd.f32 0.0, %v2764
        %2766 = vmatmul.bf16.gmra.mxu0 %v2720
        %v2767 = vpop.f32.mrf.mxu0
        %v2768 = vadd.f32 0.0, %v2767
        %v2769 = vpop.f32.mrf.mxu0
        %v2770 = vadd.f32 0.0, %v2769
        %2771 = vmatmul.bf16.gmra.mxu0 %v2721
        %v2772 = vpop.f32.mrf.mxu0
        %v2773 = vadd.f32 0.0, %v2772
        %v2774 = vpop.f32.mrf.mxu0
        %2775 = vdwg.mxu0
        %v2783 = vunpack.c.l.b16 %v2497
        %v2784 = vunpack.c.l.b16 %v2498
        %v2785 = vunpack.c.l.b16 %v2499
        %v2786 = vunpack.c.l.b16 %v2500
        %v2787 = vunpack.c.l.b16 %v2501
        %v2788 = vunpack.c.l.b16 %v2502
        %v2789 = vunpack.c.l.b16 %v2503
        %v2790 = vpack.c.b16 %v2784, %v2783
        %v2791 = vpack.c.b16 %v2786, %v2785
        %v2792 = vpack.c.b16 %v2788, %v2787
        %v2793 = vpack.c.b16 %v2789, %v2789
        %v2805 = vunpack.c.l.b16 %v2525
        %v2806 = vunpack.c.l.b16 %v2526
        %v2807 = vunpack.c.l.b16 %v2527
        %v2808 = vunpack.c.l.b16 %v2528
        %v2809 = vunpack.c.l.b16 %v2529
        %v2810 = vunpack.c.l.b16 %v2530
        %v2811 = vunpack.c.l.b16 %v2531
        %v2812 = vpack.c.b16 %v2806, %v2805
        %v2813 = vpack.c.b16 %v2808, %v2807
        %v2814 = vpack.c.b16 %v2810, %v2809
        %v2815 = vpack.c.b16 %v2811, %v2811
        %2820 = vmatpush.bf16.xpose.msra.mxu0 0
        %2821 = vmatpush.bf16.xpose.msra.mxu0 0
        %2822 = vmatpush.bf16.xpose.msra.mxu0 0
        %2823 = vmatpush.bf16.xpose.msra.mxu0 0
        %2824 = vmatpush.bf16.xpose.msra.mxu0 %v2815
        %2825 = vmatpush.bf16.xpose.msra.mxu0 %v2814
        %2826 = vmatpush.bf16.xpose.msra.mxu0 %v2813
        %2827 = vmatpush.bf16.xpose.msra.mxu0 %v2812
        %2828 = vmatmul.bf16.gmra.mxu0 %v2790
        %v2829 = vpop.f32.mrf.mxu0
        %v2830 = vadd.f32 0.0, %v2829
        %v2831 = vpop.f32.mrf.mxu0
        %v2832 = vadd.f32 0.0, %v2831
        %2833 = vmatmul.bf16.gmra.mxu0 %v2791
        %v2834 = vpop.f32.mrf.mxu0
        %v2835 = vadd.f32 0.0, %v2834
        %v2836 = vpop.f32.mrf.mxu0
        %v2837 = vadd.f32 0.0, %v2836
        %2838 = vmatmul.bf16.gmra.mxu0 %v2792
        %v2839 = vpop.f32.mrf.mxu0
        %v2840 = vadd.f32 0.0, %v2839
        %v2841 = vpop.f32.mrf.mxu0
        %v2842 = vadd.f32 0.0, %v2841
        %2843 = vmatmul.bf16.gmra.mxu0 %v2793
        %v2844 = vpop.f32.mrf.mxu0
        %v2845 = vadd.f32 0.0, %v2844
        %v2846 = vpop.f32.mrf.mxu0
        %2847 = vdwg.mxu0
        %v2848 = vmul.f32 %v2614, 0.088388346
        %v2849 = vmul.f32 %v2616, 0.088388346
        %v2850 = vmul.f32 %v2619, 0.088388346
        %v2851 = vmul.f32 %v2621, 0.088388346
        %v2852 = vmul.f32 %v2624, 0.088388346
        %v2853 = vmul.f32 %v2626, 0.088388346
        %v2854 = vmul.f32 %v2629, 0.088388346
        %v2855 = vmul.f32 %v2686, 0.088388346
        %v2856 = vmul.f32 %v2688, 0.088388346
        %v2857 = vmul.f32 %v2691, 0.088388346
        %v2858 = vmul.f32 %v2693, 0.088388346
        %v2859 = vmul.f32 %v2696, 0.088388346
        %v2860 = vmul.f32 %v2698, 0.088388346
        %v2861 = vmul.f32 %v2701, 0.088388346
        %v2862 = vmul.f32 %v2758, 0.088388346
        %v2863 = vmul.f32 %v2760, 0.088388346
        %v2864 = vmul.f32 %v2763, 0.088388346
        %v2865 = vmul.f32 %v2765, 0.088388346
        %v2866 = vmul.f32 %v2768, 0.088388346
        %v2867 = vmul.f32 %v2770, 0.088388346
        %v2868 = vmul.f32 %v2773, 0.088388346
        %v2869 = vmul.f32 %v2830, 0.088388346
        %v2870 = vmul.f32 %v2832, 0.088388346
        %v2871 = vmul.f32 %v2835, 0.088388346
        %v2872 = vmul.f32 %v2837, 0.088388346
        %v2873 = vmul.f32 %v2840, 0.088388346
        %v2874 = vmul.f32 %v2842, 0.088388346
        %v2875 = vmul.f32 %v2845, 0.088388346
        %v2876 = vlaneseq
        %v2877 = vand.u32 %v2876, 127
        %vm2878 = vcmp.lt.s32.totalorder %v2877, 49
        %v2879 = vsel %vm2878, 1, 0
        %vm2880 = vcmp.eq.s32.totalorder %v2879, 1
        %v2881 = vsel %vm2880, %v2848, -1e+30
        %v2882 = vsel %vm2880, %v2849, -1e+30
        %v2883 = vsel %vm2880, %v2850, -1e+30
        %v2884 = vsel %vm2880, %v2851, -1e+30
        %v2885 = vsel %vm2880, %v2852, -1e+30
        %v2886 = vsel %vm2880, %v2853, -1e+30
        %v2887 = vsel %vm2880, %v2854, -1e+30
        %v2888 = vsel %vm2880, %v2855, -1e+30
        %v2889 = vsel %vm2880, %v2856, -1e+30
        %v2890 = vsel %vm2880, %v2857, -1e+30
        %v2891 = vsel %vm2880, %v2858, -1e+30
        %v2892 = vsel %vm2880, %v2859, -1e+30
        %v2893 = vsel %vm2880, %v2860, -1e+30
        %v2894 = vsel %vm2880, %v2861, -1e+30
        %v2895 = vsel %vm2880, %v2862, -1e+30
        %v2896 = vsel %vm2880, %v2863, -1e+30
        %v2897 = vsel %vm2880, %v2864, -1e+30
        %v2898 = vsel %vm2880, %v2865, -1e+30
        %v2899 = vsel %vm2880, %v2866, -1e+30
        %v2900 = vsel %vm2880, %v2867, -1e+30
        %v2901 = vsel %vm2880, %v2868, -1e+30
        %v2902 = vsel %vm2880, %v2869, -1e+30
        %v2903 = vsel %vm2880, %v2870, -1e+30
        %v2904 = vsel %vm2880, %v2871, -1e+30
        %v2905 = vsel %vm2880, %v2872, -1e+30
        %v2906 = vsel %vm2880, %v2873, -1e+30
        %v2907 = vsel %vm2880, %v2874, -1e+30
        %v2908 = vsel %vm2880, %v2875, -1e+30
        %vm2909 = vcmask 457728
        %v2910 = vsel %vm2909, %v2881, -inf
        %2911 = vmax.xlane.f32.xlu0 %v2910
        %v2912 = vpop.xlane.xlu0 %2911
        %v2913 = vsel %vm2909, %v2882, -inf
        %2914 = vmax.xlane.f32.xlu0 %v2913
        %v2915 = vpop.xlane.xlu0 %2914
        %v2916 = vsel %vm2909, %v2883, -inf
        %2917 = vmax.xlane.f32.xlu0 %v2916
        %v2918 = vpop.xlane.xlu0 %2917
        %v2919 = vsel %vm2909, %v2884, -inf
        %2920 = vmax.xlane.f32.xlu0 %v2919
        %v2921 = vpop.xlane.xlu0 %2920
        %v2922 = vsel %vm2909, %v2885, -inf
        %2923 = vmax.xlane.f32.xlu0 %v2922
        %v2924 = vpop.xlane.xlu0 %2923
        %v2925 = vsel %vm2909, %v2886, -inf
        %2926 = vmax.xlane.f32.xlu0 %v2925
        %v2927 = vpop.xlane.xlu0 %2926
        %v2928 = vsel %vm2909, %v2887, -inf
        %2929 = vmax.xlane.f32.xlu0 %v2928
        %v2930 = vpop.xlane.xlu0 %2929
        %v2931 = vsel %vm2909, %v2888, -inf
        %2932 = vmax.xlane.f32.xlu0 %v2931
        %v2933 = vpop.xlane.xlu0 %2932
        %v2934 = vsel %vm2909, %v2889, -inf
        %2935 = vmax.xlane.f32.xlu0 %v2934
        %v2936 = vpop.xlane.xlu0 %2935
        %v2937 = vsel %vm2909, %v2890, -inf
        %2938 = vmax.xlane.f32.xlu0 %v2937
        %v2939 = vpop.xlane.xlu0 %2938
        %v2940 = vsel %vm2909, %v2891, -inf
        %2941 = vmax.xlane.f32.xlu0 %v2940
        %v2942 = vpop.xlane.xlu0 %2941
        %v2943 = vsel %vm2909, %v2892, -inf
        %2944 = vmax.xlane.f32.xlu0 %v2943
        %v2945 = vpop.xlane.xlu0 %2944
        %v2946 = vsel %vm2909, %v2893, -inf
        %2947 = vmax.xlane.f32.xlu0 %v2946
        %v2948 = vpop.xlane.xlu0 %2947
        %v2949 = vsel %vm2909, %v2894, -inf
        %2950 = vmax.xlane.f32.xlu0 %v2949
        %v2951 = vpop.xlane.xlu0 %2950
        %v2952 = vsel %vm2909, %v2895, -inf
        %2953 = vmax.xlane.f32.xlu0 %v2952
        %v2954 = vpop.xlane.xlu0 %2953
        %v2955 = vsel %vm2909, %v2896, -inf
        %2956 = vmax.xlane.f32.xlu0 %v2955
        %v2957 = vpop.xlane.xlu0 %2956
        %v2958 = vsel %vm2909, %v2897, -inf
        %2959 = vmax.xlane.f32.xlu0 %v2958
        %v2960 = vpop.xlane.xlu0 %2959
        %v2961 = vsel %vm2909, %v2898, -inf
        %2962 = vmax.xlane.f32.xlu0 %v2961
        %v2963 = vpop.xlane.xlu0 %2962
        %v2964 = vsel %vm2909, %v2899, -inf
        %2965 = vmax.xlane.f32.xlu0 %v2964
        %v2966 = vpop.xlane.xlu0 %2965
        %v2967 = vsel %vm2909, %v2900, -inf
        %2968 = vmax.xlane.f32.xlu0 %v2967
        %v2969 = vpop.xlane.xlu0 %2968
        %v2970 = vsel %vm2909, %v2901, -inf
        %2971 = vmax.xlane.f32.xlu0 %v2970
        %v2972 = vpop.xlane.xlu0 %2971
        %v2973 = vsel %vm2909, %v2902, -inf
        %2974 = vmax.xlane.f32.xlu0 %v2973
        %v2975 = vpop.xlane.xlu0 %2974
        %v2976 = vsel %vm2909, %v2903, -inf
        %2977 = vmax.xlane.f32.xlu0 %v2976
        %v2978 = vpop.xlane.xlu0 %2977
        %v2979 = vsel %vm2909, %v2904, -inf
        %2980 = vmax.xlane.f32.xlu0 %v2979
        %v2981 = vpop.xlane.xlu0 %2980
        %v2982 = vsel %vm2909, %v2905, -inf
        %2983 = vmax.xlane.f32.xlu0 %v2982
        %v2984 = vpop.xlane.xlu0 %2983
        %v2985 = vsel %vm2909, %v2906, -inf
        %2986 = vmax.xlane.f32.xlu0 %v2985
        %v2987 = vpop.xlane.xlu0 %2986
        %v2988 = vsel %vm2909, %v2907, -inf
        %2989 = vmax.xlane.f32.xlu0 %v2988
        %v2990 = vpop.xlane.xlu0 %2989
        %v2991 = vsel %vm2909, %v2908, -inf
        %2992 = vmax.xlane.f32.xlu0 %v2991
        %v2993 = vpop.xlane.xlu0 %2992
        %v2994 = vsub.f32 %v2881, %v2912
        %v2995 = vsub.f32 %v2882, %v2915
        %v2996 = vsub.f32 %v2883, %v2918
        %v2997 = vsub.f32 %v2884, %v2921
        %v2998 = vsub.f32 %v2885, %v2924
        %v2999 = vsub.f32 %v2886, %v2927
        %v3000 = vsub.f32 %v2887, %v2930
        %v3001 = vsub.f32 %v2888, %v2933
        %v3002 = vsub.f32 %v2889, %v2936
        %v3003 = vsub.f32 %v2890, %v2939
        %v3004 = vsub.f32 %v2891, %v2942
        %v3005 = vsub.f32 %v2892, %v2945
        %v3006 = vsub.f32 %v2893, %v2948
        %v3007 = vsub.f32 %v2894, %v2951
        %v3008 = vsub.f32 %v2895, %v2954
        %v3009 = vsub.f32 %v2896, %v2957
        %v3010 = vsub.f32 %v2897, %v2960
        %v3011 = vsub.f32 %v2898, %v2963
        %v3012 = vsub.f32 %v2899, %v2966
        %v3013 = vsub.f32 %v2900, %v2969
        %v3014 = vsub.f32 %v2901, %v2972
        %v3015 = vsub.f32 %v2902, %v2975
        %v3016 = vsub.f32 %v2903, %v2978
        %v3017 = vsub.f32 %v2904, %v2981
        %v3018 = vsub.f32 %v2905, %v2984
        %v3019 = vsub.f32 %v2906, %v2987
        %v3020 = vsub.f32 %v2907, %v2990
        %v3021 = vsub.f32 %v2908, %v2993
        %v3022 = vmul.f32 %v2994, 1.442695
        %v3023 = vpow.pop %v3022
        %v3024 = vmul.f32 %v2995, 1.442695
        %v3025 = vpow.pop %v3024
        %v3026 = vmul.f32 %v2996, 1.442695
        %v3027 = vpow.pop %v3026
        %v3028 = vmul.f32 %v2997, 1.442695
        %v3029 = vpow.pop %v3028
        %v3030 = vmul.f32 %v2998, 1.442695
        %v3031 = vpow.pop %v3030
        %v3032 = vmul.f32 %v2999, 1.442695
        %v3033 = vpow.pop %v3032
        %v3034 = vmul.f32 %v3000, 1.442695
        %v3035 = vpow.pop %v3034
        %v3036 = vmul.f32 %v3001, 1.442695
        %v3037 = vpow.pop %v3036
        %v3038 = vmul.f32 %v3002, 1.442695
        %v3039 = vpow.pop %v3038
        %v3040 = vmul.f32 %v3003, 1.442695
        %v3041 = vpow.pop %v3040
        %v3042 = vmul.f32 %v3004, 1.442695
        %v3043 = vpow.pop %v3042
        %v3044 = vmul.f32 %v3005, 1.442695
        %v3045 = vpow.pop %v3044
        %v3046 = vmul.f32 %v3006, 1.442695
        %v3047 = vpow.pop %v3046
        %v3048 = vmul.f32 %v3007, 1.442695
        %v3049 = vpow.pop %v3048
        %v3050 = vmul.f32 %v3008, 1.442695
        %v3051 = vpow.pop %v3050
        %v3052 = vmul.f32 %v3009, 1.442695
        %v3053 = vpow.pop %v3052
        %v3054 = vmul.f32 %v3010, 1.442695
        %v3055 = vpow.pop %v3054
        %v3056 = vmul.f32 %v3011, 1.442695
        %v3057 = vpow.pop %v3056
        %v3058 = vmul.f32 %v3012, 1.442695
        %v3059 = vpow.pop %v3058
        %v3060 = vmul.f32 %v3013, 1.442695
        %v3061 = vpow.pop %v3060
        %v3062 = vmul.f32 %v3014, 1.442695
        %v3063 = vpow.pop %v3062
        %v3064 = vmul.f32 %v3015, 1.442695
        %v3065 = vpow.pop %v3064
        %v3066 = vmul.f32 %v3016, 1.442695
        %v3067 = vpow.pop %v3066
        %v3068 = vmul.f32 %v3017, 1.442695
        %v3069 = vpow.pop %v3068
        %v3070 = vmul.f32 %v3018, 1.442695
        %v3071 = vpow.pop %v3070
        %v3072 = vmul.f32 %v3019, 1.442695
        %v3073 = vpow.pop %v3072
        %v3074 = vmul.f32 %v3020, 1.442695
        %v3075 = vpow.pop %v3074
        %v3076 = vmul.f32 %v3021, 1.442695
        %v3077 = vpow.pop %v3076
        %v3078 = vsel %vm2909, %v3023, 0.0
        %3079 = vadd.xlane.f32.xlu0 %v3078
        %v3080 = vpop.xlane.xlu0 %3079
        %v3081 = vsel %vm2909, %v3025, 0.0
        %3082 = vadd.xlane.f32.xlu0 %v3081
        %v3083 = vpop.xlane.xlu0 %3082
        %v3084 = vsel %vm2909, %v3027, 0.0
        %3085 = vadd.xlane.f32.xlu0 %v3084
        %v3086 = vpop.xlane.xlu0 %3085
        %v3087 = vsel %vm2909, %v3029, 0.0
        %3088 = vadd.xlane.f32.xlu0 %v3087
        %v3089 = vpop.xlane.xlu0 %3088
        %v3090 = vsel %vm2909, %v3031, 0.0
        %3091 = vadd.xlane.f32.xlu0 %v3090
        %v3092 = vpop.xlane.xlu0 %3091
        %v3093 = vsel %vm2909, %v3033, 0.0
        %3094 = vadd.xlane.f32.xlu0 %v3093
        %v3095 = vpop.xlane.xlu0 %3094
        %v3096 = vsel %vm2909, %v3035, 0.0
        %3097 = vadd.xlane.f32.xlu0 %v3096
        %v3098 = vpop.xlane.xlu0 %3097
        %v3099 = vsel %vm2909, %v3037, 0.0
        %3100 = vadd.xlane.f32.xlu0 %v3099
        %v3101 = vpop.xlane.xlu0 %3100
        %v3102 = vsel %vm2909, %v3039, 0.0
        %3103 = vadd.xlane.f32.xlu0 %v3102
        %v3104 = vpop.xlane.xlu0 %3103
        %v3105 = vsel %vm2909, %v3041, 0.0
        %3106 = vadd.xlane.f32.xlu0 %v3105
        %v3107 = vpop.xlane.xlu0 %3106
        %v3108 = vsel %vm2909, %v3043, 0.0
        %3109 = vadd.xlane.f32.xlu0 %v3108
        %v3110 = vpop.xlane.xlu0 %3109
        %v3111 = vsel %vm2909, %v3045, 0.0
        %3112 = vadd.xlane.f32.xlu0 %v3111
        %v3113 = vpop.xlane.xlu0 %3112
        %v3114 = vsel %vm2909, %v3047, 0.0
        %3115 = vadd.xlane.f32.xlu0 %v3114
        %v3116 = vpop.xlane.xlu0 %3115
        %v3117 = vsel %vm2909, %v3049, 0.0
        %3118 = vadd.xlane.f32.xlu0 %v3117
        %v3119 = vpop.xlane.xlu0 %3118
        %v3120 = vsel %vm2909, %v3051, 0.0
        %3121 = vadd.xlane.f32.xlu0 %v3120
        %v3122 = vpop.xlane.xlu0 %3121
        %v3123 = vsel %vm2909, %v3053, 0.0
        %3124 = vadd.xlane.f32.xlu0 %v3123
        %v3125 = vpop.xlane.xlu0 %3124
        %v3126 = vsel %vm2909, %v3055, 0.0
        %3127 = vadd.xlane.f32.xlu0 %v3126
        %v3128 = vpop.xlane.xlu0 %3127
        %v3129 = vsel %vm2909, %v3057, 0.0
        %3130 = vadd.xlane.f32.xlu0 %v3129
        %v3131 = vpop.xlane.xlu0 %3130
        %v3132 = vsel %vm2909, %v3059, 0.0
        %3133 = vadd.xlane.f32.xlu0 %v3132
        %v3134 = vpop.xlane.xlu0 %3133
        %v3135 = vsel %vm2909, %v3061, 0.0
        %3136 = vadd.xlane.f32.xlu0 %v3135
        %v3137 = vpop.xlane.xlu0 %3136
        %v3138 = vsel %vm2909, %v3063, 0.0
        %3139 = vadd.xlane.f32.xlu0 %v3138
        %v3140 = vpop.xlane.xlu0 %3139
        %v3141 = vsel %vm2909, %v3065, 0.0
        %3142 = vadd.xlane.f32.xlu0 %v3141
        %v3143 = vpop.xlane.xlu0 %3142
        %v3144 = vsel %vm2909, %v3067, 0.0
        %3145 = vadd.xlane.f32.xlu0 %v3144
        %v3146 = vpop.xlane.xlu0 %3145
        %v3147 = vsel %vm2909, %v3069, 0.0
        %3148 = vadd.xlane.f32.xlu0 %v3147
        %v3149 = vpop.xlane.xlu0 %3148
        %v3150 = vsel %vm2909, %v3071, 0.0
        %3151 = vadd.xlane.f32.xlu0 %v3150
        %v3152 = vpop.xlane.xlu0 %3151
        %v3153 = vsel %vm2909, %v3073, 0.0
        %3154 = vadd.xlane.f32.xlu0 %v3153
        %v3155 = vpop.xlane.xlu0 %3154
        %v3156 = vsel %vm2909, %v3075, 0.0
        %3157 = vadd.xlane.f32.xlu0 %v3156
        %v3158 = vpop.xlane.xlu0 %3157
        %v3159 = vsel %vm2909, %v3077, 0.0
        %3160 = vadd.xlane.f32.xlu0 %v3159
        %v3161 = vpop.xlane.xlu0 %3160
        %v3162 = vrcp.pop %v3080
        %v3163 = vmul.f32 %v3080, %v3162
        %v3164 = vsub.f32 1.0, %v3163
        %v3165 = vmul.f32 %v3162, %v3164
        %v3166 = vadd.f32 %v3162, %v3165
        %vm3167 = vweird.f32 %v3080
        %vm3168 = vweird.f32 %v3162
        %vm3169 = vmor %vm3167, %vm3168
        %v3170 = vsel %vm3169, %v3162, %v3166
        %v3171 = vand.u32 2147483647, %v3080
        %vm3172 = vcmp.eq.f32.partialorder %v3171, 8.507059e+37
        %v3173 = vand.u32 %v3080, 2147483648
        %v3174 = vor.u32 1.1754944e-38, %v3173
        %v3175 = vsel %vm3172, %v3174, %v3170
        %v3176 = vmul.f32 %v3023, %v3175
        %v3177 = vrcp.pop %v3083
        %v3178 = vmul.f32 %v3083, %v3177
        %v3179 = vsub.f32 1.0, %v3178
        %v3180 = vmul.f32 %v3177, %v3179
        %v3181 = vadd.f32 %v3177, %v3180
        %vm3182 = vweird.f32 %v3083
        %vm3183 = vweird.f32 %v3177
        %vm3184 = vmor %vm3182, %vm3183
        %v3185 = vsel %vm3184, %v3177, %v3181
        %v3186 = vand.u32 2147483647, %v3083
        %vm3187 = vcmp.eq.f32.partialorder %v3186, 8.507059e+37
        %v3188 = vand.u32 %v3083, 2147483648
        %v3189 = vor.u32 1.1754944e-38, %v3188
        %v3190 = vsel %vm3187, %v3189, %v3185
        %v3191 = vmul.f32 %v3025, %v3190
        %v3192 = vrcp.pop %v3086
        %v3193 = vmul.f32 %v3086, %v3192
        %v3194 = vsub.f32 1.0, %v3193
        %v3195 = vmul.f32 %v3192, %v3194
        %v3196 = vadd.f32 %v3192, %v3195
        %vm3197 = vweird.f32 %v3086
        %vm3198 = vweird.f32 %v3192
        %vm3199 = vmor %vm3197, %vm3198
        %v3200 = vsel %vm3199, %v3192, %v3196
        %v3201 = vand.u32 2147483647, %v3086
        %vm3202 = vcmp.eq.f32.partialorder %v3201, 8.507059e+37
        %v3203 = vand.u32 %v3086, 2147483648
        %v3204 = vor.u32 1.1754944e-38, %v3203
        %v3205 = vsel %vm3202, %v3204, %v3200
        %v3206 = vmul.f32 %v3027, %v3205
        %v3207 = vrcp.pop %v3089
        %v3208 = vmul.f32 %v3089, %v3207
        %v3209 = vsub.f32 1.0, %v3208
        %v3210 = vmul.f32 %v3207, %v3209
        %v3211 = vadd.f32 %v3207, %v3210
        %vm3212 = vweird.f32 %v3089
        %vm3213 = vweird.f32 %v3207
        %vm3214 = vmor %vm3212, %vm3213
        %v3215 = vsel %vm3214, %v3207, %v3211
        %v3216 = vand.u32 2147483647, %v3089
        %vm3217 = vcmp.eq.f32.partialorder %v3216, 8.507059e+37
        %v3218 = vand.u32 %v3089, 2147483648
        %v3219 = vor.u32 1.1754944e-38, %v3218
        %v3220 = vsel %vm3217, %v3219, %v3215
        %v3221 = vmul.f32 %v3029, %v3220
        %v3222 = vrcp.pop %v3092
        %v3223 = vmul.f32 %v3092, %v3222
        %v3224 = vsub.f32 1.0, %v3223
        %v3225 = vmul.f32 %v3222, %v3224
        %v3226 = vadd.f32 %v3222, %v3225
        %vm3227 = vweird.f32 %v3092
        %vm3228 = vweird.f32 %v3222
        %vm3229 = vmor %vm3227, %vm3228
        %v3230 = vsel %vm3229, %v3222, %v3226
        %v3231 = vand.u32 2147483647, %v3092
        %vm3232 = vcmp.eq.f32.partialorder %v3231, 8.507059e+37
        %v3233 = vand.u32 %v3092, 2147483648
        %v3234 = vor.u32 1.1754944e-38, %v3233
        %v3235 = vsel %vm3232, %v3234, %v3230
        %v3236 = vmul.f32 %v3031, %v3235
        %v3237 = vrcp.pop %v3095
        %v3238 = vmul.f32 %v3095, %v3237
        %v3239 = vsub.f32 1.0, %v3238
        %v3240 = vmul.f32 %v3237, %v3239
        %v3241 = vadd.f32 %v3237, %v3240
        %vm3242 = vweird.f32 %v3095
        %vm3243 = vweird.f32 %v3237
        %vm3244 = vmor %vm3242, %vm3243
        %v3245 = vsel %vm3244, %v3237, %v3241
        %v3246 = vand.u32 2147483647, %v3095
        %vm3247 = vcmp.eq.f32.partialorder %v3246, 8.507059e+37
        %v3248 = vand.u32 %v3095, 2147483648
        %v3249 = vor.u32 1.1754944e-38, %v3248
        %v3250 = vsel %vm3247, %v3249, %v3245
        %v3251 = vmul.f32 %v3033, %v3250
        %v3252 = vrcp.pop %v3098
        %v3253 = vmul.f32 %v3098, %v3252
        %v3254 = vsub.f32 1.0, %v3253
        %v3255 = vmul.f32 %v3252, %v3254
        %v3256 = vadd.f32 %v3252, %v3255
        %vm3257 = vweird.f32 %v3098
        %vm3258 = vweird.f32 %v3252
        %vm3259 = vmor %vm3257, %vm3258
        %v3260 = vsel %vm3259, %v3252, %v3256
        %v3261 = vand.u32 2147483647, %v3098
        %vm3262 = vcmp.eq.f32.partialorder %v3261, 8.507059e+37
        %v3263 = vand.u32 %v3098, 2147483648
        %v3264 = vor.u32 1.1754944e-38, %v3263
        %v3265 = vsel %vm3262, %v3264, %v3260
        %v3266 = vmul.f32 %v3035, %v3265
        %v3267 = vrcp.pop %v3101
        %v3268 = vmul.f32 %v3101, %v3267
        %v3269 = vsub.f32 1.0, %v3268
        %v3270 = vmul.f32 %v3267, %v3269
        %v3271 = vadd.f32 %v3267, %v3270
        %vm3272 = vweird.f32 %v3101
        %vm3273 = vweird.f32 %v3267
        %vm3274 = vmor %vm3272, %vm3273
        %v3275 = vsel %vm3274, %v3267, %v3271
        %v3276 = vand.u32 2147483647, %v3101
        %vm3277 = vcmp.eq.f32.partialorder %v3276, 8.507059e+37
        %v3278 = vand.u32 %v3101, 2147483648
        %v3279 = vor.u32 1.1754944e-38, %v3278
        %v3280 = vsel %vm3277, %v3279, %v3275
        %v3281 = vmul.f32 %v3037, %v3280
        %v3282 = vrcp.pop %v3104
        %v3283 = vmul.f32 %v3104, %v3282
        %v3284 = vsub.f32 1.0, %v3283
        %v3285 = vmul.f32 %v3282, %v3284
        %v3286 = vadd.f32 %v3282, %v3285
        %vm3287 = vweird.f32 %v3104
        %vm3288 = vweird.f32 %v3282
        %vm3289 = vmor %vm3287, %vm3288
        %v3290 = vsel %vm3289, %v3282, %v3286
        %v3291 = vand.u32 2147483647, %v3104
        %vm3292 = vcmp.eq.f32.partialorder %v3291, 8.507059e+37
        %v3293 = vand.u32 %v3104, 2147483648
        %v3294 = vor.u32 1.1754944e-38, %v3293
        %v3295 = vsel %vm3292, %v3294, %v3290
        %v3296 = vmul.f32 %v3039, %v3295
        %v3297 = vrcp.pop %v3107
        %v3298 = vmul.f32 %v3107, %v3297
        %v3299 = vsub.f32 1.0, %v3298
        %v3300 = vmul.f32 %v3297, %v3299
        %v3301 = vadd.f32 %v3297, %v3300
        %vm3302 = vweird.f32 %v3107
        %vm3303 = vweird.f32 %v3297
        %vm3304 = vmor %vm3302, %vm3303
        %v3305 = vsel %vm3304, %v3297, %v3301
        %v3306 = vand.u32 2147483647, %v3107
        %vm3307 = vcmp.eq.f32.partialorder %v3306, 8.507059e+37
        %v3308 = vand.u32 %v3107, 2147483648
        %v3309 = vor.u32 1.1754944e-38, %v3308
        %v3310 = vsel %vm3307, %v3309, %v3305
        %v3311 = vmul.f32 %v3041, %v3310
        %v3312 = vrcp.pop %v3110
        %v3313 = vmul.f32 %v3110, %v3312
        %v3314 = vsub.f32 1.0, %v3313
        %v3315 = vmul.f32 %v3312, %v3314
        %v3316 = vadd.f32 %v3312, %v3315
        %vm3317 = vweird.f32 %v3110
        %vm3318 = vweird.f32 %v3312
        %vm3319 = vmor %vm3317, %vm3318
        %v3320 = vsel %vm3319, %v3312, %v3316
        %v3321 = vand.u32 2147483647, %v3110
        %vm3322 = vcmp.eq.f32.partialorder %v3321, 8.507059e+37
        %v3323 = vand.u32 %v3110, 2147483648
        %v3324 = vor.u32 1.1754944e-38, %v3323
        %v3325 = vsel %vm3322, %v3324, %v3320
        %v3326 = vmul.f32 %v3043, %v3325
        %v3327 = vrcp.pop %v3113
        %v3328 = vmul.f32 %v3113, %v3327
        %v3329 = vsub.f32 1.0, %v3328
        %v3330 = vmul.f32 %v3327, %v3329
        %v3331 = vadd.f32 %v3327, %v3330
        %vm3332 = vweird.f32 %v3113
        %vm3333 = vweird.f32 %v3327
        %vm3334 = vmor %vm3332, %vm3333
        %v3335 = vsel %vm3334, %v3327, %v3331
        %v3336 = vand.u32 2147483647, %v3113
        %vm3337 = vcmp.eq.f32.partialorder %v3336, 8.507059e+37
        %v3338 = vand.u32 %v3113, 2147483648
        %v3339 = vor.u32 1.1754944e-38, %v3338
        %v3340 = vsel %vm3337, %v3339, %v3335
        %v3341 = vmul.f32 %v3045, %v3340
        %v3342 = vrcp.pop %v3116
        %v3343 = vmul.f32 %v3116, %v3342
        %v3344 = vsub.f32 1.0, %v3343
        %v3345 = vmul.f32 %v3342, %v3344
        %v3346 = vadd.f32 %v3342, %v3345
        %vm3347 = vweird.f32 %v3116
        %vm3348 = vweird.f32 %v3342
        %vm3349 = vmor %vm3347, %vm3348
        %v3350 = vsel %vm3349, %v3342, %v3346
        %v3351 = vand.u32 2147483647, %v3116
        %vm3352 = vcmp.eq.f32.partialorder %v3351, 8.507059e+37
        %v3353 = vand.u32 %v3116, 2147483648
        %v3354 = vor.u32 1.1754944e-38, %v3353
        %v3355 = vsel %vm3352, %v3354, %v3350
        %v3356 = vmul.f32 %v3047, %v3355
        %v3357 = vrcp.pop %v3119
        %v3358 = vmul.f32 %v3119, %v3357
        %v3359 = vsub.f32 1.0, %v3358
        %v3360 = vmul.f32 %v3357, %v3359
        %v3361 = vadd.f32 %v3357, %v3360
        %vm3362 = vweird.f32 %v3119
        %vm3363 = vweird.f32 %v3357
        %vm3364 = vmor %vm3362, %vm3363
        %v3365 = vsel %vm3364, %v3357, %v3361
        %v3366 = vand.u32 2147483647, %v3119
        %vm3367 = vcmp.eq.f32.partialorder %v3366, 8.507059e+37
        %v3368 = vand.u32 %v3119, 2147483648
        %v3369 = vor.u32 1.1754944e-38, %v3368
        %v3370 = vsel %vm3367, %v3369, %v3365
        %v3371 = vmul.f32 %v3049, %v3370
        %v3372 = vrcp.pop %v3122
        %v3373 = vmul.f32 %v3122, %v3372
        %v3374 = vsub.f32 1.0, %v3373
        %v3375 = vmul.f32 %v3372, %v3374
        %v3376 = vadd.f32 %v3372, %v3375
        %vm3377 = vweird.f32 %v3122
        %vm3378 = vweird.f32 %v3372
        %vm3379 = vmor %vm3377, %vm3378
        %v3380 = vsel %vm3379, %v3372, %v3376
        %v3381 = vand.u32 2147483647, %v3122
        %vm3382 = vcmp.eq.f32.partialorder %v3381, 8.507059e+37
        %v3383 = vand.u32 %v3122, 2147483648
        %v3384 = vor.u32 1.1754944e-38, %v3383
        %v3385 = vsel %vm3382, %v3384, %v3380
        %v3386 = vmul.f32 %v3051, %v3385
        %v3387 = vrcp.pop %v3125
        %v3388 = vmul.f32 %v3125, %v3387
        %v3389 = vsub.f32 1.0, %v3388
        %v3390 = vmul.f32 %v3387, %v3389
        %v3391 = vadd.f32 %v3387, %v3390
        %vm3392 = vweird.f32 %v3125
        %vm3393 = vweird.f32 %v3387
        %vm3394 = vmor %vm3392, %vm3393
        %v3395 = vsel %vm3394, %v3387, %v3391
        %v3396 = vand.u32 2147483647, %v3125
        %vm3397 = vcmp.eq.f32.partialorder %v3396, 8.507059e+37
        %v3398 = vand.u32 %v3125, 2147483648
        %v3399 = vor.u32 1.1754944e-38, %v3398
        %v3400 = vsel %vm3397, %v3399, %v3395
        %v3401 = vmul.f32 %v3053, %v3400
        %v3402 = vrcp.pop %v3128
        %v3403 = vmul.f32 %v3128, %v3402
        %v3404 = vsub.f32 1.0, %v3403
        %v3405 = vmul.f32 %v3402, %v3404
        %v3406 = vadd.f32 %v3402, %v3405
        %vm3407 = vweird.f32 %v3128
        %vm3408 = vweird.f32 %v3402
        %vm3409 = vmor %vm3407, %vm3408
        %v3410 = vsel %vm3409, %v3402, %v3406
        %v3411 = vand.u32 2147483647, %v3128
        %vm3412 = vcmp.eq.f32.partialorder %v3411, 8.507059e+37
        %v3413 = vand.u32 %v3128, 2147483648
        %v3414 = vor.u32 1.1754944e-38, %v3413
        %v3415 = vsel %vm3412, %v3414, %v3410
        %v3416 = vmul.f32 %v3055, %v3415
        %v3417 = vrcp.pop %v3131
        %v3418 = vmul.f32 %v3131, %v3417
        %v3419 = vsub.f32 1.0, %v3418
        %v3420 = vmul.f32 %v3417, %v3419
        %v3421 = vadd.f32 %v3417, %v3420
        %vm3422 = vweird.f32 %v3131
        %vm3423 = vweird.f32 %v3417
        %vm3424 = vmor %vm3422, %vm3423
        %v3425 = vsel %vm3424, %v3417, %v3421
        %v3426 = vand.u32 2147483647, %v3131
        %vm3427 = vcmp.eq.f32.partialorder %v3426, 8.507059e+37
        %v3428 = vand.u32 %v3131, 2147483648
        %v3429 = vor.u32 1.1754944e-38, %v3428
        %v3430 = vsel %vm3427, %v3429, %v3425
        %v3431 = vmul.f32 %v3057, %v3430
        %v3432 = vrcp.pop %v3134
        %v3433 = vmul.f32 %v3134, %v3432
        %v3434 = vsub.f32 1.0, %v3433
        %v3435 = vmul.f32 %v3432, %v3434
        %v3436 = vadd.f32 %v3432, %v3435
        %vm3437 = vweird.f32 %v3134
        %vm3438 = vweird.f32 %v3432
        %vm3439 = vmor %vm3437, %vm3438
        %v3440 = vsel %vm3439, %v3432, %v3436
        %v3441 = vand.u32 2147483647, %v3134
        %vm3442 = vcmp.eq.f32.partialorder %v3441, 8.507059e+37
        %v3443 = vand.u32 %v3134, 2147483648
        %v3444 = vor.u32 1.1754944e-38, %v3443
        %v3445 = vsel %vm3442, %v3444, %v3440
        %v3446 = vmul.f32 %v3059, %v3445
        %v3447 = vrcp.pop %v3137
        %v3448 = vmul.f32 %v3137, %v3447
        %v3449 = vsub.f32 1.0, %v3448
        %v3450 = vmul.f32 %v3447, %v3449
        %v3451 = vadd.f32 %v3447, %v3450
        %vm3452 = vweird.f32 %v3137
        %vm3453 = vweird.f32 %v3447
        %vm3454 = vmor %vm3452, %vm3453
        %v3455 = vsel %vm3454, %v3447, %v3451
        %v3456 = vand.u32 2147483647, %v3137
        %vm3457 = vcmp.eq.f32.partialorder %v3456, 8.507059e+37
        %v3458 = vand.u32 %v3137, 2147483648
        %v3459 = vor.u32 1.1754944e-38, %v3458
        %v3460 = vsel %vm3457, %v3459, %v3455
        %v3461 = vmul.f32 %v3061, %v3460
        %v3462 = vrcp.pop %v3140
        %v3463 = vmul.f32 %v3140, %v3462
        %v3464 = vsub.f32 1.0, %v3463
        %v3465 = vmul.f32 %v3462, %v3464
        %v3466 = vadd.f32 %v3462, %v3465
        %vm3467 = vweird.f32 %v3140
        %vm3468 = vweird.f32 %v3462
        %vm3469 = vmor %vm3467, %vm3468
        %v3470 = vsel %vm3469, %v3462, %v3466
        %v3471 = vand.u32 2147483647, %v3140
        %vm3472 = vcmp.eq.f32.partialorder %v3471, 8.507059e+37
        %v3473 = vand.u32 %v3140, 2147483648
        %v3474 = vor.u32 1.1754944e-38, %v3473
        %v3475 = vsel %vm3472, %v3474, %v3470
        %v3476 = vmul.f32 %v3063, %v3475
        %v3477 = vrcp.pop %v3143
        %v3478 = vmul.f32 %v3143, %v3477
        %v3479 = vsub.f32 1.0, %v3478
        %v3480 = vmul.f32 %v3477, %v3479
        %v3481 = vadd.f32 %v3477, %v3480
        %vm3482 = vweird.f32 %v3143
        %vm3483 = vweird.f32 %v3477
        %vm3484 = vmor %vm3482, %vm3483
        %v3485 = vsel %vm3484, %v3477, %v3481
        %v3486 = vand.u32 2147483647, %v3143
        %vm3487 = vcmp.eq.f32.partialorder %v3486, 8.507059e+37
        %v3488 = vand.u32 %v3143, 2147483648
        %v3489 = vor.u32 1.1754944e-38, %v3488
        %v3490 = vsel %vm3487, %v3489, %v3485
        %v3491 = vmul.f32 %v3065, %v3490
        %v3492 = vrcp.pop %v3146
        %v3493 = vmul.f32 %v3146, %v3492
        %v3494 = vsub.f32 1.0, %v3493
        %v3495 = vmul.f32 %v3492, %v3494
        %v3496 = vadd.f32 %v3492, %v3495
        %vm3497 = vweird.f32 %v3146
        %vm3498 = vweird.f32 %v3492
        %vm3499 = vmor %vm3497, %vm3498
        %v3500 = vsel %vm3499, %v3492, %v3496
        %v3501 = vand.u32 2147483647, %v3146
        %vm3502 = vcmp.eq.f32.partialorder %v3501, 8.507059e+37
        %v3503 = vand.u32 %v3146, 2147483648
        %v3504 = vor.u32 1.1754944e-38, %v3503
        %v3505 = vsel %vm3502, %v3504, %v3500
        %v3506 = vmul.f32 %v3067, %v3505
        %v3507 = vrcp.pop %v3149
        %v3508 = vmul.f32 %v3149, %v3507
        %v3509 = vsub.f32 1.0, %v3508
        %v3510 = vmul.f32 %v3507, %v3509
        %v3511 = vadd.f32 %v3507, %v3510
        %vm3512 = vweird.f32 %v3149
        %vm3513 = vweird.f32 %v3507
        %vm3514 = vmor %vm3512, %vm3513
        %v3515 = vsel %vm3514, %v3507, %v3511
        %v3516 = vand.u32 2147483647, %v3149
        %vm3517 = vcmp.eq.f32.partialorder %v3516, 8.507059e+37
        %v3518 = vand.u32 %v3149, 2147483648
        %v3519 = vor.u32 1.1754944e-38, %v3518
        %v3520 = vsel %vm3517, %v3519, %v3515
        %v3521 = vmul.f32 %v3069, %v3520
        %v3522 = vrcp.pop %v3152
        %v3523 = vmul.f32 %v3152, %v3522
        %v3524 = vsub.f32 1.0, %v3523
        %v3525 = vmul.f32 %v3522, %v3524
        %v3526 = vadd.f32 %v3522, %v3525
        %vm3527 = vweird.f32 %v3152
        %vm3528 = vweird.f32 %v3522
        %vm3529 = vmor %vm3527, %vm3528
        %v3530 = vsel %vm3529, %v3522, %v3526
        %v3531 = vand.u32 2147483647, %v3152
        %vm3532 = vcmp.eq.f32.partialorder %v3531, 8.507059e+37
        %v3533 = vand.u32 %v3152, 2147483648
        %v3534 = vor.u32 1.1754944e-38, %v3533
        %v3535 = vsel %vm3532, %v3534, %v3530
        %v3536 = vmul.f32 %v3071, %v3535
        %v3537 = vrcp.pop %v3155
        %v3538 = vmul.f32 %v3155, %v3537
        %v3539 = vsub.f32 1.0, %v3538
        %v3540 = vmul.f32 %v3537, %v3539
        %v3541 = vadd.f32 %v3537, %v3540
        %vm3542 = vweird.f32 %v3155
        %vm3543 = vweird.f32 %v3537
        %vm3544 = vmor %vm3542, %vm3543
        %v3545 = vsel %vm3544, %v3537, %v3541
        %v3546 = vand.u32 2147483647, %v3155
        %vm3547 = vcmp.eq.f32.partialorder %v3546, 8.507059e+37
        %v3548 = vand.u32 %v3155, 2147483648
        %v3549 = vor.u32 1.1754944e-38, %v3548
        %v3550 = vsel %vm3547, %v3549, %v3545
        %v3551 = vmul.f32 %v3073, %v3550
        %v3552 = vrcp.pop %v3158
        %v3553 = vmul.f32 %v3158, %v3552
        %v3554 = vsub.f32 1.0, %v3553
        %v3555 = vmul.f32 %v3552, %v3554
        %v3556 = vadd.f32 %v3552, %v3555
        %vm3557 = vweird.f32 %v3158
        %vm3558 = vweird.f32 %v3552
        %vm3559 = vmor %vm3557, %vm3558
        %v3560 = vsel %vm3559, %v3552, %v3556
        %v3561 = vand.u32 2147483647, %v3158
        %vm3562 = vcmp.eq.f32.partialorder %v3561, 8.507059e+37
        %v3563 = vand.u32 %v3158, 2147483648
        %v3564 = vor.u32 1.1754944e-38, %v3563
        %v3565 = vsel %vm3562, %v3564, %v3560
        %v3566 = vmul.f32 %v3075, %v3565
        %v3567 = vrcp.pop %v3161
        %v3568 = vmul.f32 %v3161, %v3567
        %v3569 = vsub.f32 1.0, %v3568
        %v3570 = vmul.f32 %v3567, %v3569
        %v3571 = vadd.f32 %v3567, %v3570
        %vm3572 = vweird.f32 %v3161
        %vm3573 = vweird.f32 %v3567
        %vm3574 = vmor %vm3572, %vm3573
        %v3575 = vsel %vm3574, %v3567, %v3571
        %v3576 = vand.u32 2147483647, %v3161
        %vm3577 = vcmp.eq.f32.partialorder %v3576, 8.507059e+37
        %v3578 = vand.u32 %v3161, 2147483648
        %v3579 = vor.u32 1.1754944e-38, %v3578
        %v3580 = vsel %vm3577, %v3579, %v3575
        %v3581 = vmul.f32 %v3077, %v3580
        %v3582 = vpack.c.bf16 %v3176, %v3176
        %v3583 = vpack.c.bf16 %v3191, %v3191
        %v3584 = vpack.c.bf16 %v3206, %v3206
        %v3585 = vpack.c.bf16 %v3221, %v3221
        %v3586 = vpack.c.bf16 %v3236, %v3236
        %v3587 = vpack.c.bf16 %v3251, %v3251
        %v3588 = vpack.c.bf16 %v3266, %v3266
        %v3589 = vpack.c.bf16 %v3281, %v3281
        %v3590 = vpack.c.bf16 %v3296, %v3296
        %v3591 = vpack.c.bf16 %v3311, %v3311
        %v3592 = vpack.c.bf16 %v3326, %v3326
        %v3593 = vpack.c.bf16 %v3341, %v3341
        %v3594 = vpack.c.bf16 %v3356, %v3356
        %v3595 = vpack.c.bf16 %v3371, %v3371
        %v3596 = vpack.c.bf16 %v3386, %v3386
        %v3597 = vpack.c.bf16 %v3401, %v3401
        %v3598 = vpack.c.bf16 %v3416, %v3416
        %v3599 = vpack.c.bf16 %v3431, %v3431
        %v3600 = vpack.c.bf16 %v3446, %v3446
        %v3601 = vpack.c.bf16 %v3461, %v3461
        %v3602 = vpack.c.bf16 %v3476, %v3476
        %v3603 = vpack.c.bf16 %v3491, %v3491
        %v3604 = vpack.c.bf16 %v3506, %v3506
        %v3605 = vpack.c.bf16 %v3521, %v3521
        %v3606 = vpack.c.bf16 %v3536, %v3536
        %v3607 = vpack.c.bf16 %v3551, %v3551
        %v3608 = vpack.c.bf16 %v3566, %v3566
        %v3609 = vpack.c.bf16 %v3581, %v3581
        %v3617 = vunpack.c.l.b16 %v3582
        %v3618 = vunpack.c.l.b16 %v3583
        %v3619 = vunpack.c.l.b16 %v3584
        %v3620 = vunpack.c.l.b16 %v3585
        %v3621 = vunpack.c.l.b16 %v3586
        %v3622 = vunpack.c.l.b16 %v3587
        %v3623 = vunpack.c.l.b16 %v3588
        %v3624 = vpack.c.b16 %v3618, %v3617
        %v3625 = vpack.c.b16 %v3620, %v3619
        %v3626 = vpack.c.b16 %v3622, %v3621
        %v3627 = vpack.c.b16 %v3623, %v3623
        %v3635 = vunpack.c.l.b16 %v2532
        %v3636 = vunpack.c.l.b16 %v2533
        %v3637 = vunpack.c.l.b16 %v2534
        %v3638 = vunpack.c.l.b16 %v2535
        %v3639 = vunpack.c.l.b16 %v2536
        %v3640 = vunpack.c.l.b16 %v2537
        %v3641 = vunpack.c.l.b16 %v2538
        %v3642 = vpack.c.b16 %v3636, %v3635
        %v3643 = vpack.c.b16 %v3638, %v3637
        %v3644 = vpack.c.b16 %v3640, %v3639
        %v3645 = vpack.c.b16 %v3641, %v3641
        %v3650 = vsel %vm2909, %v3624, 0
        %v3653 = vsel %vm2909, %v3625, 0
        %v3656 = vsel %vm2909, %v3626, 0
        %v3659 = vsel %vm2909, %v3627, 0
        %vm3661 = vcmask 1043456
        %v3663 = vsel %vm3661, %v3645, 0
        %3665 = vmatpush.bf16.msra.mxu0 0
        %3666 = vmatpush.bf16.msra.mxu0 0
        %3667 = vmatpush.bf16.msra.mxu0 0
        %3668 = vmatpush.bf16.msra.mxu0 0
        %3669 = vmatpush.bf16.msra.mxu0 %v3663
        %3670 = vmatpush.bf16.msra.mxu0 %v3644
        %3671 = vmatpush.bf16.msra.mxu0 %v3643
        %3672 = vmatpush.bf16.msra.mxu0 %v3642
        %3673 = vmatmul.bf16.gmra.mxu0 %v3650
        %v3674 = vpop.f32.mrf.mxu0
        %v3675 = vadd.f32 0.0, %v3674
        %v3676 = vpop.f32.mrf.mxu0
        %v3677 = vadd.f32 0.0, %v3676
        %3678 = vmatmul.bf16.gmra.mxu0 %v3653
        %v3679 = vpop.f32.mrf.mxu0
        %v3680 = vadd.f32 0.0, %v3679
        %v3681 = vpop.f32.mrf.mxu0
        %v3682 = vadd.f32 0.0, %v3681
        %3683 = vmatmul.bf16.gmra.mxu0 %v3656
        %v3684 = vpop.f32.mrf.mxu0
        %v3685 = vadd.f32 0.0, %v3684
        %v3686 = vpop.f32.mrf.mxu0
        %v3687 = vadd.f32 0.0, %v3686
        %3688 = vmatmul.bf16.gmra.mxu0 %v3659
        %v3689 = vpop.f32.mrf.mxu0
        %v3690 = vadd.f32 0.0, %v3689
        %v3691 = vpop.f32.mrf.mxu0
        %3692 = vdwg.mxu0
        %v3700 = vunpack.c.l.b16 %v3589
        %v3701 = vunpack.c.l.b16 %v3590
        %v3702 = vunpack.c.l.b16 %v3591
        %v3703 = vunpack.c.l.b16 %v3592
        %v3704 = vunpack.c.l.b16 %v3593
        %v3705 = vunpack.c.l.b16 %v3594
        %v3706 = vunpack.c.l.b16 %v3595
        %v3707 = vpack.c.b16 %v3701, %v3700
        %v3708 = vpack.c.b16 %v3703, %v3702
        %v3709 = vpack.c.b16 %v3705, %v3704
        %v3710 = vpack.c.b16 %v3706, %v3706
        %v3718 = vunpack.c.l.b16 %v2539
        %v3719 = vunpack.c.l.b16 %v2540
        %v3720 = vunpack.c.l.b16 %v2541
        %v3721 = vunpack.c.l.b16 %v2542
        %v3722 = vunpack.c.l.b16 %v2543
        %v3723 = vunpack.c.l.b16 %v2544
        %v3724 = vunpack.c.l.b16 %v2545
        %v3725 = vpack.c.b16 %v3719, %v3718
        %v3726 = vpack.c.b16 %v3721, %v3720
        %v3727 = vpack.c.b16 %v3723, %v3722
        %v3728 = vpack.c.b16 %v3724, %v3724
        %v3733 = vsel %vm2909, %v3707, 0
        %v3736 = vsel %vm2909, %v3708, 0
        %v3739 = vsel %vm2909, %v3709, 0
        %v3742 = vsel %vm2909, %v3710, 0
        %v3745 = vsel %vm3661, %v3728, 0
        %3747 = vmatpush.bf16.msra.mxu0 0
        %3748 = vmatpush.bf16.msra.mxu0 0
        %3749 = vmatpush.bf16.msra.mxu0 0
        %3750 = vmatpush.bf16.msra.mxu0 0
        %3751 = vmatpush.bf16.msra.mxu0 %v3745
        %3752 = vmatpush.bf16.msra.mxu0 %v3727
        %3753 = vmatpush.bf16.msra.mxu0 %v3726
        %3754 = vmatpush.bf16.msra.mxu0 %v3725
        %3755 = vmatmul.bf16.gmra.mxu0 %v3733
        %v3756 = vpop.f32.mrf.mxu0
        %v3757 = vadd.f32 0.0, %v3756
        %v3758 = vpop.f32.mrf.mxu0
        %v3759 = vadd.f32 0.0, %v3758
        %3760 = vmatmul.bf16.gmra.mxu0 %v3736
        %v3761 = vpop.f32.mrf.mxu0
        %v3762 = vadd.f32 0.0, %v3761
        %v3763 = vpop.f32.mrf.mxu0
        %v3764 = vadd.f32 0.0, %v3763
        %3765 = vmatmul.bf16.gmra.mxu0 %v3739
        %v3766 = vpop.f32.mrf.mxu0
        %v3767 = vadd.f32 0.0, %v3766
        %v3768 = vpop.f32.mrf.mxu0
        %v3769 = vadd.f32 0.0, %v3768
        %3770 = vmatmul.bf16.gmra.mxu0 %v3742
        %v3771 = vpop.f32.mrf.mxu0
        %v3772 = vadd.f32 0.0, %v3771
        %v3773 = vpop.f32.mrf.mxu0
        %3774 = vdwg.mxu0
        %v3782 = vunpack.c.l.b16 %v3596
        %v3783 = vunpack.c.l.b16 %v3597
        %v3784 = vunpack.c.l.b16 %v3598
        %v3785 = vunpack.c.l.b16 %v3599
        %v3786 = vunpack.c.l.b16 %v3600
        %v3787 = vunpack.c.l.b16 %v3601
        %v3788 = vunpack.c.l.b16 %v3602
        %v3789 = vpack.c.b16 %v3783, %v3782
        %v3790 = vpack.c.b16 %v3785, %v3784
        %v3791 = vpack.c.b16 %v3787, %v3786
        %v3792 = vpack.c.b16 %v3788, %v3788
        %v3800 = vunpack.c.l.b16 %v2546
        %v3801 = vunpack.c.l.b16 %v2547
        %v3802 = vunpack.c.l.b16 %v2548
        %v3803 = vunpack.c.l.b16 %v2549
        %v3804 = vunpack.c.l.b16 %v2550
        %v3805 = vunpack.c.l.b16 %v2551
        %v3806 = vunpack.c.l.b16 %v2552
        %v3807 = vpack.c.b16 %v3801, %v3800
        %v3808 = vpack.c.b16 %v3803, %v3802
        %v3809 = vpack.c.b16 %v3805, %v3804
        %v3810 = vpack.c.b16 %v3806, %v3806
        %v3815 = vsel %vm2909, %v3789, 0
        %v3818 = vsel %vm2909, %v3790, 0
        %v3821 = vsel %vm2909, %v3791, 0
        %v3824 = vsel %vm2909, %v3792, 0
        %v3827 = vsel %vm3661, %v3810, 0
        %3829 = vmatpush.bf16.msra.mxu0 0
        %3830 = vmatpush.bf16.msra.mxu0 0
        %3831 = vmatpush.bf16.msra.mxu0 0
        %3832 = vmatpush.bf16.msra.mxu0 0
        %3833 = vmatpush.bf16.msra.mxu0 %v3827
        %3834 = vmatpush.bf16.msra.mxu0 %v3809
        %3835 = vmatpush.bf16.msra.mxu0 %v3808
        %3836 = vmatpush.bf16.msra.mxu0 %v3807
        %3837 = vmatmul.bf16.gmra.mxu0 %v3815
        %v3838 = vpop.f32.mrf.mxu0
        %v3839 = vadd.f32 0.0, %v3838
        %v3840 = vpop.f32.mrf.mxu0
        %v3841 = vadd.f32 0.0, %v3840
        %3842 = vmatmul.bf16.gmra.mxu0 %v3818
        %v3843 = vpop.f32.mrf.mxu0
        %v3844 = vadd.f32 0.0, %v3843
        %v3845 = vpop.f32.mrf.mxu0
        %v3846 = vadd.f32 0.0, %v3845
        %3847 = vmatmul.bf16.gmra.mxu0 %v3821
        %v3848 = vpop.f32.mrf.mxu0
        %v3849 = vadd.f32 0.0, %v3848
        %v3850 = vpop.f32.mrf.mxu0
        %v3851 = vadd.f32 0.0, %v3850
        %3852 = vmatmul.bf16.gmra.mxu0 %v3824
        %v3853 = vpop.f32.mrf.mxu0
        %v3854 = vadd.f32 0.0, %v3853
        %v3855 = vpop.f32.mrf.mxu0
        %3856 = vdwg.mxu0
        %v3864 = vunpack.c.l.b16 %v3603
        %v3865 = vunpack.c.l.b16 %v3604
        %v3866 = vunpack.c.l.b16 %v3605
        %v3867 = vunpack.c.l.b16 %v3606
        %v3868 = vunpack.c.l.b16 %v3607
        %v3869 = vunpack.c.l.b16 %v3608
        %v3870 = vunpack.c.l.b16 %v3609
        %v3871 = vpack.c.b16 %v3865, %v3864
        %v3872 = vpack.c.b16 %v3867, %v3866
        %v3873 = vpack.c.b16 %v3869, %v3868
        %v3874 = vpack.c.b16 %v3870, %v3870
        %v3882 = vunpack.c.l.b16 %v2553
        %v3883 = vunpack.c.l.b16 %v2554
        %v3884 = vunpack.c.l.b16 %v2555
        %v3885 = vunpack.c.l.b16 %v2556
        %v3886 = vunpack.c.l.b16 %v2557
        %v3887 = vunpack.c.l.b16 %v2558
        %v3888 = vunpack.c.l.b16 %v2559
        %v3889 = vpack.c.b16 %v3883, %v3882
        %v3890 = vpack.c.b16 %v3885, %v3884
        %v3891 = vpack.c.b16 %v3887, %v3886
        %v3892 = vpack.c.b16 %v3888, %v3888
        %v3897 = vsel %vm2909, %v3871, 0
        %v3900 = vsel %vm2909, %v3872, 0
        %v3903 = vsel %vm2909, %v3873, 0
        %v3906 = vsel %vm2909, %v3874, 0
        %v3909 = vsel %vm3661, %v3892, 0
        %3911 = vmatpush.bf16.msra.mxu0 0
        %3912 = vmatpush.bf16.msra.mxu0 0
        %3913 = vmatpush.bf16.msra.mxu0 0
        %3914 = vmatpush.bf16.msra.mxu0 0
        %3915 = vmatpush.bf16.msra.mxu0 %v3909
        %3916 = vmatpush.bf16.msra.mxu0 %v3891
        %3917 = vmatpush.bf16.msra.mxu0 %v3890
        %3918 = vmatpush.bf16.msra.mxu0 %v3889
        %3919 = vmatmul.bf16.gmra.mxu0 %v3897
        %v3920 = vpop.f32.mrf.mxu0
        %v3921 = vadd.f32 0.0, %v3920
        %v3922 = vpop.f32.mrf.mxu0
        %v3923 = vadd.f32 0.0, %v3922
        %3924 = vmatmul.bf16.gmra.mxu0 %v3900
        %v3925 = vpop.f32.mrf.mxu0
        %v3926 = vadd.f32 0.0, %v3925
        %v3927 = vpop.f32.mrf.mxu0
        %v3928 = vadd.f32 0.0, %v3927
        %3929 = vmatmul.bf16.gmra.mxu0 %v3903
        %v3930 = vpop.f32.mrf.mxu0
        %v3931 = vadd.f32 0.0, %v3930
        %v3932 = vpop.f32.mrf.mxu0
        %v3933 = vadd.f32 0.0, %v3932
        %3934 = vmatmul.bf16.gmra.mxu0 %v3906
        %v3935 = vpop.f32.mrf.mxu0
        %v3936 = vadd.f32 0.0, %v3935
        %v3937 = vpop.f32.mrf.mxu0
        %3938 = vdwg.mxu0
        %v3939 = vpack.c.bf16 %v3677, %v3675
        %v3940 = vpack.c.bf16 %v3682, %v3680
        %v3941 = vpack.c.bf16 %v3687, %v3685
        %v3942 = vpack.c.bf16 %v3757, %v3690
        %v3943 = vpack.c.bf16 %v3762, %v3759
        %v3944 = vpack.c.bf16 %v3767, %v3764
        %v3945 = vpack.c.bf16 %v3772, %v3769
        %v3946 = vpack.c.bf16 %v3841, %v3839
        %v3947 = vpack.c.bf16 %v3846, %v3844
        %v3948 = vpack.c.bf16 %v3851, %v3849
        %v3949 = vpack.c.bf16 %v3921, %v3854
        %v3950 = vpack.c.bf16 %v3926, %v3923
        %v3951 = vpack.c.bf16 %v3931, %v3928
        %v3952 = vpack.c.bf16 %v3936, %v3933
        %v3953 = vld [vmem:[#allocation14] sm:$0xff]
        %v3954 = vld [vmem:[#allocation14 + $0x8] sm:$0xff]
        %v3955 = vld [vmem:[#allocation14 + $0x10] sm:$0xff]
        %v3956 = vld [vmem:[#allocation14 + $0x18] sm:$0xff]
        %v3957 = vld [vmem:[#allocation14 + $0x20] sm:$0xff]
        %v3958 = vld [vmem:[#allocation14 + $0x28] sm:$0xff]
        %v3959 = vld [vmem:[#allocation14 + $0x30] sm:$0xff]
        %v3960 = vld [vmem:[#allocation14 + $0x38] sm:$0xff]
        %v3961 = vld [vmem:[#allocation14 + $0x40] sm:$0xff]
        %v3962 = vld [vmem:[#allocation14 + $0x48] sm:$0xff]
        %v3963 = vld [vmem:[#allocation14 + $0x50] sm:$0xff]
        %v3964 = vld [vmem:[#allocation14 + $0x58] sm:$0xff]
        %v3965 = vld [vmem:[#allocation14 + $0x60] sm:$0xff]
        %v3966 = vld [vmem:[#allocation14 + $0x68] sm:$0xff]
        %v3967 = vld [vmem:[#allocation14 + $0x70] sm:$0xff]
        %v3968 = vld [vmem:[#allocation14 + $0x78] sm:$0xff]
        %v3969 = vld [vmem:[#allocation14 + $0x80] sm:$0xff]
        %v3970 = vld [vmem:[#allocation14 + $0x88] sm:$0xff]
        %v3971 = vld [vmem:[#allocation14 + $0x90] sm:$0xff]
        %v3972 = vld [vmem:[#allocation14 + $0x98] sm:$0xff]
        %v3973 = vld [vmem:[#allocation14 + $0xa0] sm:$0xff]
        %v3974 = vld [vmem:[#allocation14 + $0xa8] sm:$0xff]
        %v3975 = vld [vmem:[#allocation14 + $0xb0] sm:$0xff]
        %v3976 = vld [vmem:[#allocation14 + $0xb8] sm:$0xff]
        %v3977 = vld [vmem:[#allocation14 + $0xc0] sm:$0xff]
        %v3978 = vld [vmem:[#allocation14 + $0xc8] sm:$0xff]
        %v3979 = vld [vmem:[#allocation14 + $0xd0] sm:$0xff]
        %v3980 = vld [vmem:[#allocation14 + $0xd8] sm:$0xff]
        %v3981 = vld [vmem:[#allocation14 + $0xe0] sm:$0xff]
        %v3982 = vld [vmem:[#allocation14 + $0xe8] sm:$0xff]
        %v3983 = vld [vmem:[#allocation14 + $0xf0] sm:$0xff]
        %v3984 = vld [vmem:[#allocation14 + $0xf8] sm:$0xff]
        %v4017 = vunpack.c.l.b16 %v3953
        %v4018 = vunpack.c.h.b16 %v3953
        %v4019 = vunpack.c.l.b16 %v3954
        %v4020 = vunpack.c.h.b16 %v3954
        %v4021 = vunpack.c.l.b16 %v3955
        %v4022 = vunpack.c.h.b16 %v3955
        %v4023 = vunpack.c.l.b16 %v3956
        %v4024 = vunpack.c.h.b16 %v3956
        %v4025 = vunpack.c.l.b16 %v3957
        %v4026 = vunpack.c.h.b16 %v3957
        %v4027 = vunpack.c.l.b16 %v3958
        %v4028 = vunpack.c.h.b16 %v3958
        %v4029 = vunpack.c.l.b16 %v3959
        %v4030 = vunpack.c.h.b16 %v3959
        %v4031 = vunpack.c.l.b16 %v3960
        %v4032 = vunpack.c.h.b16 %v3960
        %v4033 = vunpack.c.l.b16 %v3961
        %v4034 = vunpack.c.h.b16 %v3961
        %v4035 = vunpack.c.l.b16 %v3962
        %v4036 = vunpack.c.h.b16 %v3962
        %v4037 = vunpack.c.l.b16 %v3963
        %v4038 = vunpack.c.h.b16 %v3963
        %v4039 = vunpack.c.l.b16 %v3964
        %v4040 = vunpack.c.h.b16 %v3964
        %v4041 = vunpack.c.l.b16 %v3965
        %v4042 = vunpack.c.h.b16 %v3965
        %v4043 = vunpack.c.l.b16 %v3966
        %v4044 = vunpack.c.h.b16 %v3966
        %v4045 = vunpack.c.l.b16 %v3967
        %v4046 = vunpack.c.h.b16 %v3967
        %v4047 = vunpack.c.l.b16 %v3968
        %v4048 = vunpack.c.h.b16 %v3968
        %v4049 = vunpack.c.l.b16 %v3969
        %v4050 = vunpack.c.h.b16 %v3969
        %v4051 = vunpack.c.l.b16 %v3970
        %v4052 = vunpack.c.h.b16 %v3970
        %v4053 = vunpack.c.l.b16 %v3971
        %v4054 = vunpack.c.h.b16 %v3971
        %v4055 = vunpack.c.l.b16 %v3972
        %v4056 = vunpack.c.h.b16 %v3972
        %v4057 = vunpack.c.l.b16 %v3973
        %v4058 = vunpack.c.h.b16 %v3973
        %v4059 = vunpack.c.l.b16 %v3974
        %v4060 = vunpack.c.h.b16 %v3974
        %v4061 = vunpack.c.l.b16 %v3975
        %v4062 = vunpack.c.h.b16 %v3975
        %v4063 = vunpack.c.l.b16 %v3976
        %v4064 = vunpack.c.h.b16 %v3976
        %v4065 = vunpack.c.l.b16 %v3977
        %v4066 = vunpack.c.h.b16 %v3977
        %v4067 = vunpack.c.l.b16 %v3978
        %v4068 = vunpack.c.h.b16 %v3978
        %v4069 = vunpack.c.l.b16 %v3979
        %v4070 = vunpack.c.h.b16 %v3979
        %v4071 = vunpack.c.l.b16 %v3980
        %v4072 = vunpack.c.h.b16 %v3980
        %v4073 = vunpack.c.l.b16 %v3981
        %v4074 = vunpack.c.h.b16 %v3981
        %v4075 = vunpack.c.l.b16 %v3982
        %v4076 = vunpack.c.h.b16 %v3982
        %v4077 = vunpack.c.l.b16 %v3983
        %v4078 = vunpack.c.h.b16 %v3983
        %v4079 = vunpack.c.l.b16 %v3984
        %v4080 = vunpack.c.h.b16 %v3984
        %v4081 = vpack.c.b16 %v4021, %v4017
        %v4082 = vpack.c.b16 %v4022, %v4018
        %v4083 = vpack.c.b16 %v4023, %v4019
        %v4084 = vpack.c.b16 %v4024, %v4020
        %v4085 = vpack.c.b16 %v4029, %v4025
        %v4086 = vpack.c.b16 %v4030, %v4026
        %v4087 = vpack.c.b16 %v4031, %v4027
        %v4088 = vpack.c.b16 %v4032, %v4028
        %v4089 = vpack.c.b16 %v4037, %v4033
        %v4090 = vpack.c.b16 %v4038, %v4034
        %v4091 = vpack.c.b16 %v4039, %v4035
        %v4092 = vpack.c.b16 %v4040, %v4036
        %v4093 = vpack.c.b16 %v4045, %v4041
        %v4094 = vpack.c.b16 %v4046, %v4042
        %v4095 = vpack.c.b16 %v4047, %v4043
        %v4096 = vpack.c.b16 %v4048, %v4044
        %v4097 = vpack.c.b16 %v4053, %v4049
        %v4098 = vpack.c.b16 %v4054, %v4050
        %v4099 = vpack.c.b16 %v4055, %v4051
        %v4100 = vpack.c.b16 %v4056, %v4052
        %v4101 = vpack.c.b16 %v4061, %v4057
        %v4102 = vpack.c.b16 %v4062, %v4058
        %v4103 = vpack.c.b16 %v4063, %v4059
        %v4104 = vpack.c.b16 %v4064, %v4060
        %v4105 = vpack.c.b16 %v4069, %v4065
        %v4106 = vpack.c.b16 %v4070, %v4066
        %v4107 = vpack.c.b16 %v4071, %v4067
        %v4108 = vpack.c.b16 %v4072, %v4068
        %v4109 = vpack.c.b16 %v4077, %v4073
        %v4110 = vpack.c.b16 %v4078, %v4074
        %v4111 = vpack.c.b16 %v4079, %v4075
        %v4112 = vpack.c.b16 %v4080, %v4076
        %4145 = vmatpush.bf16.msra.mxu0 %v4109
        %4146 = vmatpush.bf16.msra.mxu0 %v4105
        %4147 = vmatpush.bf16.msra.mxu0 %v4101
        %4148 = vmatpush.bf16.msra.mxu0 %v4097
        %4149 = vmatpush.bf16.msra.mxu0 %v4093
        %4150 = vmatpush.bf16.msra.mxu0 %v4089
        %4151 = vmatpush.bf16.msra.mxu0 %v4085
        %4152 = vmatpush.bf16.msra.mxu0 %v4081
        %4153 = vmatmul.bf16.gmra.mxu0 %v3939
        %v4154 = vpop.f32.mrf.mxu0
        %v4155 = vadd.f32 0.0, %v4154
        %v4156 = vpop.f32.mrf.mxu0
        %v4157 = vadd.f32 0.0, %v4156
        %4158 = vmatmul.bf16.gmra.mxu0 %v3940
        %v4159 = vpop.f32.mrf.mxu0
        %v4160 = vadd.f32 0.0, %v4159
        %v4161 = vpop.f32.mrf.mxu0
        %v4162 = vadd.f32 0.0, %v4161
        %4163 = vmatmul.bf16.gmra.mxu0 %v3941
        %v4164 = vpop.f32.mrf.mxu0
        %v4165 = vadd.f32 0.0, %v4164
        %v4166 = vpop.f32.mrf.mxu0
        %v4167 = vadd.f32 0.0, %v4166
        %4168 = vmatmul.bf16.gmra.mxu0 %v3942
        %v4169 = vpop.f32.mrf.mxu0
        %v4170 = vadd.f32 0.0, %v4169
        %v4171 = vpop.f32.mrf.mxu0
        %v4172 = vadd.f32 0.0, %v4171
        %4173 = vmatmul.bf16.gmra.mxu0 %v3943
        %v4174 = vpop.f32.mrf.mxu0
        %v4175 = vadd.f32 0.0, %v4174
        %v4176 = vpop.f32.mrf.mxu0
        %v4177 = vadd.f32 0.0, %v4176
        %4178 = vmatmul.bf16.gmra.mxu0 %v3944
        %v4179 = vpop.f32.mrf.mxu0
        %v4180 = vadd.f32 0.0, %v4179
        %v4181 = vpop.f32.mrf.mxu0
        %v4182 = vadd.f32 0.0, %v4181
        %4183 = vmatmul.bf16.gmra.mxu0 %v3945
        %v4184 = vpop.f32.mrf.mxu0
        %v4185 = vadd.f32 0.0, %v4184
        %v4186 = vpop.f32.mrf.mxu0
        %v4187 = vadd.f32 0.0, %v4186
        %4188 = vmatmul.bf16.gmra.mxu0 %v3946
        %v4189 = vpop.f32.mrf.mxu0
        %v4190 = vadd.f32 0.0, %v4189
        %v4191 = vpop.f32.mrf.mxu0
        %v4192 = vadd.f32 0.0, %v4191
        %4193 = vmatmul.bf16.gmra.mxu0 %v3947
        %v4194 = vpop.f32.mrf.mxu0
        %v4195 = vadd.f32 0.0, %v4194
        %v4196 = vpop.f32.mrf.mxu0
        %v4197 = vadd.f32 0.0, %v4196
        %4198 = vmatmul.bf16.gmra.mxu0 %v3948
        %v4199 = vpop.f32.mrf.mxu0
        %v4200 = vadd.f32 0.0, %v4199
        %v4201 = vpop.f32.mrf.mxu0
        %v4202 = vadd.f32 0.0, %v4201
        %4203 = vmatmul.bf16.gmra.mxu0 %v3949
        %v4204 = vpop.f32.mrf.mxu0
        %v4205 = vadd.f32 0.0, %v4204
        %v4206 = vpop.f32.mrf.mxu0
        %v4207 = vadd.f32 0.0, %v4206
        %4208 = vmatmul.bf16.gmra.mxu0 %v3950
        %v4209 = vpop.f32.mrf.mxu0
        %v4210 = vadd.f32 0.0, %v4209
        %v4211 = vpop.f32.mrf.mxu0
        %v4212 = vadd.f32 0.0, %v4211
        %4213 = vmatmul.bf16.gmra.mxu0 %v3951
        %v4214 = vpop.f32.mrf.mxu0
        %v4215 = vadd.f32 0.0, %v4214
        %v4216 = vpop.f32.mrf.mxu0
        %v4217 = vadd.f32 0.0, %v4216
        %4218 = vmatmul.bf16.gmra.mxu0 %v3952
        %v4219 = vpop.f32.mrf.mxu0
        %v4220 = vadd.f32 0.0, %v4219
        %v4221 = vpop.f32.mrf.mxu0
        %v4222 = vadd.f32 0.0, %v4221
        %4223 = vdwg.mxu0
        %4224 = vmatpush.bf16.msra.mxu0 %v4110
        %4225 = vmatpush.bf16.msra.mxu0 %v4106
        %4226 = vmatpush.bf16.msra.mxu0 %v4102
        %4227 = vmatpush.bf16.msra.mxu0 %v4098
        %4228 = vmatpush.bf16.msra.mxu0 %v4094
        %4229 = vmatpush.bf16.msra.mxu0 %v4090
        %4230 = vmatpush.bf16.msra.mxu0 %v4086
        %4231 = vmatpush.bf16.msra.mxu0 %v4082
        %4232 = vmatmul.bf16.gmra.mxu0 %v3939
        %v4233 = vpop.f32.mrf.mxu0
        %v4234 = vadd.f32 0.0, %v4233
        %v4235 = vpop.f32.mrf.mxu0
        %v4236 = vadd.f32 0.0, %v4235
        %4237 = vmatmul.bf16.gmra.mxu0 %v3940
        %v4238 = vpop.f32.mrf.mxu0
        %v4239 = vadd.f32 0.0, %v4238
        %v4240 = vpop.f32.mrf.mxu0
        %v4241 = vadd.f32 0.0, %v4240
        %4242 = vmatmul.bf16.gmra.mxu0 %v3941
        %v4243 = vpop.f32.mrf.mxu0
        %v4244 = vadd.f32 0.0, %v4243
        %v4245 = vpop.f32.mrf.mxu0
        %v4246 = vadd.f32 0.0, %v4245
        %4247 = vmatmul.bf16.gmra.mxu0 %v3942
        %v4248 = vpop.f32.mrf.mxu0
        %v4249 = vadd.f32 0.0, %v4248
        %v4250 = vpop.f32.mrf.mxu0
        %v4251 = vadd.f32 0.0, %v4250
        %4252 = vmatmul.bf16.gmra.mxu0 %v3943
        %v4253 = vpop.f32.mrf.mxu0
        %v4254 = vadd.f32 0.0, %v4253
        %v4255 = vpop.f32.mrf.mxu0
        %v4256 = vadd.f32 0.0, %v4255
        %4257 = vmatmul.bf16.gmra.mxu0 %v3944
        %v4258 = vpop.f32.mrf.mxu0
        %v4259 = vadd.f32 0.0, %v4258
        %v4260 = vpop.f32.mrf.mxu0
        %v4261 = vadd.f32 0.0, %v4260
        %4262 = vmatmul.bf16.gmra.mxu0 %v3945
        %v4263 = vpop.f32.mrf.mxu0
        %v4264 = vadd.f32 0.0, %v4263
        %v4265 = vpop.f32.mrf.mxu0
        %v4266 = vadd.f32 0.0, %v4265
        %4267 = vmatmul.bf16.gmra.mxu0 %v3946
        %v4268 = vpop.f32.mrf.mxu0
        %v4269 = vadd.f32 0.0, %v4268
        %v4270 = vpop.f32.mrf.mxu0
        %v4271 = vadd.f32 0.0, %v4270
        %4272 = vmatmul.bf16.gmra.mxu0 %v3947
        %v4273 = vpop.f32.mrf.mxu0
        %v4274 = vadd.f32 0.0, %v4273
        %v4275 = vpop.f32.mrf.mxu0
        %v4276 = vadd.f32 0.0, %v4275
        %4277 = vmatmul.bf16.gmra.mxu0 %v3948
        %v4278 = vpop.f32.mrf.mxu0
        %v4279 = vadd.f32 0.0, %v4278
        %v4280 = vpop.f32.mrf.mxu0
        %v4281 = vadd.f32 0.0, %v4280
        %4282 = vmatmul.bf16.gmra.mxu0 %v3949
        %v4283 = vpop.f32.mrf.mxu0
        %v4284 = vadd.f32 0.0, %v4283
        %v4285 = vpop.f32.mrf.mxu0
        %v4286 = vadd.f32 0.0, %v4285
        %4287 = vmatmul.bf16.gmra.mxu0 %v3950
        %v4288 = vpop.f32.mrf.mxu0
        %v4289 = vadd.f32 0.0, %v4288
        %v4290 = vpop.f32.mrf.mxu0
        %v4291 = vadd.f32 0.0, %v4290
        %4292 = vmatmul.bf16.gmra.mxu0 %v3951
        %v4293 = vpop.f32.mrf.mxu0
        %v4294 = vadd.f32 0.0, %v4293
        %v4295 = vpop.f32.mrf.mxu0
        %v4296 = vadd.f32 0.0, %v4295
        %4297 = vmatmul.bf16.gmra.mxu0 %v3952
        %v4298 = vpop.f32.mrf.mxu0
        %v4299 = vadd.f32 0.0, %v4298
        %v4300 = vpop.f32.mrf.mxu0
        %v4301 = vadd.f32 0.0, %v4300
        %4302 = vdwg.mxu0
        %4303 = vmatpush.bf16.msra.mxu0 %v4111
        %4304 = vmatpush.bf16.msra.mxu0 %v4107
        %4305 = vmatpush.bf16.msra.mxu0 %v4103
        %4306 = vmatpush.bf16.msra.mxu0 %v4099
        %4307 = vmatpush.bf16.msra.mxu0 %v4095
        %4308 = vmatpush.bf16.msra.mxu0 %v4091
        %4309 = vmatpush.bf16.msra.mxu0 %v4087
        %4310 = vmatpush.bf16.msra.mxu0 %v4083
        %4311 = vmatmul.bf16.gmra.mxu0 %v3939
        %v4312 = vpop.f32.mrf.mxu0
        %v4313 = vadd.f32 0.0, %v4312
        %v4314 = vpop.f32.mrf.mxu0
        %v4315 = vadd.f32 0.0, %v4314
        %4316 = vmatmul.bf16.gmra.mxu0 %v3940
        %v4317 = vpop.f32.mrf.mxu0
        %v4318 = vadd.f32 0.0, %v4317
        %v4319 = vpop.f32.mrf.mxu0
        %v4320 = vadd.f32 0.0, %v4319
        %4321 = vmatmul.bf16.gmra.mxu0 %v3941
        %v4322 = vpop.f32.mrf.mxu0
        %v4323 = vadd.f32 0.0, %v4322
        %v4324 = vpop.f32.mrf.mxu0
        %v4325 = vadd.f32 0.0, %v4324
        %4326 = vmatmul.bf16.gmra.mxu0 %v3942
        %v4327 = vpop.f32.mrf.mxu0
        %v4328 = vadd.f32 0.0, %v4327
        %v4329 = vpop.f32.mrf.mxu0
        %v4330 = vadd.f32 0.0, %v4329
        %4331 = vmatmul.bf16.gmra.mxu0 %v3943
        %v4332 = vpop.f32.mrf.mxu0
        %v4333 = vadd.f32 0.0, %v4332
        %v4334 = vpop.f32.mrf.mxu0
        %v4335 = vadd.f32 0.0, %v4334
        %4336 = vmatmul.bf16.gmra.mxu0 %v3944
        %v4337 = vpop.f32.mrf.mxu0
        %v4338 = vadd.f32 0.0, %v4337
        %v4339 = vpop.f32.mrf.mxu0
        %v4340 = vadd.f32 0.0, %v4339
        %4341 = vmatmul.bf16.gmra.mxu0 %v3945
        %v4342 = vpop.f32.mrf.mxu0
        %v4343 = vadd.f32 0.0, %v4342
        %v4344 = vpop.f32.mrf.mxu0
        %v4345 = vadd.f32 0.0, %v4344
        %4346 = vmatmul.bf16.gmra.mxu0 %v3946
        %v4347 = vpop.f32.mrf.mxu0
        %v4348 = vadd.f32 0.0, %v4347
        %v4349 = vpop.f32.mrf.mxu0
        %v4350 = vadd.f32 0.0, %v4349
        %4351 = vmatmul.bf16.gmra.mxu0 %v3947
        %v4352 = vpop.f32.mrf.mxu0
        %v4353 = vadd.f32 0.0, %v4352
        %v4354 = vpop.f32.mrf.mxu0
        %v4355 = vadd.f32 0.0, %v4354
        %4356 = vmatmul.bf16.gmra.mxu0 %v3948
        %v4357 = vpop.f32.mrf.mxu0
        %v4358 = vadd.f32 0.0, %v4357
        %v4359 = vpop.f32.mrf.mxu0
        %v4360 = vadd.f32 0.0, %v4359
        %4361 = vmatmul.bf16.gmra.mxu0 %v3949
        %v4362 = vpop.f32.mrf.mxu0
        %v4363 = vadd.f32 0.0, %v4362
        %v4364 = vpop.f32.mrf.mxu0
        %v4365 = vadd.f32 0.0, %v4364
        %4366 = vmatmul.bf16.gmra.mxu0 %v3950
        %v4367 = vpop.f32.mrf.mxu0
        %v4368 = vadd.f32 0.0, %v4367
        %v4369 = vpop.f32.mrf.mxu0
        %v4370 = vadd.f32 0.0, %v4369
        %4371 = vmatmul.bf16.gmra.mxu0 %v3951
        %v4372 = vpop.f32.mrf.mxu0
        %v4373 = vadd.f32 0.0, %v4372
        %v4374 = vpop.f32.mrf.mxu0
        %v4375 = vadd.f32 0.0, %v4374
        %4376 = vmatmul.bf16.gmra.mxu0 %v3952
        %v4377 = vpop.f32.mrf.mxu0
        %v4378 = vadd.f32 0.0, %v4377
        %v4379 = vpop.f32.mrf.mxu0
        %v4380 = vadd.f32 0.0, %v4379
        %4381 = vdwg.mxu0
        %4382 = vmatpush.bf16.msra.mxu0 %v4112
        %4383 = vmatpush.bf16.msra.mxu0 %v4108
        %4384 = vmatpush.bf16.msra.mxu0 %v4104
        %4385 = vmatpush.bf16.msra.mxu0 %v4100
        %4386 = vmatpush.bf16.msra.mxu0 %v4096
        %4387 = vmatpush.bf16.msra.mxu0 %v4092
        %4388 = vmatpush.bf16.msra.mxu0 %v4088
        %4389 = vmatpush.bf16.msra.mxu0 %v4084
        %4390 = vmatmul.bf16.gmra.mxu0 %v3939
        %v4391 = vpop.f32.mrf.mxu0
        %v4392 = vadd.f32 0.0, %v4391
        %v4393 = vpop.f32.mrf.mxu0
        %v4394 = vadd.f32 0.0, %v4393
        %4395 = vmatmul.bf16.gmra.mxu0 %v3940
        %v4396 = vpop.f32.mrf.mxu0
        %v4397 = vadd.f32 0.0, %v4396
        %v4398 = vpop.f32.mrf.mxu0
        %v4399 = vadd.f32 0.0, %v4398
        %4400 = vmatmul.bf16.gmra.mxu0 %v3941
        %v4401 = vpop.f32.mrf.mxu0
        %v4402 = vadd.f32 0.0, %v4401
        %v4403 = vpop.f32.mrf.mxu0
        %v4404 = vadd.f32 0.0, %v4403
        %4405 = vmatmul.bf16.gmra.mxu0 %v3942
        %v4406 = vpop.f32.mrf.mxu0
        %v4407 = vadd.f32 0.0, %v4406
        %v4408 = vpop.f32.mrf.mxu0
        %v4409 = vadd.f32 0.0, %v4408
        %4410 = vmatmul.bf16.gmra.mxu0 %v3943
        %v4411 = vpop.f32.mrf.mxu0
        %v4412 = vadd.f32 0.0, %v4411
        %v4413 = vpop.f32.mrf.mxu0
        %v4414 = vadd.f32 0.0, %v4413
        %4415 = vmatmul.bf16.gmra.mxu0 %v3944
        %v4416 = vpop.f32.mrf.mxu0
        %v4417 = vadd.f32 0.0, %v4416
        %v4418 = vpop.f32.mrf.mxu0
        %v4419 = vadd.f32 0.0, %v4418
        %4420 = vmatmul.bf16.gmra.mxu0 %v3945
        %v4421 = vpop.f32.mrf.mxu0
        %v4422 = vadd.f32 0.0, %v4421
        %v4423 = vpop.f32.mrf.mxu0
        %v4424 = vadd.f32 0.0, %v4423
        %4425 = vmatmul.bf16.gmra.mxu0 %v3946
        %v4426 = vpop.f32.mrf.mxu0
        %v4427 = vadd.f32 0.0, %v4426
        %v4428 = vpop.f32.mrf.mxu0
        %v4429 = vadd.f32 0.0, %v4428
        %4430 = vmatmul.bf16.gmra.mxu0 %v3947
        %v4431 = vpop.f32.mrf.mxu0
        %v4432 = vadd.f32 0.0, %v4431
        %v4433 = vpop.f32.mrf.mxu0
        %v4434 = vadd.f32 0.0, %v4433
        %4435 = vmatmul.bf16.gmra.mxu0 %v3948
        %v4436 = vpop.f32.mrf.mxu0
        %v4437 = vadd.f32 0.0, %v4436
        %v4438 = vpop.f32.mrf.mxu0
        %v4439 = vadd.f32 0.0, %v4438
        %4440 = vmatmul.bf16.gmra.mxu0 %v3949
        %v4441 = vpop.f32.mrf.mxu0
        %v4442 = vadd.f32 0.0, %v4441
        %v4443 = vpop.f32.mrf.mxu0
        %v4444 = vadd.f32 0.0, %v4443
        %4445 = vmatmul.bf16.gmra.mxu0 %v3950
        %v4446 = vpop.f32.mrf.mxu0
        %v4447 = vadd.f32 0.0, %v4446
        %v4448 = vpop.f32.mrf.mxu0
        %v4449 = vadd.f32 0.0, %v4448
        %4450 = vmatmul.bf16.gmra.mxu0 %v3951
        %v4451 = vpop.f32.mrf.mxu0
        %v4452 = vadd.f32 0.0, %v4451
        %v4453 = vpop.f32.mrf.mxu0
        %v4454 = vadd.f32 0.0, %v4453
        %4455 = vmatmul.bf16.gmra.mxu0 %v3952
        %v4456 = vpop.f32.mrf.mxu0
        %v4457 = vadd.f32 0.0, %v4456
        %v4458 = vpop.f32.mrf.mxu0
        %v4459 = vadd.f32 0.0, %v4458
        %4460 = vdwg.mxu0
        %v4461 = vmul.f32 %v4155, %v4155
        %v4462 = vmul.f32 %v4234, %v4234
        %v4463 = vmul.f32 %v4313, %v4313
        %v4464 = vmul.f32 %v4392, %v4392
        %v4465 = vmul.f32 %v4157, %v4157
        %v4466 = vmul.f32 %v4236, %v4236
        %v4467 = vmul.f32 %v4315, %v4315
        %v4468 = vmul.f32 %v4394, %v4394
        %v4469 = vmul.f32 %v4160, %v4160
        %v4470 = vmul.f32 %v4239, %v4239
        %v4471 = vmul.f32 %v4318, %v4318
        %v4472 = vmul.f32 %v4397, %v4397
        %v4473 = vmul.f32 %v4162, %v4162
        %v4474 = vmul.f32 %v4241, %v4241
        %v4475 = vmul.f32 %v4320, %v4320
        %v4476 = vmul.f32 %v4399, %v4399
        %v4477 = vmul.f32 %v4165, %v4165
        %v4478 = vmul.f32 %v4244, %v4244
        %v4479 = vmul.f32 %v4323, %v4323
        %v4480 = vmul.f32 %v4402, %v4402
        %v4481 = vmul.f32 %v4167, %v4167
        %v4482 = vmul.f32 %v4246, %v4246
        %v4483 = vmul.f32 %v4325, %v4325
        %v4484 = vmul.f32 %v4404, %v4404
        %v4485 = vmul.f32 %v4170, %v4170
        %v4486 = vmul.f32 %v4249, %v4249
        %v4487 = vmul.f32 %v4328, %v4328
        %v4488 = vmul.f32 %v4407, %v4407
        %v4489 = vmul.f32 %v4172, %v4172
        %v4490 = vmul.f32 %v4251, %v4251
        %v4491 = vmul.f32 %v4330, %v4330
        %v4492 = vmul.f32 %v4409, %v4409
        %v4493 = vmul.f32 %v4175, %v4175
        %v4494 = vmul.f32 %v4254, %v4254
        %v4495 = vmul.f32 %v4333, %v4333
        %v4496 = vmul.f32 %v4412, %v4412
        %v4497 = vmul.f32 %v4177, %v4177
        %v4498 = vmul.f32 %v4256, %v4256
        %v4499 = vmul.f32 %v4335, %v4335
        %v4500 = vmul.f32 %v4414, %v4414
        %v4501 = vmul.f32 %v4180, %v4180
        %v4502 = vmul.f32 %v4259, %v4259
        %v4503 = vmul.f32 %v4338, %v4338
        %v4504 = vmul.f32 %v4417, %v4417
        %v4505 = vmul.f32 %v4182, %v4182
        %v4506 = vmul.f32 %v4261, %v4261
        %v4507 = vmul.f32 %v4340, %v4340
        %v4508 = vmul.f32 %v4419, %v4419
        %v4509 = vmul.f32 %v4185, %v4185
        %v4510 = vmul.f32 %v4264, %v4264
        %v4511 = vmul.f32 %v4343, %v4343
        %v4512 = vmul.f32 %v4422, %v4422
        %v4513 = vmul.f32 %v4187, %v4187
        %v4514 = vmul.f32 %v4266, %v4266
        %v4515 = vmul.f32 %v4345, %v4345
        %v4516 = vmul.f32 %v4424, %v4424
        %v4517 = vmul.f32 %v4190, %v4190
        %v4518 = vmul.f32 %v4269, %v4269
        %v4519 = vmul.f32 %v4348, %v4348
        %v4520 = vmul.f32 %v4427, %v4427
        %v4521 = vmul.f32 %v4192, %v4192
        %v4522 = vmul.f32 %v4271, %v4271
        %v4523 = vmul.f32 %v4350, %v4350
        %v4524 = vmul.f32 %v4429, %v4429
        %v4525 = vmul.f32 %v4195, %v4195
        %v4526 = vmul.f32 %v4274, %v4274
        %v4527 = vmul.f32 %v4353, %v4353
        %v4528 = vmul.f32 %v4432, %v4432
        %v4529 = vmul.f32 %v4197, %v4197
        %v4530 = vmul.f32 %v4276, %v4276
        %v4531 = vmul.f32 %v4355, %v4355
        %v4532 = vmul.f32 %v4434, %v4434
        %v4533 = vmul.f32 %v4200, %v4200
        %v4534 = vmul.f32 %v4279, %v4279
        %v4535 = vmul.f32 %v4358, %v4358
        %v4536 = vmul.f32 %v4437, %v4437
        %v4537 = vmul.f32 %v4202, %v4202
        %v4538 = vmul.f32 %v4281, %v4281
        %v4539 = vmul.f32 %v4360, %v4360
        %v4540 = vmul.f32 %v4439, %v4439
        %v4541 = vmul.f32 %v4205, %v4205
        %v4542 = vmul.f32 %v4284, %v4284
        %v4543 = vmul.f32 %v4363, %v4363
        %v4544 = vmul.f32 %v4442, %v4442
        %v4545 = vmul.f32 %v4207, %v4207
        %v4546 = vmul.f32 %v4286, %v4286
        %v4547 = vmul.f32 %v4365, %v4365
        %v4548 = vmul.f32 %v4444, %v4444
        %v4549 = vmul.f32 %v4210, %v4210
        %v4550 = vmul.f32 %v4289, %v4289
        %v4551 = vmul.f32 %v4368, %v4368
        %v4552 = vmul.f32 %v4447, %v4447
        %v4553 = vmul.f32 %v4212, %v4212
        %v4554 = vmul.f32 %v4291, %v4291
        %v4555 = vmul.f32 %v4370, %v4370
        %v4556 = vmul.f32 %v4449, %v4449
        %v4557 = vmul.f32 %v4215, %v4215
        %v4558 = vmul.f32 %v4294, %v4294
        %v4559 = vmul.f32 %v4373, %v4373
        %v4560 = vmul.f32 %v4452, %v4452
        %v4561 = vmul.f32 %v4217, %v4217
        %v4562 = vmul.f32 %v4296, %v4296
        %v4563 = vmul.f32 %v4375, %v4375
        %v4564 = vmul.f32 %v4454, %v4454
        %v4565 = vmul.f32 %v4220, %v4220
        %v4566 = vmul.f32 %v4299, %v4299
        %v4567 = vmul.f32 %v4378, %v4378
        %v4568 = vmul.f32 %v4457, %v4457
        %v4569 = vmul.f32 %v4222, %v4222
        %v4570 = vmul.f32 %v4301, %v4301
        %v4571 = vmul.f32 %v4380, %v4380
        %v4572 = vmul.f32 %v4459, %v4459
        %v4573 = vmul.f32 %v4155, %v4461
        %v4574 = vmul.f32 %v4234, %v4462
        %v4575 = vmul.f32 %v4313, %v4463
        %v4576 = vmul.f32 %v4392, %v4464
        %v4577 = vmul.f32 %v4157, %v4465
        %v4578 = vmul.f32 %v4236, %v4466
        %v4579 = vmul.f32 %v4315, %v4467
        %v4580 = vmul.f32 %v4394, %v4468
        %v4581 = vmul.f32 %v4160, %v4469
        %v4582 = vmul.f32 %v4239, %v4470
        %v4583 = vmul.f32 %v4318, %v4471
        %v4584 = vmul.f32 %v4397, %v4472
        %v4585 = vmul.f32 %v4162, %v4473
        %v4586 = vmul.f32 %v4241, %v4474
        %v4587 = vmul.f32 %v4320, %v4475
        %v4588 = vmul.f32 %v4399, %v4476
        %v4589 = vmul.f32 %v4165, %v4477
        %v4590 = vmul.f32 %v4244, %v4478
        %v4591 = vmul.f32 %v4323, %v4479
        %v4592 = vmul.f32 %v4402, %v4480
        %v4593 = vmul.f32 %v4167, %v4481
        %v4594 = vmul.f32 %v4246, %v4482
        %v4595 = vmul.f32 %v4325, %v4483
        %v4596 = vmul.f32 %v4404, %v4484
        %v4597 = vmul.f32 %v4170, %v4485
        %v4598 = vmul.f32 %v4249, %v4486
        %v4599 = vmul.f32 %v4328, %v4487
        %v4600 = vmul.f32 %v4407, %v4488
        %v4601 = vmul.f32 %v4172, %v4489
        %v4602 = vmul.f32 %v4251, %v4490
        %v4603 = vmul.f32 %v4330, %v4491
        %v4604 = vmul.f32 %v4409, %v4492
        %v4605 = vmul.f32 %v4175, %v4493
        %v4606 = vmul.f32 %v4254, %v4494
        %v4607 = vmul.f32 %v4333, %v4495
        %v4608 = vmul.f32 %v4412, %v4496
        %v4609 = vmul.f32 %v4177, %v4497
        %v4610 = vmul.f32 %v4256, %v4498
        %v4611 = vmul.f32 %v4335, %v4499
        %v4612 = vmul.f32 %v4414, %v4500
        %v4613 = vmul.f32 %v4180, %v4501
        %v4614 = vmul.f32 %v4259, %v4502
        %v4615 = vmul.f32 %v4338, %v4503
        %v4616 = vmul.f32 %v4417, %v4504
        %v4617 = vmul.f32 %v4182, %v4505
        %v4618 = vmul.f32 %v4261, %v4506
        %v4619 = vmul.f32 %v4340, %v4507
        %v4620 = vmul.f32 %v4419, %v4508
        %v4621 = vmul.f32 %v4185, %v4509
        %v4622 = vmul.f32 %v4264, %v4510
        %v4623 = vmul.f32 %v4343, %v4511
        %v4624 = vmul.f32 %v4422, %v4512
        %v4625 = vmul.f32 %v4187, %v4513
        %v4626 = vmul.f32 %v4266, %v4514
        %v4627 = vmul.f32 %v4345, %v4515
        %v4628 = vmul.f32 %v4424, %v4516
        %v4629 = vmul.f32 %v4190, %v4517
        %v4630 = vmul.f32 %v4269, %v4518
        %v4631 = vmul.f32 %v4348, %v4519
        %v4632 = vmul.f32 %v4427, %v4520
        %v4633 = vmul.f32 %v4192, %v4521
        %v4634 = vmul.f32 %v4271, %v4522
        %v4635 = vmul.f32 %v4350, %v4523
        %v4636 = vmul.f32 %v4429, %v4524
        %v4637 = vmul.f32 %v4195, %v4525
        %v4638 = vmul.f32 %v4274, %v4526
        %v4639 = vmul.f32 %v4353, %v4527
        %v4640 = vmul.f32 %v4432, %v4528
        %v4641 = vmul.f32 %v4197, %v4529
        %v4642 = vmul.f32 %v4276, %v4530
        %v4643 = vmul.f32 %v4355, %v4531
        %v4644 = vmul.f32 %v4434, %v4532
        %v4645 = vmul.f32 %v4200, %v4533
        %v4646 = vmul.f32 %v4279, %v4534
        %v4647 = vmul.f32 %v4358, %v4535
        %v4648 = vmul.f32 %v4437, %v4536
        %v4649 = vmul.f32 %v4202, %v4537
        %v4650 = vmul.f32 %v4281, %v4538
        %v4651 = vmul.f32 %v4360, %v4539
        %v4652 = vmul.f32 %v4439, %v4540
        %v4653 = vmul.f32 %v4205, %v4541
        %v4654 = vmul.f32 %v4284, %v4542
        %v4655 = vmul.f32 %v4363, %v4543
        %v4656 = vmul.f32 %v4442, %v4544
        %v4657 = vmul.f32 %v4207, %v4545
        %v4658 = vmul.f32 %v4286, %v4546
        %v4659 = vmul.f32 %v4365, %v4547
        %v4660 = vmul.f32 %v4444, %v4548
        %v4661 = vmul.f32 %v4210, %v4549
        %v4662 = vmul.f32 %v4289, %v4550
        %v4663 = vmul.f32 %v4368, %v4551
        %v4664 = vmul.f32 %v4447, %v4552
        %v4665 = vmul.f32 %v4212, %v4553
        %v4666 = vmul.f32 %v4291, %v4554
        %v4667 = vmul.f32 %v4370, %v4555
        %v4668 = vmul.f32 %v4449, %v4556
        %v4669 = vmul.f32 %v4215, %v4557
        %v4670 = vmul.f32 %v4294, %v4558
        %v4671 = vmul.f32 %v4373, %v4559
        %v4672 = vmul.f32 %v4452, %v4560
        %v4673 = vmul.f32 %v4217, %v4561
        %v4674 = vmul.f32 %v4296, %v4562
        %v4675 = vmul.f32 %v4375, %v4563
        %v4676 = vmul.f32 %v4454, %v4564
        %v4677 = vmul.f32 %v4220, %v4565
        %v4678 = vmul.f32 %v4299, %v4566
        %v4679 = vmul.f32 %v4378, %v4567
        %v4680 = vmul.f32 %v4457, %v4568
        %v4681 = vmul.f32 %v4222, %v4569
        %v4682 = vmul.f32 %v4301, %v4570
        %v4683 = vmul.f32 %v4380, %v4571
        %v4684 = vmul.f32 %v4459, %v4572
        %v4685 = vmul.f32 %v4573, 0.044715
        %v4686 = vmul.f32 %v4574, 0.044715
        %v4687 = vmul.f32 %v4575, 0.044715
        %v4688 = vmul.f32 %v4576, 0.044715
        %v4689 = vmul.f32 %v4577, 0.044715
        %v4690 = vmul.f32 %v4578, 0.044715
        %v4691 = vmul.f32 %v4579, 0.044715
        %v4692 = vmul.f32 %v4580, 0.044715
        %v4693 = vmul.f32 %v4581, 0.044715
        %v4694 = vmul.f32 %v4582, 0.044715
        %v4695 = vmul.f32 %v4583, 0.044715
        %v4696 = vmul.f32 %v4584, 0.044715
        %v4697 = vmul.f32 %v4585, 0.044715
        %v4698 = vmul.f32 %v4586, 0.044715
        %v4699 = vmul.f32 %v4587, 0.044715
        %v4700 = vmul.f32 %v4588, 0.044715
        %v4701 = vmul.f32 %v4589, 0.044715
        %v4702 = vmul.f32 %v4590, 0.044715
        %v4703 = vmul.f32 %v4591, 0.044715
        %v4704 = vmul.f32 %v4592, 0.044715
        %v4705 = vmul.f32 %v4593, 0.044715
        %v4706 = vmul.f32 %v4594, 0.044715
        %v4707 = vmul.f32 %v4595, 0.044715
        %v4708 = vmul.f32 %v4596, 0.044715
        %v4709 = vmul.f32 %v4597, 0.044715
        %v4710 = vmul.f32 %v4598, 0.044715
        %v4711 = vmul.f32 %v4599, 0.044715
        %v4712 = vmul.f32 %v4600, 0.044715
        %v4713 = vmul.f32 %v4601, 0.044715
        %v4714 = vmul.f32 %v4602, 0.044715
        %v4715 = vmul.f32 %v4603, 0.044715
        %v4716 = vmul.f32 %v4604, 0.044715
        %v4717 = vmul.f32 %v4605, 0.044715
        %v4718 = vmul.f32 %v4606, 0.044715
        %v4719 = vmul.f32 %v4607, 0.044715
        %v4720 = vmul.f32 %v4608, 0.044715
        %v4721 = vmul.f32 %v4609, 0.044715
        %v4722 = vmul.f32 %v4610, 0.044715
        %v4723 = vmul.f32 %v4611, 0.044715
        %v4724 = vmul.f32 %v4612, 0.044715
        %v4725 = vmul.f32 %v4613, 0.044715
        %v4726 = vmul.f32 %v4614, 0.044715
        %v4727 = vmul.f32 %v4615, 0.044715
        %v4728 = vmul.f32 %v4616, 0.044715
        %v4729 = vmul.f32 %v4617, 0.044715
        %v4730 = vmul.f32 %v4618, 0.044715
        %v4731 = vmul.f32 %v4619, 0.044715
        %v4732 = vmul.f32 %v4620, 0.044715
        %v4733 = vmul.f32 %v4621, 0.044715
        %v4734 = vmul.f32 %v4622, 0.044715
        %v4735 = vmul.f32 %v4623, 0.044715
        %v4736 = vmul.f32 %v4624, 0.044715
        %v4737 = vmul.f32 %v4625, 0.044715
        %v4738 = vmul.f32 %v4626, 0.044715
        %v4739 = vmul.f32 %v4627, 0.044715
        %v4740 = vmul.f32 %v4628, 0.044715
        %v4741 = vmul.f32 %v4629, 0.044715
        %v4742 = vmul.f32 %v4630, 0.044715
        %v4743 = vmul.f32 %v4631, 0.044715
        %v4744 = vmul.f32 %v4632, 0.044715
        %v4745 = vmul.f32 %v4633, 0.044715
        %v4746 = vmul.f32 %v4634, 0.044715
        %v4747 = vmul.f32 %v4635, 0.044715
        %v4748 = vmul.f32 %v4636, 0.044715
        %v4749 = vmul.f32 %v4637, 0.044715
        %v4750 = vmul.f32 %v4638, 0.044715
        %v4751 = vmul.f32 %v4639, 0.044715
        %v4752 = vmul.f32 %v4640, 0.044715
        %v4753 = vmul.f32 %v4641, 0.044715
        %v4754 = vmul.f32 %v4642, 0.044715
        %v4755 = vmul.f32 %v4643, 0.044715
        %v4756 = vmul.f32 %v4644, 0.044715
        %v4757 = vmul.f32 %v4645, 0.044715
        %v4758 = vmul.f32 %v4646, 0.044715
        %v4759 = vmul.f32 %v4647, 0.044715
        %v4760 = vmul.f32 %v4648, 0.044715
        %v4761 = vmul.f32 %v4649, 0.044715
        %v4762 = vmul.f32 %v4650, 0.044715
        %v4763 = vmul.f32 %v4651, 0.044715
        %v4764 = vmul.f32 %v4652, 0.044715
        %v4765 = vmul.f32 %v4653, 0.044715
        %v4766 = vmul.f32 %v4654, 0.044715
        %v4767 = vmul.f32 %v4655, 0.044715
        %v4768 = vmul.f32 %v4656, 0.044715
        %v4769 = vmul.f32 %v4657, 0.044715
        %v4770 = vmul.f32 %v4658, 0.044715
        %v4771 = vmul.f32 %v4659, 0.044715
        %v4772 = vmul.f32 %v4660, 0.044715
        %v4773 = vmul.f32 %v4661, 0.044715
        %v4774 = vmul.f32 %v4662, 0.044715
        %v4775 = vmul.f32 %v4663, 0.044715
        %v4776 = vmul.f32 %v4664, 0.044715
        %v4777 = vmul.f32 %v4665, 0.044715
        %v4778 = vmul.f32 %v4666, 0.044715
        %v4779 = vmul.f32 %v4667, 0.044715
        %v4780 = vmul.f32 %v4668, 0.044715
        %v4781 = vmul.f32 %v4669, 0.044715
        %v4782 = vmul.f32 %v4670, 0.044715
        %v4783 = vmul.f32 %v4671, 0.044715
        %v4784 = vmul.f32 %v4672, 0.044715
        %v4785 = vmul.f32 %v4673, 0.044715
        %v4786 = vmul.f32 %v4674, 0.044715
        %v4787 = vmul.f32 %v4675, 0.044715
        %v4788 = vmul.f32 %v4676, 0.044715
        %v4789 = vmul.f32 %v4677, 0.044715
        %v4790 = vmul.f32 %v4678, 0.044715
        %v4791 = vmul.f32 %v4679, 0.044715
        %v4792 = vmul.f32 %v4680, 0.044715
        %v4793 = vmul.f32 %v4681, 0.044715
        %v4794 = vmul.f32 %v4682, 0.044715
        %v4795 = vmul.f32 %v4683, 0.044715
        %v4796 = vmul.f32 %v4684, 0.044715
        %v4797 = vadd.f32 %v4155, %v4685
        %v4798 = vadd.f32 %v4234, %v4686
        %v4799 = vadd.f32 %v4313, %v4687
        %v4800 = vadd.f32 %v4392, %v4688
        %v4801 = vadd.f32 %v4157, %v4689
        %v4802 = vadd.f32 %v4236, %v4690
        %v4803 = vadd.f32 %v4315, %v4691
        %v4804 = vadd.f32 %v4394, %v4692
        %v4805 = vadd.f32 %v4160, %v4693
        %v4806 = vadd.f32 %v4239, %v4694
        %v4807 = vadd.f32 %v4318, %v4695
        %v4808 = vadd.f32 %v4397, %v4696
        %v4809 = vadd.f32 %v4162, %v4697
        %v4810 = vadd.f32 %v4241, %v4698
        %v4811 = vadd.f32 %v4320, %v4699
        %v4812 = vadd.f32 %v4399, %v4700
        %v4813 = vadd.f32 %v4165, %v4701
        %v4814 = vadd.f32 %v4244, %v4702
        %v4815 = vadd.f32 %v4323, %v4703
        %v4816 = vadd.f32 %v4402, %v4704
        %v4817 = vadd.f32 %v4167, %v4705
        %v4818 = vadd.f32 %v4246, %v4706
        %v4819 = vadd.f32 %v4325, %v4707
        %v4820 = vadd.f32 %v4404, %v4708
        %v4821 = vadd.f32 %v4170, %v4709
        %v4822 = vadd.f32 %v4249, %v4710
        %v4823 = vadd.f32 %v4328, %v4711
        %v4824 = vadd.f32 %v4407, %v4712
        %v4825 = vadd.f32 %v4172, %v4713
        %v4826 = vadd.f32 %v4251, %v4714
        %v4827 = vadd.f32 %v4330, %v4715
        %v4828 = vadd.f32 %v4409, %v4716
        %v4829 = vadd.f32 %v4175, %v4717
        %v4830 = vadd.f32 %v4254, %v4718
        %v4831 = vadd.f32 %v4333, %v4719
        %v4832 = vadd.f32 %v4412, %v4720
        %v4833 = vadd.f32 %v4177, %v4721
        %v4834 = vadd.f32 %v4256, %v4722
        %v4835 = vadd.f32 %v4335, %v4723
        %v4836 = vadd.f32 %v4414, %v4724
        %v4837 = vadd.f32 %v4180, %v4725
        %v4838 = vadd.f32 %v4259, %v4726
        %v4839 = vadd.f32 %v4338, %v4727
        %v4840 = vadd.f32 %v4417, %v4728
        %v4841 = vadd.f32 %v4182, %v4729
        %v4842 = vadd.f32 %v4261, %v4730
        %v4843 = vadd.f32 %v4340, %v4731
        %v4844 = vadd.f32 %v4419, %v4732
        %v4845 = vadd.f32 %v4185, %v4733
        %v4846 = vadd.f32 %v4264, %v4734
        %v4847 = vadd.f32 %v4343, %v4735
        %v4848 = vadd.f32 %v4422, %v4736
        %v4849 = vadd.f32 %v4187, %v4737
        %v4850 = vadd.f32 %v4266, %v4738
        %v4851 = vadd.f32 %v4345, %v4739
        %v4852 = vadd.f32 %v4424, %v4740
        %v4853 = vadd.f32 %v4190, %v4741
        %v4854 = vadd.f32 %v4269, %v4742
        %v4855 = vadd.f32 %v4348, %v4743
        %v4856 = vadd.f32 %v4427, %v4744
        %v4857 = vadd.f32 %v4192, %v4745
        %v4858 = vadd.f32 %v4271, %v4746
        %v4859 = vadd.f32 %v4350, %v4747
        %v4860 = vadd.f32 %v4429, %v4748
        %v4861 = vadd.f32 %v4195, %v4749
        %v4862 = vadd.f32 %v4274, %v4750
        %v4863 = vadd.f32 %v4353, %v4751
        %v4864 = vadd.f32 %v4432, %v4752
        %v4865 = vadd.f32 %v4197, %v4753
        %v4866 = vadd.f32 %v4276, %v4754
        %v4867 = vadd.f32 %v4355, %v4755
        %v4868 = vadd.f32 %v4434, %v4756
        %v4869 = vadd.f32 %v4200, %v4757
        %v4870 = vadd.f32 %v4279, %v4758
        %v4871 = vadd.f32 %v4358, %v4759
        %v4872 = vadd.f32 %v4437, %v4760
        %v4873 = vadd.f32 %v4202, %v4761
        %v4874 = vadd.f32 %v4281, %v4762
        %v4875 = vadd.f32 %v4360, %v4763
        %v4876 = vadd.f32 %v4439, %v4764
        %v4877 = vadd.f32 %v4205, %v4765
        %v4878 = vadd.f32 %v4284, %v4766
        %v4879 = vadd.f32 %v4363, %v4767
        %v4880 = vadd.f32 %v4442, %v4768
        %v4881 = vadd.f32 %v4207, %v4769
        %v4882 = vadd.f32 %v4286, %v4770
        %v4883 = vadd.f32 %v4365, %v4771
        %v4884 = vadd.f32 %v4444, %v4772
        %v4885 = vadd.f32 %v4210, %v4773
        %v4886 = vadd.f32 %v4289, %v4774
        %v4887 = vadd.f32 %v4368, %v4775
        %v4888 = vadd.f32 %v4447, %v4776
        %v4889 = vadd.f32 %v4212, %v4777
        %v4890 = vadd.f32 %v4291, %v4778
        %v4891 = vadd.f32 %v4370, %v4779
        %v4892 = vadd.f32 %v4449, %v4780
        %v4893 = vadd.f32 %v4215, %v4781
        %v4894 = vadd.f32 %v4294, %v4782
        %v4895 = vadd.f32 %v4373, %v4783
        %v4896 = vadd.f32 %v4452, %v4784
        %v4897 = vadd.f32 %v4217, %v4785
        %v4898 = vadd.f32 %v4296, %v4786
        %v4899 = vadd.f32 %v4375, %v4787
        %v4900 = vadd.f32 %v4454, %v4788
        %v4901 = vadd.f32 %v4220, %v4789
        %v4902 = vadd.f32 %v4299, %v4790
        %v4903 = vadd.f32 %v4378, %v4791
        %v4904 = vadd.f32 %v4457, %v4792
        %v4905 = vadd.f32 %v4222, %v4793
        %v4906 = vadd.f32 %v4301, %v4794
        %v4907 = vadd.f32 %v4380, %v4795
        %v4908 = vadd.f32 %v4459, %v4796
        %v4909 = vmul.f32 %v4797, 0.7978846
        %v4910 = vmul.f32 %v4798, 0.7978846
        %v4911 = vmul.f32 %v4799, 0.7978846
        %v4912 = vmul.f32 %v4800, 0.7978846
        %v4913 = vmul.f32 %v4801, 0.7978846
        %v4914 = vmul.f32 %v4802, 0.7978846
        %v4915 = vmul.f32 %v4803, 0.7978846
        %v4916 = vmul.f32 %v4804, 0.7978846
        %v4917 = vmul.f32 %v4805, 0.7978846
        %v4918 = vmul.f32 %v4806, 0.7978846
        %v4919 = vmul.f32 %v4807, 0.7978846
        %v4920 = vmul.f32 %v4808, 0.7978846
        %v4921 = vmul.f32 %v4809, 0.7978846
        %v4922 = vmul.f32 %v4810, 0.7978846
        %v4923 = vmul.f32 %v4811, 0.7978846
        %v4924 = vmul.f32 %v4812, 0.7978846
        %v4925 = vmul.f32 %v4813, 0.7978846
        %v4926 = vmul.f32 %v4814, 0.7978846
        %v4927 = vmul.f32 %v4815, 0.7978846
        %v4928 = vmul.f32 %v4816, 0.7978846
        %v4929 = vmul.f32 %v4817, 0.7978846
        %v4930 = vmul.f32 %v4818, 0.7978846
        %v4931 = vmul.f32 %v4819, 0.7978846
        %v4932 = vmul.f32 %v4820, 0.7978846
        %v4933 = vmul.f32 %v4821, 0.7978846
        %v4934 = vmul.f32 %v4822, 0.7978846
        %v4935 = vmul.f32 %v4823, 0.7978846
        %v4936 = vmul.f32 %v4824, 0.7978846
        %v4937 = vmul.f32 %v4825, 0.7978846
        %v4938 = vmul.f32 %v4826, 0.7978846
        %v4939 = vmul.f32 %v4827, 0.7978846
        %v4940 = vmul.f32 %v4828, 0.7978846
        %v4941 = vmul.f32 %v4829, 0.7978846
        %v4942 = vmul.f32 %v4830, 0.7978846
        %v4943 = vmul.f32 %v4831, 0.7978846
        %v4944 = vmul.f32 %v4832, 0.7978846
        %v4945 = vmul.f32 %v4833, 0.7978846
        %v4946 = vmul.f32 %v4834, 0.7978846
        %v4947 = vmul.f32 %v4835, 0.7978846
        %v4948 = vmul.f32 %v4836, 0.7978846
        %v4949 = vmul.f32 %v4837, 0.7978846
        %v4950 = vmul.f32 %v4838, 0.7978846
        %v4951 = vmul.f32 %v4839, 0.7978846
        %v4952 = vmul.f32 %v4840, 0.7978846
        %v4953 = vmul.f32 %v4841, 0.7978846
        %v4954 = vmul.f32 %v4842, 0.7978846
        %v4955 = vmul.f32 %v4843, 0.7978846
        %v4956 = vmul.f32 %v4844, 0.7978846
        %v4957 = vmul.f32 %v4845, 0.7978846
        %v4958 = vmul.f32 %v4846, 0.7978846
        %v4959 = vmul.f32 %v4847, 0.7978846
        %v4960 = vmul.f32 %v4848, 0.7978846
        %v4961 = vmul.f32 %v4849, 0.7978846
        %v4962 = vmul.f32 %v4850, 0.7978846
        %v4963 = vmul.f32 %v4851, 0.7978846
        %v4964 = vmul.f32 %v4852, 0.7978846
        %v4965 = vmul.f32 %v4853, 0.7978846
        %v4966 = vmul.f32 %v4854, 0.7978846
        %v4967 = vmul.f32 %v4855, 0.7978846
        %v4968 = vmul.f32 %v4856, 0.7978846
        %v4969 = vmul.f32 %v4857, 0.7978846
        %v4970 = vmul.f32 %v4858, 0.7978846
        %v4971 = vmul.f32 %v4859, 0.7978846
        %v4972 = vmul.f32 %v4860, 0.7978846
        %v4973 = vmul.f32 %v4861, 0.7978846
        %v4974 = vmul.f32 %v4862, 0.7978846
        %v4975 = vmul.f32 %v4863, 0.7978846
        %v4976 = vmul.f32 %v4864, 0.7978846
        %v4977 = vmul.f32 %v4865, 0.7978846
        %v4978 = vmul.f32 %v4866, 0.7978846
        %v4979 = vmul.f32 %v4867, 0.7978846
        %v4980 = vmul.f32 %v4868, 0.7978846
        %v4981 = vmul.f32 %v4869, 0.7978846
        %v4982 = vmul.f32 %v4870, 0.7978846
        %v4983 = vmul.f32 %v4871, 0.7978846
        %v4984 = vmul.f32 %v4872, 0.7978846
        %v4985 = vmul.f32 %v4873, 0.7978846
        %v4986 = vmul.f32 %v4874, 0.7978846
        %v4987 = vmul.f32 %v4875, 0.7978846
        %v4988 = vmul.f32 %v4876, 0.7978846
        %v4989 = vmul.f32 %v4877, 0.7978846
        %v4990 = vmul.f32 %v4878, 0.7978846
        %v4991 = vmul.f32 %v4879, 0.7978846
        %v4992 = vmul.f32 %v4880, 0.7978846
        %v4993 = vmul.f32 %v4881, 0.7978846
        %v4994 = vmul.f32 %v4882, 0.7978846
        %v4995 = vmul.f32 %v4883, 0.7978846
        %v4996 = vmul.f32 %v4884, 0.7978846
        %v4997 = vmul.f32 %v4885, 0.7978846
        %v4998 = vmul.f32 %v4886, 0.7978846
        %v4999 = vmul.f32 %v4887, 0.7978846
        %v5000 = vmul.f32 %v4888, 0.7978846
        %v5001 = vmul.f32 %v4889, 0.7978846
        %v5002 = vmul.f32 %v4890, 0.7978846
        %v5003 = vmul.f32 %v4891, 0.7978846
        %v5004 = vmul.f32 %v4892, 0.7978846
        %v5005 = vmul.f32 %v4893, 0.7978846
        %v5006 = vmul.f32 %v4894, 0.7978846
        %v5007 = vmul.f32 %v4895, 0.7978846
        %v5008 = vmul.f32 %v4896, 0.7978846
        %v5009 = vmul.f32 %v4897, 0.7978846
        %v5010 = vmul.f32 %v4898, 0.7978846
        %v5011 = vmul.f32 %v4899, 0.7978846
        %v5012 = vmul.f32 %v4900, 0.7978846
        %v5013 = vmul.f32 %v4901, 0.7978846
        %v5014 = vmul.f32 %v4902, 0.7978846
        %v5015 = vmul.f32 %v4903, 0.7978846
        %v5016 = vmul.f32 %v4904, 0.7978846
        %v5017 = vmul.f32 %v4905, 0.7978846
        %v5018 = vmul.f32 %v4906, 0.7978846
        %v5019 = vmul.f32 %v4907, 0.7978846
        %v5020 = vmul.f32 %v4908, 0.7978846
        %v5021 = vtanh.pop %v4909
        %v5022 = vtanh.pop %v4910
        %v5023 = vtanh.pop %v4911
        %v5024 = vtanh.pop %v4912
        %v5025 = vtanh.pop %v4913
        %v5026 = vtanh.pop %v4914
        %v5027 = vtanh.pop %v4915
        %v5028 = vtanh.pop %v4916
        %v5029 = vtanh.pop %v4917
        %v5030 = vtanh.pop %v4918
        %v5031 = vtanh.pop %v4919
        %v5032 = vtanh.pop %v4920
        %v5033 = vtanh.pop %v4921
        %v5034 = vtanh.pop %v4922
        %v5035 = vtanh.pop %v4923
        %v5036 = vtanh.pop %v4924
        %v5037 = vtanh.pop %v4925
        %v5038 = vtanh.pop %v4926
        %v5039 = vtanh.pop %v4927
        %v5040 = vtanh.pop %v4928
        %v5041 = vtanh.pop %v4929
        %v5042 = vtanh.pop %v4930
        %v5043 = vtanh.pop %v4931
        %v5044 = vtanh.pop %v4932
        %v5045 = vtanh.pop %v4933
        %v5046 = vtanh.pop %v4934
        %v5047 = vtanh.pop %v4935
        %v5048 = vtanh.pop %v4936
        %v5049 = vtanh.pop %v4937
        %v5050 = vtanh.pop %v4938
        %v5051 = vtanh.pop %v4939
        %v5052 = vtanh.pop %v4940
        %v5053 = vtanh.pop %v4941
        %v5054 = vtanh.pop %v4942
        %v5055 = vtanh.pop %v4943
        %v5056 = vtanh.pop %v4944
        %v5057 = vtanh.pop %v4945
        %v5058 = vtanh.pop %v4946
        %v5059 = vtanh.pop %v4947
        %v5060 = vtanh.pop %v4948
        %v5061 = vtanh.pop %v4949
        %v5062 = vtanh.pop %v4950
        %v5063 = vtanh.pop %v4951
        %v5064 = vtanh.pop %v4952
        %v5065 = vtanh.pop %v4953
        %v5066 = vtanh.pop %v4954
        %v5067 = vtanh.pop %v4955
        %v5068 = vtanh.pop %v4956
        %v5069 = vtanh.pop %v4957
        %v5070 = vtanh.pop %v4958
        %v5071 = vtanh.pop %v4959
        %v5072 = vtanh.pop %v4960
        %v5073 = vtanh.pop %v4961
        %v5074 = vtanh.pop %v4962
        %v5075 = vtanh.pop %v4963
        %v5076 = vtanh.pop %v4964
        %v5077 = vtanh.pop %v4965
        %v5078 = vtanh.pop %v4966
        %v5079 = vtanh.pop %v4967
        %v5080 = vtanh.pop %v4968
        %v5081 = vtanh.pop %v4969
        %v5082 = vtanh.pop %v4970
        %v5083 = vtanh.pop %v4971
        %v5084 = vtanh.pop %v4972
        %v5085 = vtanh.pop %v4973
        %v5086 = vtanh.pop %v4974
        %v5087 = vtanh.pop %v4975
        %v5088 = vtanh.pop %v4976
        %v5089 = vtanh.pop %v4977
        %v5090 = vtanh.pop %v4978
        %v5091 = vtanh.pop %v4979
        %v5092 = vtanh.pop %v4980
        %v5093 = vtanh.pop %v4981
        %v5094 = vtanh.pop %v4982
        %v5095 = vtanh.pop %v4983
        %v5096 = vtanh.pop %v4984
        %v5097 = vtanh.pop %v4985
        %v5098 = vtanh.pop %v4986
        %v5099 = vtanh.pop %v4987
        %v5100 = vtanh.pop %v4988
        %v5101 = vtanh.pop %v4989
        %v5102 = vtanh.pop %v4990
        %v5103 = vtanh.pop %v4991
        %v5104 = vtanh.pop %v4992
        %v5105 = vtanh.pop %v4993
        %v5106 = vtanh.pop %v4994
        %v5107 = vtanh.pop %v4995
        %v5108 = vtanh.pop %v4996
        %v5109 = vtanh.pop %v4997
        %v5110 = vtanh.pop %v4998
        %v5111 = vtanh.pop %v4999
        %v5112 = vtanh.pop %v5000
        %v5113 = vtanh.pop %v5001
        %v5114 = vtanh.pop %v5002
        %v5115 = vtanh.pop %v5003
        %v5116 = vtanh.pop %v5004
        %v5117 = vtanh.pop %v5005
        %v5118 = vtanh.pop %v5006
        %v5119 = vtanh.pop %v5007
        %v5120 = vtanh.pop %v5008
        %v5121 = vtanh.pop %v5009
        %v5122 = vtanh.pop %v5010
        %v5123 = vtanh.pop %v5011
        %v5124 = vtanh.pop %v5012
        %v5125 = vtanh.pop %v5013
        %v5126 = vtanh.pop %v5014
        %v5127 = vtanh.pop %v5015
        %v5128 = vtanh.pop %v5016
        %v5129 = vtanh.pop %v5017
        %v5130 = vtanh.pop %v5018
        %v5131 = vtanh.pop %v5019
        %v5132 = vtanh.pop %v5020
        %v5133 = vadd.f32 %v5021, 1.0
        %v5134 = vadd.f32 %v5022, 1.0
        %v5135 = vadd.f32 %v5023, 1.0
        %v5136 = vadd.f32 %v5024, 1.0
        %v5137 = vadd.f32 %v5025, 1.0
        %v5138 = vadd.f32 %v5026, 1.0
        %v5139 = vadd.f32 %v5027, 1.0
        %v5140 = vadd.f32 %v5028, 1.0
        %v5141 = vadd.f32 %v5029, 1.0
        %v5142 = vadd.f32 %v5030, 1.0
        %v5143 = vadd.f32 %v5031, 1.0
        %v5144 = vadd.f32 %v5032, 1.0
        %v5145 = vadd.f32 %v5033, 1.0
        %v5146 = vadd.f32 %v5034, 1.0
        %v5147 = vadd.f32 %v5035, 1.0
        %v5148 = vadd.f32 %v5036, 1.0
        %v5149 = vadd.f32 %v5037, 1.0
        %v5150 = vadd.f32 %v5038, 1.0
        %v5151 = vadd.f32 %v5039, 1.0
        %v5152 = vadd.f32 %v5040, 1.0
        %v5153 = vadd.f32 %v5041, 1.0
        %v5154 = vadd.f32 %v5042, 1.0
        %v5155 = vadd.f32 %v5043, 1.0
        %v5156 = vadd.f32 %v5044, 1.0
        %v5157 = vadd.f32 %v5045, 1.0
        %v5158 = vadd.f32 %v5046, 1.0
        %v5159 = vadd.f32 %v5047, 1.0
        %v5160 = vadd.f32 %v5048, 1.0
        %v5161 = vadd.f32 %v5049, 1.0
        %v5162 = vadd.f32 %v5050, 1.0
        %v5163 = vadd.f32 %v5051, 1.0
        %v5164 = vadd.f32 %v5052, 1.0
        %v5165 = vadd.f32 %v5053, 1.0
        %v5166 = vadd.f32 %v5054, 1.0
        %v5167 = vadd.f32 %v5055, 1.0
        %v5168 = vadd.f32 %v5056, 1.0
        %v5169 = vadd.f32 %v5057, 1.0
        %v5170 = vadd.f32 %v5058, 1.0
        %v5171 = vadd.f32 %v5059, 1.0
        %v5172 = vadd.f32 %v5060, 1.0
        %v5173 = vadd.f32 %v5061, 1.0
        %v5174 = vadd.f32 %v5062, 1.0
        %v5175 = vadd.f32 %v5063, 1.0
        %v5176 = vadd.f32 %v5064, 1.0
        %v5177 = vadd.f32 %v5065, 1.0
        %v5178 = vadd.f32 %v5066, 1.0
        %v5179 = vadd.f32 %v5067, 1.0
        %v5180 = vadd.f32 %v5068, 1.0
        %v5181 = vadd.f32 %v5069, 1.0
        %v5182 = vadd.f32 %v5070, 1.0
        %v5183 = vadd.f32 %v5071, 1.0
        %v5184 = vadd.f32 %v5072, 1.0
        %v5185 = vadd.f32 %v5073, 1.0
        %v5186 = vadd.f32 %v5074, 1.0
        %v5187 = vadd.f32 %v5075, 1.0
        %v5188 = vadd.f32 %v5076, 1.0
        %v5189 = vadd.f32 %v5077, 1.0
        %v5190 = vadd.f32 %v5078, 1.0
        %v5191 = vadd.f32 %v5079, 1.0
        %v5192 = vadd.f32 %v5080, 1.0
        %v5193 = vadd.f32 %v5081, 1.0
        %v5194 = vadd.f32 %v5082, 1.0
        %v5195 = vadd.f32 %v5083, 1.0
        %v5196 = vadd.f32 %v5084, 1.0
        %v5197 = vadd.f32 %v5085, 1.0
        %v5198 = vadd.f32 %v5086, 1.0
        %v5199 = vadd.f32 %v5087, 1.0
        %v5200 = vadd.f32 %v5088, 1.0
        %v5201 = vadd.f32 %v5089, 1.0
        %v5202 = vadd.f32 %v5090, 1.0
        %v5203 = vadd.f32 %v5091, 1.0
        %v5204 = vadd.f32 %v5092, 1.0
        %v5205 = vadd.f32 %v5093, 1.0
        %v5206 = vadd.f32 %v5094, 1.0
        %v5207 = vadd.f32 %v5095, 1.0
        %v5208 = vadd.f32 %v5096, 1.0
        %v5209 = vadd.f32 %v5097, 1.0
        %v5210 = vadd.f32 %v5098, 1.0
        %v5211 = vadd.f32 %v5099, 1.0
        %v5212 = vadd.f32 %v5100, 1.0
        %v5213 = vadd.f32 %v5101, 1.0
        %v5214 = vadd.f32 %v5102, 1.0
        %v5215 = vadd.f32 %v5103, 1.0
        %v5216 = vadd.f32 %v5104, 1.0
        %v5217 = vadd.f32 %v5105, 1.0
        %v5218 = vadd.f32 %v5106, 1.0
        %v5219 = vadd.f32 %v5107, 1.0
        %v5220 = vadd.f32 %v5108, 1.0
        %v5221 = vadd.f32 %v5109, 1.0
        %v5222 = vadd.f32 %v5110, 1.0
        %v5223 = vadd.f32 %v5111, 1.0
        %v5224 = vadd.f32 %v5112, 1.0
        %v5225 = vadd.f32 %v5113, 1.0
        %v5226 = vadd.f32 %v5114, 1.0
        %v5227 = vadd.f32 %v5115, 1.0
        %v5228 = vadd.f32 %v5116, 1.0
        %v5229 = vadd.f32 %v5117, 1.0
        %v5230 = vadd.f32 %v5118, 1.0
        %v5231 = vadd.f32 %v5119, 1.0
        %v5232 = vadd.f32 %v5120, 1.0
        %v5233 = vadd.f32 %v5121, 1.0
        %v5234 = vadd.f32 %v5122, 1.0
        %v5235 = vadd.f32 %v5123, 1.0
        %v5236 = vadd.f32 %v5124, 1.0
        %v5237 = vadd.f32 %v5125, 1.0
        %v5238 = vadd.f32 %v5126, 1.0
        %v5239 = vadd.f32 %v5127, 1.0
        %v5240 = vadd.f32 %v5128, 1.0
        %v5241 = vadd.f32 %v5129, 1.0
        %v5242 = vadd.f32 %v5130, 1.0
        %v5243 = vadd.f32 %v5131, 1.0
        %v5244 = vadd.f32 %v5132, 1.0
        %v5245 = vmul.f32 %v5133, 0.5
        %v5246 = vmul.f32 %v5134, 0.5
        %v5247 = vmul.f32 %v5135, 0.5
        %v5248 = vmul.f32 %v5136, 0.5
        %v5249 = vmul.f32 %v5137, 0.5
        %v5250 = vmul.f32 %v5138, 0.5
        %v5251 = vmul.f32 %v5139, 0.5
        %v5252 = vmul.f32 %v5140, 0.5
        %v5253 = vmul.f32 %v5141, 0.5
        %v5254 = vmul.f32 %v5142, 0.5
        %v5255 = vmul.f32 %v5143, 0.5
        %v5256 = vmul.f32 %v5144, 0.5
        %v5257 = vmul.f32 %v5145, 0.5
        %v5258 = vmul.f32 %v5146, 0.5
        %v5259 = vmul.f32 %v5147, 0.5
        %v5260 = vmul.f32 %v5148, 0.5
        %v5261 = vmul.f32 %v5149, 0.5
        %v5262 = vmul.f32 %v5150, 0.5
        %v5263 = vmul.f32 %v5151, 0.5
        %v5264 = vmul.f32 %v5152, 0.5
        %v5265 = vmul.f32 %v5153, 0.5
        %v5266 = vmul.f32 %v5154, 0.5
        %v5267 = vmul.f32 %v5155, 0.5
        %v5268 = vmul.f32 %v5156, 0.5
        %v5269 = vmul.f32 %v5157, 0.5
        %v5270 = vmul.f32 %v5158, 0.5
        %v5271 = vmul.f32 %v5159, 0.5
        %v5272 = vmul.f32 %v5160, 0.5
        %v5273 = vmul.f32 %v5161, 0.5
        %v5274 = vmul.f32 %v5162, 0.5
        %v5275 = vmul.f32 %v5163, 0.5
        %v5276 = vmul.f32 %v5164, 0.5
        %v5277 = vmul.f32 %v5165, 0.5
        %v5278 = vmul.f32 %v5166, 0.5
        %v5279 = vmul.f32 %v5167, 0.5
        %v5280 = vmul.f32 %v5168, 0.5
        %v5281 = vmul.f32 %v5169, 0.5
        %v5282 = vmul.f32 %v5170, 0.5
        %v5283 = vmul.f32 %v5171, 0.5
        %v5284 = vmul.f32 %v5172, 0.5
        %v5285 = vmul.f32 %v5173, 0.5
        %v5286 = vmul.f32 %v5174, 0.5
        %v5287 = vmul.f32 %v5175, 0.5
        %v5288 = vmul.f32 %v5176, 0.5
        %v5289 = vmul.f32 %v5177, 0.5
        %v5290 = vmul.f32 %v5178, 0.5
        %v5291 = vmul.f32 %v5179, 0.5
        %v5292 = vmul.f32 %v5180, 0.5
        %v5293 = vmul.f32 %v5181, 0.5
        %v5294 = vmul.f32 %v5182, 0.5
        %v5295 = vmul.f32 %v5183, 0.5
        %v5296 = vmul.f32 %v5184, 0.5
        %v5297 = vmul.f32 %v5185, 0.5
        %v5298 = vmul.f32 %v5186, 0.5
        %v5299 = vmul.f32 %v5187, 0.5
        %v5300 = vmul.f32 %v5188, 0.5
        %v5301 = vmul.f32 %v5189, 0.5
        %v5302 = vmul.f32 %v5190, 0.5
        %v5303 = vmul.f32 %v5191, 0.5
        %v5304 = vmul.f32 %v5192, 0.5
        %v5305 = vmul.f32 %v5193, 0.5
        %v5306 = vmul.f32 %v5194, 0.5
        %v5307 = vmul.f32 %v5195, 0.5
        %v5308 = vmul.f32 %v5196, 0.5
        %v5309 = vmul.f32 %v5197, 0.5
        %v5310 = vmul.f32 %v5198, 0.5
        %v5311 = vmul.f32 %v5199, 0.5
        %v5312 = vmul.f32 %v5200, 0.5
        %v5313 = vmul.f32 %v5201, 0.5
        %v5314 = vmul.f32 %v5202, 0.5
        %v5315 = vmul.f32 %v5203, 0.5
        %v5316 = vmul.f32 %v5204, 0.5
        %v5317 = vmul.f32 %v5205, 0.5
        %v5318 = vmul.f32 %v5206, 0.5
        %v5319 = vmul.f32 %v5207, 0.5
        %v5320 = vmul.f32 %v5208, 0.5
        %v5321 = vmul.f32 %v5209, 0.5
        %v5322 = vmul.f32 %v5210, 0.5
        %v5323 = vmul.f32 %v5211, 0.5
        %v5324 = vmul.f32 %v5212, 0.5
        %v5325 = vmul.f32 %v5213, 0.5
        %v5326 = vmul.f32 %v5214, 0.5
        %v5327 = vmul.f32 %v5215, 0.5
        %v5328 = vmul.f32 %v5216, 0.5
        %v5329 = vmul.f32 %v5217, 0.5
        %v5330 = vmul.f32 %v5218, 0.5
        %v5331 = vmul.f32 %v5219, 0.5
        %v5332 = vmul.f32 %v5220, 0.5
        %v5333 = vmul.f32 %v5221, 0.5
        %v5334 = vmul.f32 %v5222, 0.5
        %v5335 = vmul.f32 %v5223, 0.5
        %v5336 = vmul.f32 %v5224, 0.5
        %v5337 = vmul.f32 %v5225, 0.5
        %v5338 = vmul.f32 %v5226, 0.5
        %v5339 = vmul.f32 %v5227, 0.5
        %v5340 = vmul.f32 %v5228, 0.5
        %v5341 = vmul.f32 %v5229, 0.5
        %v5342 = vmul.f32 %v5230, 0.5
        %v5343 = vmul.f32 %v5231, 0.5
        %v5344 = vmul.f32 %v5232, 0.5
        %v5345 = vmul.f32 %v5233, 0.5
        %v5346 = vmul.f32 %v5234, 0.5
        %v5347 = vmul.f32 %v5235, 0.5
        %v5348 = vmul.f32 %v5236, 0.5
        %v5349 = vmul.f32 %v5237, 0.5
        %v5350 = vmul.f32 %v5238, 0.5
        %v5351 = vmul.f32 %v5239, 0.5
        %v5352 = vmul.f32 %v5240, 0.5
        %v5353 = vmul.f32 %v5241, 0.5
        %v5354 = vmul.f32 %v5242, 0.5
        %v5355 = vmul.f32 %v5243, 0.5
        %v5356 = vmul.f32 %v5244, 0.5
        %v5357 = vmul.f32 %v4155, %v5245
        %v5358 = vmul.f32 %v4234, %v5246
        %v5359 = vmul.f32 %v4313, %v5247
        %v5360 = vmul.f32 %v4392, %v5248
        %v5361 = vmul.f32 %v4157, %v5249
        %v5362 = vmul.f32 %v4236, %v5250
        %v5363 = vmul.f32 %v4315, %v5251
        %v5364 = vmul.f32 %v4394, %v5252
        %v5365 = vmul.f32 %v4160, %v5253
        %v5366 = vmul.f32 %v4239, %v5254
        %v5367 = vmul.f32 %v4318, %v5255
        %v5368 = vmul.f32 %v4397, %v5256
        %v5369 = vmul.f32 %v4162, %v5257
        %v5370 = vmul.f32 %v4241, %v5258
        %v5371 = vmul.f32 %v4320, %v5259
        %v5372 = vmul.f32 %v4399, %v5260
        %v5373 = vmul.f32 %v4165, %v5261
        %v5374 = vmul.f32 %v4244, %v5262
        %v5375 = vmul.f32 %v4323, %v5263
        %v5376 = vmul.f32 %v4402, %v5264
        %v5377 = vmul.f32 %v4167, %v5265
        %v5378 = vmul.f32 %v4246, %v5266
        %v5379 = vmul.f32 %v4325, %v5267
        %v5380 = vmul.f32 %v4404, %v5268
        %v5381 = vmul.f32 %v4170, %v5269
        %v5382 = vmul.f32 %v4249, %v5270
        %v5383 = vmul.f32 %v4328, %v5271
        %v5384 = vmul.f32 %v4407, %v5272
        %v5385 = vmul.f32 %v4172, %v5273
        %v5386 = vmul.f32 %v4251, %v5274
        %v5387 = vmul.f32 %v4330, %v5275
        %v5388 = vmul.f32 %v4409, %v5276
        %v5389 = vmul.f32 %v4175, %v5277
        %v5390 = vmul.f32 %v4254, %v5278
        %v5391 = vmul.f32 %v4333, %v5279
        %v5392 = vmul.f32 %v4412, %v5280
        %v5393 = vmul.f32 %v4177, %v5281
        %v5394 = vmul.f32 %v4256, %v5282
        %v5395 = vmul.f32 %v4335, %v5283
        %v5396 = vmul.f32 %v4414, %v5284
        %v5397 = vmul.f32 %v4180, %v5285
        %v5398 = vmul.f32 %v4259, %v5286
        %v5399 = vmul.f32 %v4338, %v5287
        %v5400 = vmul.f32 %v4417, %v5288
        %v5401 = vmul.f32 %v4182, %v5289
        %v5402 = vmul.f32 %v4261, %v5290
        %v5403 = vmul.f32 %v4340, %v5291
        %v5404 = vmul.f32 %v4419, %v5292
        %v5405 = vmul.f32 %v4185, %v5293
        %v5406 = vmul.f32 %v4264, %v5294
        %v5407 = vmul.f32 %v4343, %v5295
        %v5408 = vmul.f32 %v4422, %v5296
        %v5409 = vmul.f32 %v4187, %v5297
        %v5410 = vmul.f32 %v4266, %v5298
        %v5411 = vmul.f32 %v4345, %v5299
        %v5412 = vmul.f32 %v4424, %v5300
        %v5413 = vmul.f32 %v4190, %v5301
        %v5414 = vmul.f32 %v4269, %v5302
        %v5415 = vmul.f32 %v4348, %v5303
        %v5416 = vmul.f32 %v4427, %v5304
        %v5417 = vmul.f32 %v4192, %v5305
        %v5418 = vmul.f32 %v4271, %v5306
        %v5419 = vmul.f32 %v4350, %v5307
        %v5420 = vmul.f32 %v4429, %v5308
        %v5421 = vmul.f32 %v4195, %v5309
        %v5422 = vmul.f32 %v4274, %v5310
        %v5423 = vmul.f32 %v4353, %v5311
        %v5424 = vmul.f32 %v4432, %v5312
        %v5425 = vmul.f32 %v4197, %v5313
        %v5426 = vmul.f32 %v4276, %v5314
        %v5427 = vmul.f32 %v4355, %v5315
        %v5428 = vmul.f32 %v4434, %v5316
        %v5429 = vmul.f32 %v4200, %v5317
        %v5430 = vmul.f32 %v4279, %v5318
        %v5431 = vmul.f32 %v4358, %v5319
        %v5432 = vmul.f32 %v4437, %v5320
        %v5433 = vmul.f32 %v4202, %v5321
        %v5434 = vmul.f32 %v4281, %v5322
        %v5435 = vmul.f32 %v4360, %v5323
        %v5436 = vmul.f32 %v4439, %v5324
        %v5437 = vmul.f32 %v4205, %v5325
        %v5438 = vmul.f32 %v4284, %v5326
        %v5439 = vmul.f32 %v4363, %v5327
        %v5440 = vmul.f32 %v4442, %v5328
        %v5441 = vmul.f32 %v4207, %v5329
        %v5442 = vmul.f32 %v4286, %v5330
        %v5443 = vmul.f32 %v4365, %v5331
        %v5444 = vmul.f32 %v4444, %v5332
        %v5445 = vmul.f32 %v4210, %v5333
        %v5446 = vmul.f32 %v4289, %v5334
        %v5447 = vmul.f32 %v4368, %v5335
        %v5448 = vmul.f32 %v4447, %v5336
        %v5449 = vmul.f32 %v4212, %v5337
        %v5450 = vmul.f32 %v4291, %v5338
        %v5451 = vmul.f32 %v4370, %v5339
        %v5452 = vmul.f32 %v4449, %v5340
        %v5453 = vmul.f32 %v4215, %v5341
        %v5454 = vmul.f32 %v4294, %v5342
        %v5455 = vmul.f32 %v4373, %v5343
        %v5456 = vmul.f32 %v4452, %v5344
        %v5457 = vmul.f32 %v4217, %v5345
        %v5458 = vmul.f32 %v4296, %v5346
        %v5459 = vmul.f32 %v4375, %v5347
        %v5460 = vmul.f32 %v4454, %v5348
        %v5461 = vmul.f32 %v4220, %v5349
        %v5462 = vmul.f32 %v4299, %v5350
        %v5463 = vmul.f32 %v4378, %v5351
        %v5464 = vmul.f32 %v4457, %v5352
        %v5465 = vmul.f32 %v4222, %v5353
        %v5466 = vmul.f32 %v4301, %v5354
        %v5467 = vmul.f32 %v4380, %v5355
        %v5468 = vmul.f32 %v4459, %v5356
        %v5469 = vpack.c.bf16 %v5361, %v5357
        %v5470 = vpack.c.bf16 %v5362, %v5358
        %v5471 = vpack.c.bf16 %v5363, %v5359
        %v5472 = vpack.c.bf16 %v5364, %v5360
        %v5473 = vpack.c.bf16 %v5369, %v5365
        %v5474 = vpack.c.bf16 %v5370, %v5366
        %v5475 = vpack.c.bf16 %v5371, %v5367
        %v5476 = vpack.c.bf16 %v5372, %v5368
        %v5477 = vpack.c.bf16 %v5377, %v5373
        %v5478 = vpack.c.bf16 %v5378, %v5374
        %v5479 = vpack.c.bf16 %v5379, %v5375
        %v5480 = vpack.c.bf16 %v5380, %v5376
        %v5481 = vpack.c.bf16 %v5385, %v5381
        %v5482 = vpack.c.bf16 %v5386, %v5382
        %v5483 = vpack.c.bf16 %v5387, %v5383
        %v5484 = vpack.c.bf16 %v5388, %v5384
        %v5485 = vpack.c.bf16 %v5393, %v5389
        %v5486 = vpack.c.bf16 %v5394, %v5390
        %v5487 = vpack.c.bf16 %v5395, %v5391
        %v5488 = vpack.c.bf16 %v5396, %v5392
        %v5489 = vpack.c.bf16 %v5401, %v5397
        %v5490 = vpack.c.bf16 %v5402, %v5398
        %v5491 = vpack.c.bf16 %v5403, %v5399
        %v5492 = vpack.c.bf16 %v5404, %v5400
        %v5493 = vpack.c.bf16 %v5409, %v5405
        %v5494 = vpack.c.bf16 %v5410, %v5406
        %v5495 = vpack.c.bf16 %v5411, %v5407
        %v5496 = vpack.c.bf16 %v5412, %v5408
        %v5497 = vpack.c.bf16 %v5417, %v5413
        %v5498 = vpack.c.bf16 %v5418, %v5414
        %v5499 = vpack.c.bf16 %v5419, %v5415
        %v5500 = vpack.c.bf16 %v5420, %v5416
        %v5501 = vpack.c.bf16 %v5425, %v5421
        %v5502 = vpack.c.bf16 %v5426, %v5422
        %v5503 = vpack.c.bf16 %v5427, %v5423
        %v5504 = vpack.c.bf16 %v5428, %v5424
        %v5505 = vpack.c.bf16 %v5433, %v5429
        %v5506 = vpack.c.bf16 %v5434, %v5430
        %v5507 = vpack.c.bf16 %v5435, %v5431
        %v5508 = vpack.c.bf16 %v5436, %v5432
        %v5509 = vpack.c.bf16 %v5441, %v5437
        %v5510 = vpack.c.bf16 %v5442, %v5438
        %v5511 = vpack.c.bf16 %v5443, %v5439
        %v5512 = vpack.c.bf16 %v5444, %v5440
        %v5513 = vpack.c.bf16 %v5449, %v5445
        %v5514 = vpack.c.bf16 %v5450, %v5446
        %v5515 = vpack.c.bf16 %v5451, %v5447
        %v5516 = vpack.c.bf16 %v5452, %v5448
        %v5517 = vpack.c.bf16 %v5457, %v5453
        %v5518 = vpack.c.bf16 %v5458, %v5454
        %v5519 = vpack.c.bf16 %v5459, %v5455
        %v5520 = vpack.c.bf16 %v5460, %v5456
        %v5521 = vpack.c.bf16 %v5465, %v5461
        %v5522 = vpack.c.bf16 %v5466, %v5462
        %v5523 = vpack.c.bf16 %v5467, %v5463
        %v5524 = vpack.c.bf16 %v5468, %v5464
        %v5525 = vld [vmem:[#allocation15] sm:$0xf]
        %v5526 = vld [vmem:[#allocation15 + $0x4] sm:$0xf]
        %v5527 = vld [vmem:[#allocation15 + $0x8] sm:$0xf]
        %v5528 = vld [vmem:[#allocation15 + $0xc] sm:$0xf]
        %v5529 = vld [vmem:[#allocation15 + $0x10] sm:$0xf]
        %v5530 = vld [vmem:[#allocation15 + $0x14] sm:$0xf]
        %v5531 = vld [vmem:[#allocation15 + $0x18] sm:$0xf]
        %v5532 = vld [vmem:[#allocation15 + $0x1c] sm:$0xf]
        %v5533 = vld [vmem:[#allocation15 + $0x20] sm:$0xf]
        %v5534 = vld [vmem:[#allocation15 + $0x24] sm:$0xf]
        %v5535 = vld [vmem:[#allocation15 + $0x28] sm:$0xf]
        %v5536 = vld [vmem:[#allocation15 + $0x2c] sm:$0xf]
        %v5537 = vld [vmem:[#allocation15 + $0x30] sm:$0xf]
        %v5538 = vld [vmem:[#allocation15 + $0x34] sm:$0xf]
        %v5539 = vld [vmem:[#allocation15 + $0x38] sm:$0xf]
        %v5540 = vld [vmem:[#allocation15 + $0x3c] sm:$0xf]
        %v5541 = vld [vmem:[#allocation15 + $0x40] sm:$0xf]
        %v5542 = vld [vmem:[#allocation15 + $0x44] sm:$0xf]
        %v5543 = vld [vmem:[#allocation15 + $0x48] sm:$0xf]
        %v5544 = vld [vmem:[#allocation15 + $0x4c] sm:$0xf]
        %v5545 = vld [vmem:[#allocation15 + $0x50] sm:$0xf]
        %v5546 = vld [vmem:[#allocation15 + $0x54] sm:$0xf]
        %v5547 = vld [vmem:[#allocation15 + $0x58] sm:$0xf]
        %v5548 = vld [vmem:[#allocation15 + $0x5c] sm:$0xf]
        %v5549 = vld [vmem:[#allocation15 + $0x60] sm:$0xf]
        %v5550 = vld [vmem:[#allocation15 + $0x64] sm:$0xf]
        %v5551 = vld [vmem:[#allocation15 + $0x68] sm:$0xf]
        %v5552 = vld [vmem:[#allocation15 + $0x6c] sm:$0xf]
        %v5553 = vld [vmem:[#allocation15 + $0x70] sm:$0xf]
        %v5554 = vld [vmem:[#allocation15 + $0x74] sm:$0xf]
        %v5555 = vld [vmem:[#allocation15 + $0x78] sm:$0xf]
        %v5556 = vld [vmem:[#allocation15 + $0x7c] sm:$0xf]
        %v5557 = vld [vmem:[#allocation15 + $0x80] sm:$0xf]
        %v5558 = vld [vmem:[#allocation15 + $0x84] sm:$0xf]
        %v5559 = vld [vmem:[#allocation15 + $0x88] sm:$0xf]
        %v5560 = vld [vmem:[#allocation15 + $0x8c] sm:$0xf]
        %v5561 = vld [vmem:[#allocation15 + $0x90] sm:$0xf]
        %v5562 = vld [vmem:[#allocation15 + $0x94] sm:$0xf]
        %v5563 = vld [vmem:[#allocation15 + $0x98] sm:$0xf]
        %v5564 = vld [vmem:[#allocation15 + $0x9c] sm:$0xf]
        %v5565 = vld [vmem:[#allocation15 + $0xa0] sm:$0xf]
        %v5566 = vld [vmem:[#allocation15 + $0xa4] sm:$0xf]
        %v5567 = vld [vmem:[#allocation15 + $0xa8] sm:$0xf]
        %v5568 = vld [vmem:[#allocation15 + $0xac] sm:$0xf]
        %v5569 = vld [vmem:[#allocation15 + $0xb0] sm:$0xf]
        %v5570 = vld [vmem:[#allocation15 + $0xb4] sm:$0xf]
        %v5571 = vld [vmem:[#allocation15 + $0xb8] sm:$0xf]
        %v5572 = vld [vmem:[#allocation15 + $0xbc] sm:$0xf]
        %v5573 = vld [vmem:[#allocation15 + $0xc0] sm:$0xf]
        %v5574 = vld [vmem:[#allocation15 + $0xc4] sm:$0xf]
        %v5575 = vld [vmem:[#allocation15 + $0xc8] sm:$0xf]
        %v5576 = vld [vmem:[#allocation15 + $0xcc] sm:$0xf]
        %v5577 = vld [vmem:[#allocation15 + $0xd0] sm:$0xf]
        %v5578 = vld [vmem:[#allocation15 + $0xd4] sm:$0xf]
        %v5579 = vld [vmem:[#allocation15 + $0xd8] sm:$0xf]
        %v5580 = vld [vmem:[#allocation15 + $0xdc] sm:$0xf]
        %v5581 = vld [vmem:[#allocation15 + $0xe0] sm:$0xf]
        %v5582 = vld [vmem:[#allocation15 + $0xe4] sm:$0xf]
        %v5583 = vld [vmem:[#allocation15 + $0xe8] sm:$0xf]
        %v5584 = vld [vmem:[#allocation15 + $0xec] sm:$0xf]
        %v5585 = vld [vmem:[#allocation15 + $0xf0] sm:$0xf]
        %v5586 = vld [vmem:[#allocation15 + $0xf4] sm:$0xf]
        %v5587 = vld [vmem:[#allocation15 + $0xf8] sm:$0xf]
        %v5588 = vld [vmem:[#allocation15 + $0xfc] sm:$0xf]
        %v5653 = vunpack.c.l.b16 %v5525
        %v5654 = vunpack.c.l.b16 %v5526
        %v5655 = vunpack.c.l.b16 %v5527
        %v5656 = vunpack.c.l.b16 %v5528
        %v5657 = vunpack.c.l.b16 %v5529
        %v5658 = vunpack.c.l.b16 %v5530
        %v5659 = vunpack.c.l.b16 %v5531
        %v5660 = vunpack.c.l.b16 %v5532
        %v5661 = vunpack.c.l.b16 %v5533
        %v5662 = vunpack.c.l.b16 %v5534
        %v5663 = vunpack.c.l.b16 %v5535
        %v5664 = vunpack.c.l.b16 %v5536
        %v5665 = vunpack.c.l.b16 %v5537
        %v5666 = vunpack.c.l.b16 %v5538
        %v5667 = vunpack.c.l.b16 %v5539
        %v5668 = vunpack.c.l.b16 %v5540
        %v5669 = vunpack.c.l.b16 %v5541
        %v5670 = vunpack.c.l.b16 %v5542
        %v5671 = vunpack.c.l.b16 %v5543
        %v5672 = vunpack.c.l.b16 %v5544
        %v5673 = vunpack.c.l.b16 %v5545
        %v5674 = vunpack.c.l.b16 %v5546
        %v5675 = vunpack.c.l.b16 %v5547
        %v5676 = vunpack.c.l.b16 %v5548
        %v5677 = vunpack.c.l.b16 %v5549
        %v5678 = vunpack.c.l.b16 %v5550
        %v5679 = vunpack.c.l.b16 %v5551
        %v5680 = vunpack.c.l.b16 %v5552
        %v5681 = vunpack.c.l.b16 %v5553
        %v5682 = vunpack.c.l.b16 %v5554
        %v5683 = vunpack.c.l.b16 %v5555
        %v5684 = vunpack.c.l.b16 %v5556
        %v5685 = vunpack.c.l.b16 %v5557
        %v5686 = vunpack.c.l.b16 %v5558
        %v5687 = vunpack.c.l.b16 %v5559
        %v5688 = vunpack.c.l.b16 %v5560
        %v5689 = vunpack.c.l.b16 %v5561
        %v5690 = vunpack.c.l.b16 %v5562
        %v5691 = vunpack.c.l.b16 %v5563
        %v5692 = vunpack.c.l.b16 %v5564
        %v5693 = vunpack.c.l.b16 %v5565
        %v5694 = vunpack.c.l.b16 %v5566
        %v5695 = vunpack.c.l.b16 %v5567
        %v5696 = vunpack.c.l.b16 %v5568
        %v5697 = vunpack.c.l.b16 %v5569
        %v5698 = vunpack.c.l.b16 %v5570
        %v5699 = vunpack.c.l.b16 %v5571
        %v5700 = vunpack.c.l.b16 %v5572
        %v5701 = vunpack.c.l.b16 %v5573
        %v5702 = vunpack.c.l.b16 %v5574
        %v5703 = vunpack.c.l.b16 %v5575
        %v5704 = vunpack.c.l.b16 %v5576
        %v5705 = vunpack.c.l.b16 %v5577
        %v5706 = vunpack.c.l.b16 %v5578
        %v5707 = vunpack.c.l.b16 %v5579
        %v5708 = vunpack.c.l.b16 %v5580
        %v5709 = vunpack.c.l.b16 %v5581
        %v5710 = vunpack.c.l.b16 %v5582
        %v5711 = vunpack.c.l.b16 %v5583
        %v5712 = vunpack.c.l.b16 %v5584
        %v5713 = vunpack.c.l.b16 %v5585
        %v5714 = vunpack.c.l.b16 %v5586
        %v5715 = vunpack.c.l.b16 %v5587
        %v5716 = vunpack.c.l.b16 %v5588
        %v5717 = vpack.c.b16 %v5654, %v5653
        %v5718 = vpack.c.b16 %v5656, %v5655
        %v5719 = vpack.c.b16 %v5658, %v5657
        %v5720 = vpack.c.b16 %v5660, %v5659
        %v5721 = vpack.c.b16 %v5662, %v5661
        %v5722 = vpack.c.b16 %v5664, %v5663
        %v5723 = vpack.c.b16 %v5666, %v5665
        %v5724 = vpack.c.b16 %v5668, %v5667
        %v5725 = vpack.c.b16 %v5670, %v5669
        %v5726 = vpack.c.b16 %v5672, %v5671
        %v5727 = vpack.c.b16 %v5674, %v5673
        %v5728 = vpack.c.b16 %v5676, %v5675
        %v5729 = vpack.c.b16 %v5678, %v5677
        %v5730 = vpack.c.b16 %v5680, %v5679
        %v5731 = vpack.c.b16 %v5682, %v5681
        %v5732 = vpack.c.b16 %v5684, %v5683
        %v5733 = vpack.c.b16 %v5686, %v5685
        %v5734 = vpack.c.b16 %v5688, %v5687
        %v5735 = vpack.c.b16 %v5690, %v5689
        %v5736 = vpack.c.b16 %v5692, %v5691
        %v5737 = vpack.c.b16 %v5694, %v5693
        %v5738 = vpack.c.b16 %v5696, %v5695
        %v5739 = vpack.c.b16 %v5698, %v5697
        %v5740 = vpack.c.b16 %v5700, %v5699
        %v5741 = vpack.c.b16 %v5702, %v5701
        %v5742 = vpack.c.b16 %v5704, %v5703
        %v5743 = vpack.c.b16 %v5706, %v5705
        %v5744 = vpack.c.b16 %v5708, %v5707
        %v5745 = vpack.c.b16 %v5710, %v5709
        %v5746 = vpack.c.b16 %v5712, %v5711
        %v5747 = vpack.c.b16 %v5714, %v5713
        %v5748 = vpack.c.b16 %v5716, %v5715
        %5781 = vmatpush.bf16.msra.mxu0 %v5724
        %5782 = vmatpush.bf16.msra.mxu0 %v5723
        %5783 = vmatpush.bf16.msra.mxu0 %v5722
        %5784 = vmatpush.bf16.msra.mxu0 %v5721
        %5785 = vmatpush.bf16.msra.mxu0 %v5720
        %5786 = vmatpush.bf16.msra.mxu0 %v5719
        %5787 = vmatpush.bf16.msra.mxu0 %v5718
        %5788 = vmatpush.bf16.msra.mxu0 %v5717
        %5789 = vmatmul.bf16.gmra.mxu0 %v5469
        %v5790 = vpop.f32.mrf.mxu0
        %v5791 = vadd.f32 0.0, %v5790
        %v5792 = vpop.f32.mrf.mxu0
        %v5793 = vadd.f32 0.0, %v5792
        %5794 = vmatmul.bf16.gmra.mxu0 %v5473
        %v5795 = vpop.f32.mrf.mxu0
        %v5796 = vadd.f32 0.0, %v5795
        %v5797 = vpop.f32.mrf.mxu0
        %v5798 = vadd.f32 0.0, %v5797
        %5799 = vmatmul.bf16.gmra.mxu0 %v5477
        %v5800 = vpop.f32.mrf.mxu0
        %v5801 = vadd.f32 0.0, %v5800
        %v5802 = vpop.f32.mrf.mxu0
        %v5803 = vadd.f32 0.0, %v5802
        %5804 = vmatmul.bf16.gmra.mxu0 %v5481
        %v5805 = vpop.f32.mrf.mxu0
        %v5806 = vadd.f32 0.0, %v5805
        %v5807 = vpop.f32.mrf.mxu0
        %v5808 = vadd.f32 0.0, %v5807
        %5809 = vmatmul.bf16.gmra.mxu0 %v5485
        %v5810 = vpop.f32.mrf.mxu0
        %v5811 = vadd.f32 0.0, %v5810
        %v5812 = vpop.f32.mrf.mxu0
        %v5813 = vadd.f32 0.0, %v5812
        %5814 = vmatmul.bf16.gmra.mxu0 %v5489
        %v5815 = vpop.f32.mrf.mxu0
        %v5816 = vadd.f32 0.0, %v5815
        %v5817 = vpop.f32.mrf.mxu0
        %v5818 = vadd.f32 0.0, %v5817
        %5819 = vmatmul.bf16.gmra.mxu0 %v5493
        %v5820 = vpop.f32.mrf.mxu0
        %v5821 = vadd.f32 0.0, %v5820
        %v5822 = vpop.f32.mrf.mxu0
        %v5823 = vadd.f32 0.0, %v5822
        %5824 = vmatmul.bf16.gmra.mxu0 %v5497
        %v5825 = vpop.f32.mrf.mxu0
        %v5826 = vadd.f32 0.0, %v5825
        %v5827 = vpop.f32.mrf.mxu0
        %v5828 = vadd.f32 0.0, %v5827
        %5829 = vmatmul.bf16.gmra.mxu0 %v5501
        %v5830 = vpop.f32.mrf.mxu0
        %v5831 = vadd.f32 0.0, %v5830
        %v5832 = vpop.f32.mrf.mxu0
        %v5833 = vadd.f32 0.0, %v5832
        %5834 = vmatmul.bf16.gmra.mxu0 %v5505
        %v5835 = vpop.f32.mrf.mxu0
        %v5836 = vadd.f32 0.0, %v5835
        %v5837 = vpop.f32.mrf.mxu0
        %v5838 = vadd.f32 0.0, %v5837
        %5839 = vmatmul.bf16.gmra.mxu0 %v5509
        %v5840 = vpop.f32.mrf.mxu0
        %v5841 = vadd.f32 0.0, %v5840
        %v5842 = vpop.f32.mrf.mxu0
        %v5843 = vadd.f32 0.0, %v5842
        %5844 = vmatmul.bf16.gmra.mxu0 %v5513
        %v5845 = vpop.f32.mrf.mxu0
        %v5846 = vadd.f32 0.0, %v5845
        %v5847 = vpop.f32.mrf.mxu0
        %v5848 = vadd.f32 0.0, %v5847
        %5849 = vmatmul.bf16.gmra.mxu0 %v5517
        %v5850 = vpop.f32.mrf.mxu0
        %v5851 = vadd.f32 0.0, %v5850
        %v5852 = vpop.f32.mrf.mxu0
        %v5853 = vadd.f32 0.0, %v5852
        %5854 = vmatmul.bf16.gmra.mxu0 %v5521
        %v5855 = vpop.f32.mrf.mxu0
        %v5856 = vadd.f32 0.0, %v5855
        %v5857 = vpop.f32.mrf.mxu0
        %v5858 = vadd.f32 0.0, %v5857
        %5859 = vdwg.mxu0
        %5860 = vmatpush.bf16.msra.mxu0 %v5732
        %5861 = vmatpush.bf16.msra.mxu0 %v5731
        %5862 = vmatpush.bf16.msra.mxu0 %v5730
        %5863 = vmatpush.bf16.msra.mxu0 %v5729
        %5864 = vmatpush.bf16.msra.mxu0 %v5728
        %5865 = vmatpush.bf16.msra.mxu0 %v5727
        %5866 = vmatpush.bf16.msra.mxu0 %v5726
        %5867 = vmatpush.bf16.msra.mxu0 %v5725
        %5868 = vmatmul.bf16.gmra.mxu0 %v5470
        %v5869 = vpop.f32.mrf.mxu0
        %v5870 = vadd.f32 %v5791, %v5869
        %v5871 = vpop.f32.mrf.mxu0
        %v5872 = vadd.f32 %v5793, %v5871
        %5873 = vmatmul.bf16.gmra.mxu0 %v5474
        %v5874 = vpop.f32.mrf.mxu0
        %v5875 = vadd.f32 %v5796, %v5874
        %v5876 = vpop.f32.mrf.mxu0
        %v5877 = vadd.f32 %v5798, %v5876
        %5878 = vmatmul.bf16.gmra.mxu0 %v5478
        %v5879 = vpop.f32.mrf.mxu0
        %v5880 = vadd.f32 %v5801, %v5879
        %v5881 = vpop.f32.mrf.mxu0
        %v5882 = vadd.f32 %v5803, %v5881
        %5883 = vmatmul.bf16.gmra.mxu0 %v5482
        %v5884 = vpop.f32.mrf.mxu0
        %v5885 = vadd.f32 %v5806, %v5884
        %v5886 = vpop.f32.mrf.mxu0
        %v5887 = vadd.f32 %v5808, %v5886
        %5888 = vmatmul.bf16.gmra.mxu0 %v5486
        %v5889 = vpop.f32.mrf.mxu0
        %v5890 = vadd.f32 %v5811, %v5889
        %v5891 = vpop.f32.mrf.mxu0
        %v5892 = vadd.f32 %v5813, %v5891
        %5893 = vmatmul.bf16.gmra.mxu0 %v5490
        %v5894 = vpop.f32.mrf.mxu0
        %v5895 = vadd.f32 %v5816, %v5894
        %v5896 = vpop.f32.mrf.mxu0
        %v5897 = vadd.f32 %v5818, %v5896
        %5898 = vmatmul.bf16.gmra.mxu0 %v5494
        %v5899 = vpop.f32.mrf.mxu0
        %v5900 = vadd.f32 %v5821, %v5899
        %v5901 = vpop.f32.mrf.mxu0
        %v5902 = vadd.f32 %v5823, %v5901
        %5903 = vmatmul.bf16.gmra.mxu0 %v5498
        %v5904 = vpop.f32.mrf.mxu0
        %v5905 = vadd.f32 %v5826, %v5904
        %v5906 = vpop.f32.mrf.mxu0
        %v5907 = vadd.f32 %v5828, %v5906
        %5908 = vmatmul.bf16.gmra.mxu0 %v5502
        %v5909 = vpop.f32.mrf.mxu0
        %v5910 = vadd.f32 %v5831, %v5909
        %v5911 = vpop.f32.mrf.mxu0
        %v5912 = vadd.f32 %v5833, %v5911
        %5913 = vmatmul.bf16.gmra.mxu0 %v5506
        %v5914 = vpop.f32.mrf.mxu0
        %v5915 = vadd.f32 %v5836, %v5914
        %v5916 = vpop.f32.mrf.mxu0
        %v5917 = vadd.f32 %v5838, %v5916
        %5918 = vmatmul.bf16.gmra.mxu0 %v5510
        %v5919 = vpop.f32.mrf.mxu0
        %v5920 = vadd.f32 %v5841, %v5919
        %v5921 = vpop.f32.mrf.mxu0
        %v5922 = vadd.f32 %v5843, %v5921
        %5923 = vmatmul.bf16.gmra.mxu0 %v5514
        %v5924 = vpop.f32.mrf.mxu0
        %v5925 = vadd.f32 %v5846, %v5924
        %v5926 = vpop.f32.mrf.mxu0
        %v5927 = vadd.f32 %v5848, %v5926
        %5928 = vmatmul.bf16.gmra.mxu0 %v5518
        %v5929 = vpop.f32.mrf.mxu0
        %v5930 = vadd.f32 %v5851, %v5929
        %v5931 = vpop.f32.mrf.mxu0
        %v5932 = vadd.f32 %v5853, %v5931
        %5933 = vmatmul.bf16.gmra.mxu0 %v5522
        %v5934 = vpop.f32.mrf.mxu0
        %v5935 = vadd.f32 %v5856, %v5934
        %v5936 = vpop.f32.mrf.mxu0
        %v5937 = vadd.f32 %v5858, %v5936
        %5938 = vdwg.mxu0
        %5939 = vmatpush.bf16.msra.mxu0 %v5740
        %5940 = vmatpush.bf16.msra.mxu0 %v5739
        %5941 = vmatpush.bf16.msra.mxu0 %v5738
        %5942 = vmatpush.bf16.msra.mxu0 %v5737
        %5943 = vmatpush.bf16.msra.mxu0 %v5736
        %5944 = vmatpush.bf16.msra.mxu0 %v5735
        %5945 = vmatpush.bf16.msra.mxu0 %v5734
        %5946 = vmatpush.bf16.msra.mxu0 %v5733
        %5947 = vmatmul.bf16.gmra.mxu0 %v5471
        %v5948 = vpop.f32.mrf.mxu0
        %v5949 = vadd.f32 %v5870, %v5948
        %v5950 = vpop.f32.mrf.mxu0
        %v5951 = vadd.f32 %v5872, %v5950
        %5952 = vmatmul.bf16.gmra.mxu0 %v5475
        %v5953 = vpop.f32.mrf.mxu0
        %v5954 = vadd.f32 %v5875, %v5953
        %v5955 = vpop.f32.mrf.mxu0
        %v5956 = vadd.f32 %v5877, %v5955
        %5957 = vmatmul.bf16.gmra.mxu0 %v5479
        %v5958 = vpop.f32.mrf.mxu0
        %v5959 = vadd.f32 %v5880, %v5958
        %v5960 = vpop.f32.mrf.mxu0
        %v5961 = vadd.f32 %v5882, %v5960
        %5962 = vmatmul.bf16.gmra.mxu0 %v5483
        %v5963 = vpop.f32.mrf.mxu0
        %v5964 = vadd.f32 %v5885, %v5963
        %v5965 = vpop.f32.mrf.mxu0
        %v5966 = vadd.f32 %v5887, %v5965
        %5967 = vmatmul.bf16.gmra.mxu0 %v5487
        %v5968 = vpop.f32.mrf.mxu0
        %v5969 = vadd.f32 %v5890, %v5968
        %v5970 = vpop.f32.mrf.mxu0
        %v5971 = vadd.f32 %v5892, %v5970
        %5972 = vmatmul.bf16.gmra.mxu0 %v5491
        %v5973 = vpop.f32.mrf.mxu0
        %v5974 = vadd.f32 %v5895, %v5973
        %v5975 = vpop.f32.mrf.mxu0
        %v5976 = vadd.f32 %v5897, %v5975
        %5977 = vmatmul.bf16.gmra.mxu0 %v5495
        %v5978 = vpop.f32.mrf.mxu0
        %v5979 = vadd.f32 %v5900, %v5978
        %v5980 = vpop.f32.mrf.mxu0
        %v5981 = vadd.f32 %v5902, %v5980
        %5982 = vmatmul.bf16.gmra.mxu0 %v5499
        %v5983 = vpop.f32.mrf.mxu0
        %v5984 = vadd.f32 %v5905, %v5983
        %v5985 = vpop.f32.mrf.mxu0
        %v5986 = vadd.f32 %v5907, %v5985
        %5987 = vmatmul.bf16.gmra.mxu0 %v5503
        %v5988 = vpop.f32.mrf.mxu0
        %v5989 = vadd.f32 %v5910, %v5988
        %v5990 = vpop.f32.mrf.mxu0
        %v5991 = vadd.f32 %v5912, %v5990
        %5992 = vmatmul.bf16.gmra.mxu0 %v5507
        %v5993 = vpop.f32.mrf.mxu0
        %v5994 = vadd.f32 %v5915, %v5993
        %v5995 = vpop.f32.mrf.mxu0
        %v5996 = vadd.f32 %v5917, %v5995
        %5997 = vmatmul.bf16.gmra.mxu0 %v5511
        %v5998 = vpop.f32.mrf.mxu0
        %v5999 = vadd.f32 %v5920, %v5998
        %v6000 = vpop.f32.mrf.mxu0
        %v6001 = vadd.f32 %v5922, %v6000
        %6002 = vmatmul.bf16.gmra.mxu0 %v5515
        %v6003 = vpop.f32.mrf.mxu0
        %v6004 = vadd.f32 %v5925, %v6003
        %v6005 = vpop.f32.mrf.mxu0
        %v6006 = vadd.f32 %v5927, %v6005
        %6007 = vmatmul.bf16.gmra.mxu0 %v5519
        %v6008 = vpop.f32.mrf.mxu0
        %v6009 = vadd.f32 %v5930, %v6008
        %v6010 = vpop.f32.mrf.mxu0
        %v6011 = vadd.f32 %v5932, %v6010
        %6012 = vmatmul.bf16.gmra.mxu0 %v5523
        %v6013 = vpop.f32.mrf.mxu0
        %v6014 = vadd.f32 %v5935, %v6013
        %v6015 = vpop.f32.mrf.mxu0
        %v6016 = vadd.f32 %v5937, %v6015
        %6017 = vdwg.mxu0
        %6018 = vmatpush.bf16.msra.mxu0 %v5748
        %6019 = vmatpush.bf16.msra.mxu0 %v5747
        %6020 = vmatpush.bf16.msra.mxu0 %v5746
        %6021 = vmatpush.bf16.msra.mxu0 %v5745
        %6022 = vmatpush.bf16.msra.mxu0 %v5744
        %6023 = vmatpush.bf16.msra.mxu0 %v5743
        %6024 = vmatpush.bf16.msra.mxu0 %v5742
        %6025 = vmatpush.bf16.msra.mxu0 %v5741
        %6026 = vmatmul.bf16.gmra.mxu0 %v5472
        %v6027 = vpop.f32.mrf.mxu0
        %v6028 = vadd.f32 %v5949, %v6027
        %v6029 = vpop.f32.mrf.mxu0
        %v6030 = vadd.f32 %v5951, %v6029
        %6031 = vmatmul.bf16.gmra.mxu0 %v5476
        %v6032 = vpop.f32.mrf.mxu0
        %v6033 = vadd.f32 %v5954, %v6032
        %v6034 = vpop.f32.mrf.mxu0
        %v6035 = vadd.f32 %v5956, %v6034
        %6036 = vmatmul.bf16.gmra.mxu0 %v5480
        %v6037 = vpop.f32.mrf.mxu0
        %v6038 = vadd.f32 %v5959, %v6037
        %v6039 = vpop.f32.mrf.mxu0
        %v6040 = vadd.f32 %v5961, %v6039
        %6041 = vmatmul.bf16.gmra.mxu0 %v5484
        %v6042 = vpop.f32.mrf.mxu0
        %v6043 = vadd.f32 %v5964, %v6042
        %v6044 = vpop.f32.mrf.mxu0
        %v6045 = vadd.f32 %v5966, %v6044
        %6046 = vmatmul.bf16.gmra.mxu0 %v5488
        %v6047 = vpop.f32.mrf.mxu0
        %v6048 = vadd.f32 %v5969, %v6047
        %v6049 = vpop.f32.mrf.mxu0
        %v6050 = vadd.f32 %v5971, %v6049
        %6051 = vmatmul.bf16.gmra.mxu0 %v5492
        %v6052 = vpop.f32.mrf.mxu0
        %v6053 = vadd.f32 %v5974, %v6052
        %v6054 = vpop.f32.mrf.mxu0
        %v6055 = vadd.f32 %v5976, %v6054
        %6056 = vmatmul.bf16.gmra.mxu0 %v5496
        %v6057 = vpop.f32.mrf.mxu0
        %v6058 = vadd.f32 %v5979, %v6057
        %v6059 = vpop.f32.mrf.mxu0
        %v6060 = vadd.f32 %v5981, %v6059
        %6061 = vmatmul.bf16.gmra.mxu0 %v5500
        %v6062 = vpop.f32.mrf.mxu0
        %v6063 = vadd.f32 %v5984, %v6062
        %v6064 = vpop.f32.mrf.mxu0
        %v6065 = vadd.f32 %v5986, %v6064
        %6066 = vmatmul.bf16.gmra.mxu0 %v5504
        %v6067 = vpop.f32.mrf.mxu0
        %v6068 = vadd.f32 %v5989, %v6067
        %v6069 = vpop.f32.mrf.mxu0
        %v6070 = vadd.f32 %v5991, %v6069
        %6071 = vmatmul.bf16.gmra.mxu0 %v5508
        %v6072 = vpop.f32.mrf.mxu0
        %v6073 = vadd.f32 %v5994, %v6072
        %v6074 = vpop.f32.mrf.mxu0
        %v6075 = vadd.f32 %v5996, %v6074
        %6076 = vmatmul.bf16.gmra.mxu0 %v5512
        %v6077 = vpop.f32.mrf.mxu0
        %v6078 = vadd.f32 %v5999, %v6077
        %v6079 = vpop.f32.mrf.mxu0
        %v6080 = vadd.f32 %v6001, %v6079
        %6081 = vmatmul.bf16.gmra.mxu0 %v5516
        %v6082 = vpop.f32.mrf.mxu0
        %v6083 = vadd.f32 %v6004, %v6082
        %v6084 = vpop.f32.mrf.mxu0
        %v6085 = vadd.f32 %v6006, %v6084
        %6086 = vmatmul.bf16.gmra.mxu0 %v5520
        %v6087 = vpop.f32.mrf.mxu0
        %v6088 = vadd.f32 %v6009, %v6087
        %v6089 = vpop.f32.mrf.mxu0
        %v6090 = vadd.f32 %v6011, %v6089
        %6091 = vmatmul.bf16.gmra.mxu0 %v5524
        %v6092 = vpop.f32.mrf.mxu0
        %v6093 = vadd.f32 %v6014, %v6092
        %v6094 = vpop.f32.mrf.mxu0
        %v6095 = vadd.f32 %v6016, %v6094
        %6096 = vdwg.mxu0
        %v6097 = vmul.f32 %v6028, %v6028
        %v6098 = vmul.f32 %v6030, %v6030
        %v6099 = vmul.f32 %v6033, %v6033
        %v6100 = vmul.f32 %v6035, %v6035
        %v6101 = vmul.f32 %v6038, %v6038
        %v6102 = vmul.f32 %v6040, %v6040
        %v6103 = vmul.f32 %v6043, %v6043
        %v6104 = vmul.f32 %v6045, %v6045
        %v6105 = vmul.f32 %v6048, %v6048
        %v6106 = vmul.f32 %v6050, %v6050
        %v6107 = vmul.f32 %v6053, %v6053
        %v6108 = vmul.f32 %v6055, %v6055
        %v6109 = vmul.f32 %v6058, %v6058
        %v6110 = vmul.f32 %v6060, %v6060
        %v6111 = vmul.f32 %v6063, %v6063
        %v6112 = vmul.f32 %v6065, %v6065
        %v6113 = vmul.f32 %v6068, %v6068
        %v6114 = vmul.f32 %v6070, %v6070
        %v6115 = vmul.f32 %v6073, %v6073
        %v6116 = vmul.f32 %v6075, %v6075
        %v6117 = vmul.f32 %v6078, %v6078
        %v6118 = vmul.f32 %v6080, %v6080
        %v6119 = vmul.f32 %v6083, %v6083
        %v6120 = vmul.f32 %v6085, %v6085
        %v6121 = vmul.f32 %v6088, %v6088
        %v6122 = vmul.f32 %v6090, %v6090
        %v6123 = vmul.f32 %v6093, %v6093
        %v6124 = vmul.f32 %v6095, %v6095
        %v6125 = vmul.f32 %v6028, %v6097
        %v6126 = vmul.f32 %v6030, %v6098
        %v6127 = vmul.f32 %v6033, %v6099
        %v6128 = vmul.f32 %v6035, %v6100
        %v6129 = vmul.f32 %v6038, %v6101
        %v6130 = vmul.f32 %v6040, %v6102
        %v6131 = vmul.f32 %v6043, %v6103
        %v6132 = vmul.f32 %v6045, %v6104
        %v6133 = vmul.f32 %v6048, %v6105
        %v6134 = vmul.f32 %v6050, %v6106
        %v6135 = vmul.f32 %v6053, %v6107
        %v6136 = vmul.f32 %v6055, %v6108
        %v6137 = vmul.f32 %v6058, %v6109
        %v6138 = vmul.f32 %v6060, %v6110
        %v6139 = vmul.f32 %v6063, %v6111
        %v6140 = vmul.f32 %v6065, %v6112
        %v6141 = vmul.f32 %v6068, %v6113
        %v6142 = vmul.f32 %v6070, %v6114
        %v6143 = vmul.f32 %v6073, %v6115
        %v6144 = vmul.f32 %v6075, %v6116
        %v6145 = vmul.f32 %v6078, %v6117
        %v6146 = vmul.f32 %v6080, %v6118
        %v6147 = vmul.f32 %v6083, %v6119
        %v6148 = vmul.f32 %v6085, %v6120
        %v6149 = vmul.f32 %v6088, %v6121
        %v6150 = vmul.f32 %v6090, %v6122
        %v6151 = vmul.f32 %v6093, %v6123
        %v6152 = vmul.f32 %v6095, %v6124
        %v6153 = vmul.f32 %v6125, 0.044715
        %v6154 = vmul.f32 %v6126, 0.044715
        %v6155 = vmul.f32 %v6127, 0.044715
        %v6156 = vmul.f32 %v6128, 0.044715
        %v6157 = vmul.f32 %v6129, 0.044715
        %v6158 = vmul.f32 %v6130, 0.044715
        %v6159 = vmul.f32 %v6131, 0.044715
        %v6160 = vmul.f32 %v6132, 0.044715
        %v6161 = vmul.f32 %v6133, 0.044715
        %v6162 = vmul.f32 %v6134, 0.044715
        %v6163 = vmul.f32 %v6135, 0.044715
        %v6164 = vmul.f32 %v6136, 0.044715
        %v6165 = vmul.f32 %v6137, 0.044715
        %v6166 = vmul.f32 %v6138, 0.044715
        %v6167 = vmul.f32 %v6139, 0.044715
        %v6168 = vmul.f32 %v6140, 0.044715
        %v6169 = vmul.f32 %v6141, 0.044715
        %v6170 = vmul.f32 %v6142, 0.044715
        %v6171 = vmul.f32 %v6143, 0.044715
        %v6172 = vmul.f32 %v6144, 0.044715
        %v6173 = vmul.f32 %v6145, 0.044715
        %v6174 = vmul.f32 %v6146, 0.044715
        %v6175 = vmul.f32 %v6147, 0.044715
        %v6176 = vmul.f32 %v6148, 0.044715
        %v6177 = vmul.f32 %v6149, 0.044715
        %v6178 = vmul.f32 %v6150, 0.044715
        %v6179 = vmul.f32 %v6151, 0.044715
        %v6180 = vmul.f32 %v6152, 0.044715
        %v6181 = vadd.f32 %v6028, %v6153
        %v6182 = vadd.f32 %v6030, %v6154
        %v6183 = vadd.f32 %v6033, %v6155
        %v6184 = vadd.f32 %v6035, %v6156
        %v6185 = vadd.f32 %v6038, %v6157
        %v6186 = vadd.f32 %v6040, %v6158
        %v6187 = vadd.f32 %v6043, %v6159
        %v6188 = vadd.f32 %v6045, %v6160
        %v6189 = vadd.f32 %v6048, %v6161
        %v6190 = vadd.f32 %v6050, %v6162
        %v6191 = vadd.f32 %v6053, %v6163
        %v6192 = vadd.f32 %v6055, %v6164
        %v6193 = vadd.f32 %v6058, %v6165
        %v6194 = vadd.f32 %v6060, %v6166
        %v6195 = vadd.f32 %v6063, %v6167
        %v6196 = vadd.f32 %v6065, %v6168
        %v6197 = vadd.f32 %v6068, %v6169
        %v6198 = vadd.f32 %v6070, %v6170
        %v6199 = vadd.f32 %v6073, %v6171
        %v6200 = vadd.f32 %v6075, %v6172
        %v6201 = vadd.f32 %v6078, %v6173
        %v6202 = vadd.f32 %v6080, %v6174
        %v6203 = vadd.f32 %v6083, %v6175
        %v6204 = vadd.f32 %v6085, %v6176
        %v6205 = vadd.f32 %v6088, %v6177
        %v6206 = vadd.f32 %v6090, %v6178
        %v6207 = vadd.f32 %v6093, %v6179
        %v6208 = vadd.f32 %v6095, %v6180
        %v6209 = vmul.f32 %v6181, 0.7978846
        %v6210 = vmul.f32 %v6182, 0.7978846
        %v6211 = vmul.f32 %v6183, 0.7978846
        %v6212 = vmul.f32 %v6184, 0.7978846
        %v6213 = vmul.f32 %v6185, 0.7978846
        %v6214 = vmul.f32 %v6186, 0.7978846
        %v6215 = vmul.f32 %v6187, 0.7978846
        %v6216 = vmul.f32 %v6188, 0.7978846
        %v6217 = vmul.f32 %v6189, 0.7978846
        %v6218 = vmul.f32 %v6190, 0.7978846
        %v6219 = vmul.f32 %v6191, 0.7978846
        %v6220 = vmul.f32 %v6192, 0.7978846
        %v6221 = vmul.f32 %v6193, 0.7978846
        %v6222 = vmul.f32 %v6194, 0.7978846
        %v6223 = vmul.f32 %v6195, 0.7978846
        %v6224 = vmul.f32 %v6196, 0.7978846
        %v6225 = vmul.f32 %v6197, 0.7978846
        %v6226 = vmul.f32 %v6198, 0.7978846
        %v6227 = vmul.f32 %v6199, 0.7978846
        %v6228 = vmul.f32 %v6200, 0.7978846
        %v6229 = vmul.f32 %v6201, 0.7978846
        %v6230 = vmul.f32 %v6202, 0.7978846
        %v6231 = vmul.f32 %v6203, 0.7978846
        %v6232 = vmul.f32 %v6204, 0.7978846
        %v6233 = vmul.f32 %v6205, 0.7978846
        %v6234 = vmul.f32 %v6206, 0.7978846
        %v6235 = vmul.f32 %v6207, 0.7978846
        %v6236 = vmul.f32 %v6208, 0.7978846
        %v6237 = vtanh.pop %v6209
        %v6238 = vtanh.pop %v6210
        %v6239 = vtanh.pop %v6211
        %v6240 = vtanh.pop %v6212
        %v6241 = vtanh.pop %v6213
        %v6242 = vtanh.pop %v6214
        %v6243 = vtanh.pop %v6215
        %v6244 = vtanh.pop %v6216
        %v6245 = vtanh.pop %v6217
        %v6246 = vtanh.pop %v6218
        %v6247 = vtanh.pop %v6219
        %v6248 = vtanh.pop %v6220
        %v6249 = vtanh.pop %v6221
        %v6250 = vtanh.pop %v6222
        %v6251 = vtanh.pop %v6223
        %v6252 = vtanh.pop %v6224
        %v6253 = vtanh.pop %v6225
        %v6254 = vtanh.pop %v6226
        %v6255 = vtanh.pop %v6227
        %v6256 = vtanh.pop %v6228
        %v6257 = vtanh.pop %v6229
        %v6258 = vtanh.pop %v6230
        %v6259 = vtanh.pop %v6231
        %v6260 = vtanh.pop %v6232
        %v6261 = vtanh.pop %v6233
        %v6262 = vtanh.pop %v6234
        %v6263 = vtanh.pop %v6235
        %v6264 = vtanh.pop %v6236
        %v6265 = vadd.f32 %v6237, 1.0
        %v6266 = vadd.f32 %v6238, 1.0
        %v6267 = vadd.f32 %v6239, 1.0
        %v6268 = vadd.f32 %v6240, 1.0
        %v6269 = vadd.f32 %v6241, 1.0
        %v6270 = vadd.f32 %v6242, 1.0
        %v6271 = vadd.f32 %v6243, 1.0
        %v6272 = vadd.f32 %v6244, 1.0
        %v6273 = vadd.f32 %v6245, 1.0
        %v6274 = vadd.f32 %v6246, 1.0
        %v6275 = vadd.f32 %v6247, 1.0
        %v6276 = vadd.f32 %v6248, 1.0
        %v6277 = vadd.f32 %v6249, 1.0
        %v6278 = vadd.f32 %v6250, 1.0
        %v6279 = vadd.f32 %v6251, 1.0
        %v6280 = vadd.f32 %v6252, 1.0
        %v6281 = vadd.f32 %v6253, 1.0
        %v6282 = vadd.f32 %v6254, 1.0
        %v6283 = vadd.f32 %v6255, 1.0
        %v6284 = vadd.f32 %v6256, 1.0
        %v6285 = vadd.f32 %v6257, 1.0
        %v6286 = vadd.f32 %v6258, 1.0
        %v6287 = vadd.f32 %v6259, 1.0
        %v6288 = vadd.f32 %v6260, 1.0
        %v6289 = vadd.f32 %v6261, 1.0
        %v6290 = vadd.f32 %v6262, 1.0
        %v6291 = vadd.f32 %v6263, 1.0
        %v6292 = vadd.f32 %v6264, 1.0
        %v6293 = vmul.f32 %v6265, 0.5
        %v6294 = vmul.f32 %v6266, 0.5
        %v6295 = vmul.f32 %v6267, 0.5
        %v6296 = vmul.f32 %v6268, 0.5
        %v6297 = vmul.f32 %v6269, 0.5
        %v6298 = vmul.f32 %v6270, 0.5
        %v6299 = vmul.f32 %v6271, 0.5
        %v6300 = vmul.f32 %v6272, 0.5
        %v6301 = vmul.f32 %v6273, 0.5
        %v6302 = vmul.f32 %v6274, 0.5
        %v6303 = vmul.f32 %v6275, 0.5
        %v6304 = vmul.f32 %v6276, 0.5
        %v6305 = vmul.f32 %v6277, 0.5
        %v6306 = vmul.f32 %v6278, 0.5
        %v6307 = vmul.f32 %v6279, 0.5
        %v6308 = vmul.f32 %v6280, 0.5
        %v6309 = vmul.f32 %v6281, 0.5
        %v6310 = vmul.f32 %v6282, 0.5
        %v6311 = vmul.f32 %v6283, 0.5
        %v6312 = vmul.f32 %v6284, 0.5
        %v6313 = vmul.f32 %v6285, 0.5
        %v6314 = vmul.f32 %v6286, 0.5
        %v6315 = vmul.f32 %v6287, 0.5
        %v6316 = vmul.f32 %v6288, 0.5
        %v6317 = vmul.f32 %v6289, 0.5
        %v6318 = vmul.f32 %v6290, 0.5
        %v6319 = vmul.f32 %v6291, 0.5
        %v6320 = vmul.f32 %v6292, 0.5
        %v6321 = vmul.f32 %v6028, %v6293
        %v6322 = vmul.f32 %v6030, %v6294
        %v6323 = vmul.f32 %v6033, %v6295
        %v6324 = vmul.f32 %v6035, %v6296
        %v6325 = vmul.f32 %v6038, %v6297
        %v6326 = vmul.f32 %v6040, %v6298
        %v6327 = vmul.f32 %v6043, %v6299
        %v6328 = vmul.f32 %v6045, %v6300
        %v6329 = vmul.f32 %v6048, %v6301
        %v6330 = vmul.f32 %v6050, %v6302
        %v6331 = vmul.f32 %v6053, %v6303
        %v6332 = vmul.f32 %v6055, %v6304
        %v6333 = vmul.f32 %v6058, %v6305
        %v6334 = vmul.f32 %v6060, %v6306
        %v6335 = vmul.f32 %v6063, %v6307
        %v6336 = vmul.f32 %v6065, %v6308
        %v6337 = vmul.f32 %v6068, %v6309
        %v6338 = vmul.f32 %v6070, %v6310
        %v6339 = vmul.f32 %v6073, %v6311
        %v6340 = vmul.f32 %v6075, %v6312
        %v6341 = vmul.f32 %v6078, %v6313
        %v6342 = vmul.f32 %v6080, %v6314
        %v6343 = vmul.f32 %v6083, %v6315
        %v6344 = vmul.f32 %v6085, %v6316
        %v6345 = vmul.f32 %v6088, %v6317
        %v6346 = vmul.f32 %v6090, %v6318
        %v6347 = vmul.f32 %v6093, %v6319
        %v6348 = vmul.f32 %v6095, %v6320
        %v6349 = vadd.f32 %v3675, %v6321
        %v6350 = vadd.f32 %v3677, %v6322
        %v6351 = vadd.f32 %v3680, %v6323
        %v6352 = vadd.f32 %v3682, %v6324
        %v6353 = vadd.f32 %v3685, %v6325
        %v6354 = vadd.f32 %v3687, %v6326
        %v6355 = vadd.f32 %v3690, %v6327
        %v6356 = vadd.f32 %v3757, %v6328
        %v6357 = vadd.f32 %v3759, %v6329
        %v6358 = vadd.f32 %v3762, %v6330
        %v6359 = vadd.f32 %v3764, %v6331
        %v6360 = vadd.f32 %v3767, %v6332
        %v6361 = vadd.f32 %v3769, %v6333
        %v6362 = vadd.f32 %v3772, %v6334
        %v6363 = vadd.f32 %v3839, %v6335
        %v6364 = vadd.f32 %v3841, %v6336
        %v6365 = vadd.f32 %v3844, %v6337
        %v6366 = vadd.f32 %v3846, %v6338
        %v6367 = vadd.f32 %v3849, %v6339
        %v6368 = vadd.f32 %v3851, %v6340
        %v6369 = vadd.f32 %v3854, %v6341
        %v6370 = vadd.f32 %v3921, %v6342
        %v6371 = vadd.f32 %v3923, %v6343
        %v6372 = vadd.f32 %v3926, %v6344
        %v6373 = vadd.f32 %v3928, %v6345
        %v6374 = vadd.f32 %v3931, %v6346
        %v6375 = vadd.f32 %v3933, %v6347
        %v6376 = vadd.f32 %v3936, %v6348
        %v6377 = vlaneseq
        %v6378 = vshrl.u32 %v6377, 7
        %v6379 = vadd.s32 %v6378, 8
        %v6380 = vadd.s32 %v6378, 16
        %v6381 = vadd.s32 %v6378, 24
        %v6382 = vadd.s32 %v6378, 32
        %v6383 = vadd.s32 %v6378, 40
        %v6384 = vadd.s32 %v6378, 48
        %vm6385 = vcmp.lt.s32.totalorder %v6378, 49
        %vm6386 = vcmp.lt.s32.totalorder %v6379, 49
        %vm6387 = vcmp.lt.s32.totalorder %v6380, 49
        %vm6388 = vcmp.lt.s32.totalorder %v6381, 49
        %vm6389 = vcmp.lt.s32.totalorder %v6382, 49
        %vm6390 = vcmp.lt.s32.totalorder %v6383, 49
        %vm6391 = vcmp.lt.s32.totalorder %v6384, 49
        %v6392 = vsel %vm6385, 1, 0
        %v6393 = vsel %vm6386, 1, 0
        %v6394 = vsel %vm6387, 1, 0
        %v6395 = vsel %vm6388, 1, 0
        %v6396 = vsel %vm6389, 1, 0
        %v6397 = vsel %vm6390, 1, 0
        %v6398 = vsel %vm6391, 1, 0
        %vm6399 = vcmp.eq.s32.totalorder %v6392, 1
        %vm6400 = vcmp.eq.s32.totalorder %v6393, 1
        %vm6401 = vcmp.eq.s32.totalorder %v6394, 1
        %vm6402 = vcmp.eq.s32.totalorder %v6395, 1
        %vm6403 = vcmp.eq.s32.totalorder %v6396, 1
        %vm6404 = vcmp.eq.s32.totalorder %v6397, 1
        %vm6405 = vcmp.eq.s32.totalorder %v6398, 1
        %v6406 = vsel %vm6399, %v6349, 0.0
        %v6407 = vsel %vm6400, %v6350, 0.0
        %v6408 = vsel %vm6401, %v6351, 0.0
        %v6409 = vsel %vm6402, %v6352, 0.0
        %v6410 = vsel %vm6403, %v6353, 0.0
        %v6411 = vsel %vm6404, %v6354, 0.0
        %v6412 = vsel %vm6405, %v6355, 0.0
        %v6413 = vsel %vm6399, %v6356, 0.0
        %v6414 = vsel %vm6400, %v6357, 0.0
        %v6415 = vsel %vm6401, %v6358, 0.0
        %v6416 = vsel %vm6402, %v6359, 0.0
        %v6417 = vsel %vm6403, %v6360, 0.0
        %v6418 = vsel %vm6404, %v6361, 0.0
        %v6419 = vsel %vm6405, %v6362, 0.0
        %v6420 = vsel %vm6399, %v6363, 0.0
        %v6421 = vsel %vm6400, %v6364, 0.0
        %v6422 = vsel %vm6401, %v6365, 0.0
        %v6423 = vsel %vm6402, %v6366, 0.0
        %v6424 = vsel %vm6403, %v6367, 0.0
        %v6425 = vsel %vm6404, %v6368, 0.0
        %v6426 = vsel %vm6405, %v6369, 0.0
        %v6427 = vsel %vm6399, %v6370, 0.0
        %v6428 = vsel %vm6400, %v6371, 0.0
        %v6429 = vsel %vm6401, %v6372, 0.0
        %v6430 = vsel %vm6402, %v6373, 0.0
        %v6431 = vsel %vm6403, %v6374, 0.0
        %v6432 = vsel %vm6404, %v6375, 0.0
        %v6433 = vsel %vm6405, %v6376, 0.0
        %v6434 = vadd.f32 %v6406, %v6407
        %v6435 = vadd.f32 %v6434, %v6408
        %v6436 = vadd.f32 %v6435, %v6409
        %v6437 = vadd.f32 %v6436, %v6410
        %v6438 = vadd.f32 %v6437, %v6411
        %v6439 = vadd.f32 %v6438, %v6412
        %v6440 = vrot.slane %v6439, 4
        %v6441 = vadd.f32 %v6439, %v6440
        %v6442 = vrot.slane %v6441, 2
        %v6443 = vadd.f32 %v6441, %v6442
        %v6444 = vrot.slane %v6443, 1
        %v6445 = vadd.f32 %v6443, %v6444
        %v6446 = vadd.f32 %v6413, %v6414
        %v6447 = vadd.f32 %v6446, %v6415
        %v6448 = vadd.f32 %v6447, %v6416
        %v6449 = vadd.f32 %v6448, %v6417
        %v6450 = vadd.f32 %v6449, %v6418
        %v6451 = vadd.f32 %v6450, %v6419
        %v6452 = vrot.slane %v6451, 4
        %v6453 = vadd.f32 %v6451, %v6452
        %v6454 = vrot.slane %v6453, 2
        %v6455 = vadd.f32 %v6453, %v6454
        %v6456 = vrot.slane %v6455, 1
        %v6457 = vadd.f32 %v6455, %v6456
        %v6458 = vadd.f32 %v6420, %v6421
        %v6459 = vadd.f32 %v6458, %v6422
        %v6460 = vadd.f32 %v6459, %v6423
        %v6461 = vadd.f32 %v6460, %v6424
        %v6462 = vadd.f32 %v6461, %v6425
        %v6463 = vadd.f32 %v6462, %v6426
        %v6464 = vrot.slane %v6463, 4
        %v6465 = vadd.f32 %v6463, %v6464
        %v6466 = vrot.slane %v6465, 2
        %v6467 = vadd.f32 %v6465, %v6466
        %v6468 = vrot.slane %v6467, 1
        %v6469 = vadd.f32 %v6467, %v6468
        %v6470 = vadd.f32 %v6427, %v6428
        %v6471 = vadd.f32 %v6470, %v6429
        %v6472 = vadd.f32 %v6471, %v6430
        %v6473 = vadd.f32 %v6472, %v6431
        %v6474 = vadd.f32 %v6473, %v6432
        %v6475 = vadd.f32 %v6474, %v6433
        %v6476 = vrot.slane %v6475, 4
        %v6477 = vadd.f32 %v6475, %v6476
        %v6478 = vrot.slane %v6477, 2
        %v6479 = vadd.f32 %v6477, %v6478
        %v6480 = vrot.slane %v6479, 1
        %v6481 = vadd.f32 %v6479, %v6480
        %v6482 = vmul.f32 %v6445, 0.020408163
        %v6483 = vmul.f32 %v6457, 0.020408163
        %v6484 = vmul.f32 %v6469, 0.020408163
        %v6485 = vmul.f32 %v6481, 0.020408163
        %v6486 = vpack.c.bf16 %v6482, %v6482
        %v6487 = vpack.c.bf16 %v6483, %v6483
        %v6488 = vpack.c.bf16 %v6484, %v6484
        %v6489 = vpack.c.bf16 %v6485, %v6485
        %v6490 = vld [vmem:[#allocation17] sm:$0xf]
        %v6491 = vld [vmem:[#allocation17 + $0x4] sm:$0xf]
        %v6492 = vld [vmem:[#allocation17 + $0x8] sm:$0xf]
        %v6493 = vld [vmem:[#allocation17 + $0xc] sm:$0xf]
        %v6494 = vld [vmem:[#allocation17 + $0x10] sm:$0xf]
        %v6495 = vld [vmem:[#allocation17 + $0x14] sm:$0xf]
        %v6496 = vld [vmem:[#allocation17 + $0x18] sm:$0xf]
        %v6497 = vld [vmem:[#allocation17 + $0x1c] sm:$0xf]
        %v6498 = vld [vmem:[#allocation17 + $0x20] sm:$0xf]
        %v6499 = vld [vmem:[#allocation17 + $0x24] sm:$0xf]
        %v6500 = vld [vmem:[#allocation17 + $0x28] sm:$0xf]
        %v6501 = vld [vmem:[#allocation17 + $0x2c] sm:$0xf]
        %v6502 = vld [vmem:[#allocation17 + $0x30] sm:$0xf]
        %v6503 = vld [vmem:[#allocation17 + $0x34] sm:$0xf]
        %v6504 = vld [vmem:[#allocation17 + $0x38] sm:$0xf]
        %v6505 = vld [vmem:[#allocation17 + $0x3c] sm:$0xf]
        %v6506 = vld [vmem:[%s11] sm:$0x1]
        %v6508 = vperm.slane %v6506, 0
        %v6514 = vunpack.c.l.b16 %v6486
        %v6515 = vunpack.c.l.b16 %v6487
        %v6516 = vunpack.c.l.b16 %v6488
        %v6517 = vunpack.c.l.b16 %v6489
        %vm6518 = vcmask 1041409
        %v6519 = vsel %vm6518, %v6515, %v6514
        %vm6520 = vcmask 1042434
        %v6521 = vsel %vm6520, %v6516, %v6519
        %vm6522 = vcmask 1043459
        %v6523 = vsel %vm6522, %v6517, %v6521
        %v6524 = vpack.c.b16 %v6523, %v6523
        %v6542 = vunpack.c.l.b16 %v6490
        %v6543 = vunpack.c.l.b16 %v6491
        %v6544 = vunpack.c.l.b16 %v6492
        %v6545 = vunpack.c.l.b16 %v6493
        %v6546 = vunpack.c.l.b16 %v6494
        %v6547 = vunpack.c.l.b16 %v6495
        %v6548 = vunpack.c.l.b16 %v6496
        %v6549 = vunpack.c.l.b16 %v6497
        %v6550 = vunpack.c.l.b16 %v6498
        %v6551 = vunpack.c.l.b16 %v6499
        %v6552 = vunpack.c.l.b16 %v6500
        %v6553 = vunpack.c.l.b16 %v6501
        %v6554 = vunpack.c.l.b16 %v6502
        %v6555 = vunpack.c.l.b16 %v6503
        %v6556 = vunpack.c.l.b16 %v6504
        %v6557 = vunpack.c.l.b16 %v6505
        %v6558 = vpack.c.b16 %v6543, %v6542
        %v6559 = vpack.c.b16 %v6545, %v6544
        %v6560 = vpack.c.b16 %v6547, %v6546
        %v6561 = vpack.c.b16 %v6549, %v6548
        %v6562 = vpack.c.b16 %v6551, %v6550
        %v6563 = vpack.c.b16 %v6553, %v6552
        %v6564 = vpack.c.b16 %v6555, %v6554
        %v6565 = vpack.c.b16 %v6557, %v6556
        %6574 = vmatpush.bf16.msra.mxu0 %v6565
        %6575 = vmatpush.bf16.msra.mxu0 %v6564
        %6576 = vmatpush.bf16.msra.mxu0 %v6563
        %6577 = vmatpush.bf16.msra.mxu0 %v6562
        %6578 = vmatpush.bf16.msra.mxu0 %v6561
        %6579 = vmatpush.bf16.msra.mxu0 %v6560
        %6580 = vmatpush.bf16.msra.mxu0 %v6559
        %6581 = vmatpush.bf16.msra.mxu0 %v6558
        %6582 = vmatmul.bf16.gmra.mxu0 %v6524
        %v6583 = vpop.f32.mrf.mxu0
        %v6584 = vadd.f32 %v6508, %v6583
        %v6585 = vpop.f32.mrf.mxu0
        %6586 = vdwg.mxu0
        %v6587 = vmax.f32 %v6584, 0.0
        %v6588 = vpack.c.bf16 %v6587, %v6587
        %v6589 = vld [vmem:[%s12] sm:$0xf]
        %v6590 = vld [vmem:[%s12 + $0x4] sm:$0xf]
        %v6591 = vld [vmem:[%s12 + $0x8] sm:$0xf]
        %v6592 = vld [vmem:[%s12 + $0xc] sm:$0xf]
        %v6593 = vld [vmem:[%s12 + $0x10] sm:$0xf]
        %v6594 = vld [vmem:[%s12 + $0x14] sm:$0xf]
        %v6595 = vld [vmem:[%s12 + $0x18] sm:$0xf]
        %v6596 = vld [vmem:[%s12 + $0x1c] sm:$0xf]
        %v6597 = vld [vmem:[%s12 + $0x20] sm:$0xf]
        %v6598 = vld [vmem:[%s12 + $0x24] sm:$0xf]
        %v6599 = vld [vmem:[%s12 + $0x28] sm:$0xf]
        %v6600 = vld [vmem:[%s12 + $0x2c] sm:$0xf]
        %v6601 = vld [vmem:[%s12 + $0x30] sm:$0xf]
        %v6602 = vld [vmem:[%s12 + $0x34] sm:$0xf]
        %v6603 = vld [vmem:[%s12 + $0x38] sm:$0xf]
        %v6604 = vld [vmem:[%s12 + $0x3c] sm:$0xf]
        %v6605 = vld [vmem:[#allocation2] sm:$0x1]
        %v6607 = vperm.slane %v6605, 0
        %v6625 = vunpack.c.l.b16 %v6589
        %v6626 = vunpack.c.l.b16 %v6590
        %v6627 = vunpack.c.l.b16 %v6591
        %v6628 = vunpack.c.l.b16 %v6592
        %v6629 = vunpack.c.l.b16 %v6593
        %v6630 = vunpack.c.l.b16 %v6594
        %v6631 = vunpack.c.l.b16 %v6595
        %v6632 = vunpack.c.l.b16 %v6596
        %v6633 = vunpack.c.l.b16 %v6597
        %v6634 = vunpack.c.l.b16 %v6598
        %v6635 = vunpack.c.l.b16 %v6599
        %v6636 = vunpack.c.l.b16 %v6600
        %v6637 = vunpack.c.l.b16 %v6601
        %v6638 = vunpack.c.l.b16 %v6602
        %v6639 = vunpack.c.l.b16 %v6603
        %v6640 = vunpack.c.l.b16 %v6604
        %v6641 = vpack.c.b16 %v6626, %v6625
        %v6642 = vpack.c.b16 %v6628, %v6627
        %v6643 = vpack.c.b16 %v6630, %v6629
        %v6644 = vpack.c.b16 %v6632, %v6631
        %v6645 = vpack.c.b16 %v6634, %v6633
        %v6646 = vpack.c.b16 %v6636, %v6635
        %v6647 = vpack.c.b16 %v6638, %v6637
        %v6648 = vpack.c.b16 %v6640, %v6639
        %6657 = vmatpush.bf16.msra.mxu0 %v6648
        %6658 = vmatpush.bf16.msra.mxu0 %v6647
        %6659 = vmatpush.bf16.msra.mxu0 %v6646
        %6660 = vmatpush.bf16.msra.mxu0 %v6645
        %6661 = vmatpush.bf16.msra.mxu0 %v6644
        %6662 = vmatpush.bf16.msra.mxu0 %v6643
        %6663 = vmatpush.bf16.msra.mxu0 %v6642
        %6664 = vmatpush.bf16.msra.mxu0 %v6641
        %6665 = vmatmul.bf16.gmra.mxu0 %v6588
        %v6666 = vpop.f32.mrf.mxu0
        %v6667 = vadd.f32 %v6607, %v6666
        %v6668 = vpop.f32.mrf.mxu0
        %6669 = vdwg.mxu0
        %v6671 = vrot.slane %v6667, 1
        %v6672 = vrot.slane %v6667, 2
        %v6673 = vrot.slane %v6667, 3
        %6674 = vset.pattern.permute.xlu0 0
        %6675 = vperm.xlu0 %6674, %v6667
        %v6676 = vpop.permute.xlu0 %6675
        %v6678 = vperm.slane %v6676, 0
        %6679 = vset.pattern.permute.xlu0 0
        %6680 = vperm.xlu0 %6679, %v6671
        %v6681 = vpop.permute.xlu0 %6680
        %v6683 = vperm.slane %v6681, 0
        %6684 = vset.pattern.permute.xlu0 0
        %6685 = vperm.xlu0 %6684, %v6672
        %v6686 = vpop.permute.xlu0 %6685
        %v6688 = vperm.slane %v6686, 0
        %6689 = vset.pattern.permute.xlu0 0
        %6690 = vperm.xlu0 %6689, %v6673
        %v6691 = vpop.permute.xlu0 %6690
        %v6693 = vperm.slane %v6691, 0
        %6694 = vst [vmem:[%s648] sm:$0x1] %v6678
        %6695 = vst [vmem:[%s648 + $0x1] sm:$0x1] %v6683
        %6696 = vst [vmem:[%s648 + $0x2] sm:$0x1] %v6688
        %6697 = vst [vmem:[%s648 + $0x3] sm:$0x1] %v6693
        %s6698 = sand.u32 %s351, 1
        %s6699 = scalar_lea.sflag [#allocation5], %s6698
        %s6700 = sand.u32 %s351, 1
        %s6701 = smul.addr %s6700, 4
        %s6702 = scalar_lea.vmem [#allocation18], %s6701
        // Predicated region
        $region113: #{tpu_custom_call.1} parent=75 // pred_check
          %p6703 = pneg %p361
        $region114: #{tpu_custom_call.1} parent=75 // pred_check_branch
          %6705 = sbr.rel (%p6703) target = $region116
        $region115: #{tpu_custom_call.1} parent=75 // pred_region
          %s6706 = smul.u32 4, %s39
          %6708 = vsyncadd %s6699, 0
          %s6709 = scalar_lea.hbm %s14, %s6706
          %s6710 = sshll.u32 %s6702, 4
          %s6711 = int_to_ptr.vmem [resolvable:$true] %s6710
          %s6712 = sshll.u32 %s6709, 4
          %s6713 = int_to_ptr.hbm [resolvable:$true] %s6712
          %6718 = dma.vmem_to_hbm [thread:$0]  %s6711, 64, %s6713, %s6699, 16, 16, 1
        $region116: #{tpu_custom_call.1} parent=75 // pred_fallthru
          _
      $region76: #{tpu_custom_call.1} parent=5 // pred_fallthru
        _
      %p6719 = scmp.le.s32.totalorder 2, %s34
      // Predicated region
      $region117: #{tpu_custom_call.1} parent=5 // pred_check
        %p6720 = pneg %p6719
      $region118: #{tpu_custom_call.1} parent=5 // pred_check_branch
        %6722 = sbr.rel (%p6720) target = $region120
      $region119: #{tpu_custom_call.1} parent=5 // pred_region
        %s6723 = ssub.s32 %s34, 2
        // Predicated region
        $region121: #{tpu_custom_call.1} parent=119 // pred_check
          %p6724 = pneg %p367
        $region122: #{tpu_custom_call.1} parent=119 // pred_check_branch
          %6726 = sbr.rel (%p6724) target = $region124
        $region123: #{tpu_custom_call.1} parent=119 // pred_region
          %s6727 = sand.u32 %s352, 1
          %s6728 = scalar_lea.sflag [#allocation5], %s6727
          %s6729 = sand.u32 %s352, 1
          %s6730 = smul.addr %s6729, 4
          %s6731 = scalar_lea.vmem [#allocation18], %s6730
          %6733 = dma.done %s6728, 64
        $region124: #{tpu_custom_call.1} parent=119 // pred_fallthru
          _
      $region120: #{tpu_custom_call.1} parent=5 // pred_fallthru
        _
    $region6: #{tpu_custom_call.1} parent=1 // loop_footer
      %s38 = sadd.s32 1, %s34
    $region7: #{tpu_custom_call.1} parent=1 // loop_footer_branch
      %33 = sbr.rel target = $region3
    $region8: #{tpu_custom_call.1} parent=1 // loop_exit
      _
    %6734 = vsyncpa [#allocation4], 1
    %s6735 = scalar_lea.sflag [#allocation4], 1
    %6736 = vsyncpa %s6735, 1
    %6737 = vsyncpa [#allocation7], 1
    %s6738 = scalar_lea.sflag [#allocation7], 1
    %6739 = vsyncpa %s6738, 1
    %6740 = vsyncpa [#allocation10], 1
    %6741 = vsyncpa [#allocation13], 1
    %6742 = vsyncpa [#allocation16], 1
    %6743 = vsyncpa [#allocation5], 1
    %s6744 = scalar_lea.sflag [#allocation5], 1
    %6745 = vsyncpa %s6744, 1

</llo_original>
